<compile_context>
chip_gen: v5e
topology: v5e:2x2
jax: 0.10.0
libtpu: 0.0.40
codegen_flags: <defaults>
</compile_context>

<pallas_src>
import functools

import jax
import jax.numpy as jnp
from jax.experimental import pallas as pl
from jax.experimental.pallas import tpu as pltpu

IN_DIM = 784   # 28 * 28
LATENT = 10
H1 = 128
H2 = 64


def vae_kernel(
    x_ref, eps_ref,
    w1_ref, b1_ref,        # encoder Linear(784, 128)   (w1 in bf16, bias f32)
    w2_ref, b2_ref,        # encoder Linear(128, 64)
    wmulv_ref, bmulv_ref,  # fused [fc_mu | fc_logvar]  (64, 2*LATENT)
    wzc_ref, bzc_ref,      # fused [dec1 | classifier]  (LATENT, 64 + n_classes)
    wd2_ref, bd2_ref,      # decoder Linear(64, 128)
    wd3_ref, bd3_ref,      # decoder Linear(128, 784)   (wd3 in bf16, bias f32)
    recon_ref, small_ref,  # (TB, 784) bf16, (TB, 128) f32 lane-dense slab
):
    # x arrives bf16 from the producer (astype is a no-op then); f32 also accepted.
    x = x_ref[...].astype(jnp.bfloat16)

    # ---- encoder: Linear(784,128) -> ReLU -> Linear(128,64) -> ReLU ----
    h1 = jnp.dot(x, w1_ref[...], preferred_element_type=jnp.float32) + b1_ref[...]
    h1 = jnp.maximum(h1, 0.0)
    h2 = jnp.dot(h1, w2_ref[...], preferred_element_type=jnp.float32) + b2_ref[...]
    h2 = jnp.maximum(h2, 0.0)

    # ---- fused latent heads: one (64, 20) matmul, then slice ----
    mulv = jnp.dot(h2, wmulv_ref[...], preferred_element_type=jnp.float32) + bmulv_ref[...]
    mu = mulv[:, :LATENT]
    logvar = mulv[:, LATENT:]

    # ---- reparameterize: z = mu + eps * exp(0.5 * logvar) ----
    z = mu + eps_ref[...].astype(jnp.float32) * jnp.exp(0.5 * logvar)

    # ---- fused decoder layer 1 + classifier: one (10, 64+C) matmul ----
    zc = jnp.dot(z, wzc_ref[...], preferred_element_type=jnp.float32) + bzc_ref[...]
    d1 = jnp.maximum(zc[:, :H2], 0.0)
    cls_logits = zc[:, H2:]

    # ---- rest of decoder ----
    d2 = jnp.dot(d1, wd2_ref[...], preferred_element_type=jnp.float32) + bd2_ref[...]
    d2 = jnp.maximum(d2, 0.0)
    logits_rec = jnp.dot(d2.astype(jnp.bfloat16), wd3_ref[...],
                         preferred_element_type=jnp.float32) + bd3_ref[...]

    # sigmoid(x) == 0.5 * tanh(0.5 * x) + 0.5 : single EUP push per element.
    recon_ref[...] = (0.5 * jnp.tanh(0.5 * logits_rec) + 0.5).astype(recon_ref.dtype)

    # ---- classifier log-softmax (stable, f32) ----
    m = jnp.max(cls_logits, axis=-1, keepdims=True)
    shifted = cls_logits - m
    lse = jnp.log(jnp.sum(jnp.exp(shifted), axis=-1, keepdims=True))
    log_probs = shifted - lse

    # pack narrow outputs [mu | logvar | log_probs] and zero-pad to a full
    # 128-lane slab so the store is an unmasked vst + lane-dense writeback DMA.
    packed = jnp.concatenate([mulv, log_probs], axis=-1)
    pad = small_ref.shape[-1] - packed.shape[-1]
    if pad > 0:
        packed = jnp.concatenate(
            [packed, jnp.zeros((packed.shape[0], pad), jnp.float32)], axis=-1)
    small_ref[...] = packed


def _init_linear(key, fan_in, fan_out):
    """Mimics PyTorch Linear default init (uniform +-1/sqrt(fan_in))."""
    kw, kb = jax.random.split(key)
    bound = 1.0 / jnp.sqrt(fan_in)
    w = jax.random.uniform(kw, (fan_in, fan_out), jnp.float32, -bound, bound)
    b = jax.random.uniform(kb, (1, fan_out), jnp.float32, -bound, bound)
    return w, b


def make_vae_params(key, n_classes=10):
    keys = jax.random.split(key, 8)
    return {
        "enc1": _init_linear(keys[0], IN_DIM, H1),
        "enc2": _init_linear(keys[1], H1, H2),
        "mu": _init_linear(keys[2], H2, LATENT),
        "logvar": _init_linear(keys[3], H2, LATENT),
        "dec1": _init_linear(keys[4], LATENT, H2),
        "dec2": _init_linear(keys[5], H2, H1),
        "dec3": _init_linear(keys[6], H1, IN_DIM),
        "cls": _init_linear(keys[7], LATENT, n_classes),
    }


def _pick_tile(B):
    """Largest batch tile that still leaves >= 4 grid steps (v7x megacore keeps
    both TCs busy with pipeline overlap); otherwise fall back to 128."""
    for t in (1024, 512, 256):
        if pl.cdiv(B, t) >= 4:
            return t
    return 128


@functools.partial(jax.jit, static_argnames=("n_classes", "tb", "recon_dtype"))
def vae_forward(x, eps, params, n_classes=10, tb=None, recon_dtype=jnp.bfloat16):
    """x: (B, 784) bf16 (or f32), eps: (B, 10) f32 -> (recon, log_probs, mu, logvar).

    Precision contract: enc1/dec3 matmuls use bf16 operands with f32 MXU
    accumulation, and recon is emitted in `recon_dtype` (default bf16) to halve
    the dominant HBM write stream. Downstream losses should accumulate in f32.
    """
    B = x.shape[0]
    if tb is None:
        tb = _pick_tile(B)
    nb = pl.cdiv(B, tb)
    Bp = nb * tb
    if Bp != B:  # pad batch to a multiple of the tile (extra rows sliced off below)
        x = jnp.pad(x, ((0, Bp - B), (0, 0)))
        eps = jnp.pad(eps, ((0, Bp - B), (0, 0)))

    # Fuse small parallel matmuls; big 784-dim weights stored as bf16.
    w1 = params["enc1"][0].astype(jnp.bfloat16)
    b1 = params["enc1"][1]
    w2, b2 = params["enc2"]
    wmulv = jnp.concatenate([params["mu"][0], params["logvar"][0]], axis=1)
    bmulv = jnp.concatenate([params["mu"][1], params["logvar"][1]], axis=1)
    wzc = jnp.concatenate([params["dec1"][0], params["cls"][0]], axis=1)
    bzc = jnp.concatenate([params["dec1"][1], params["cls"][1]], axis=1)
    wd2, bd2 = params["dec2"]
    wd3 = params["dec3"][0].astype(jnp.bfloat16)
    bd3 = params["dec3"][1]

    operands = (x, eps, w1, b1, w2, b2, wmulv, bmulv, wzc, bzc, wd2, bd2, wd3, bd3)

    def batch_spec(feat):
        return pl.BlockSpec((tb, feat), lambda i: (i, 0))

    def resident_spec(a):  # weights/biases: same block every grid step -> stays in VMEM
        return pl.BlockSpec(a.shape, lambda i: (0, 0))

    in_specs = [batch_spec(IN_DIM), batch_spec(LATENT)] + [resident_spec(a) for a in operands[2:]]

    small_w_real = 2 * LATENT + n_classes
    small_w = pl.cdiv(small_w_real, 128) * 128          # lane-dense padded slab
    out_shape = (
        jax.ShapeDtypeStruct((Bp, IN_DIM), recon_dtype),
        jax.ShapeDtypeStruct((Bp, small_w), jnp.float32),
    )
    out_specs = (batch_spec(IN_DIM), batch_spec(small_w))

    # Larger tiles need more room for the double-buffered x/recon streams.
    vmem_limit = 32 * 1024 * 1024 if tb >= 512 else 16 * 1024 * 1024

    recon_p, small_p = pl.pallas_call(
        vae_kernel,
        out_shape=out_shape,
        grid=(nb,),
        in_specs=in_specs,
        out_specs=out_specs,
        compiler_params=pltpu.CompilerParams(
            dimension_semantics=("parallel",),     # shard batch tiles across TCs (v7x)
            vmem_limit_bytes=vmem_limit,
        ),
    )(*operands)

    recon = recon_p[:B]
    small = small_p[:B, :small_w_real]
    mu = small[:, :LATENT]
    logvar = small[:, LATENT:2 * LATENT]
    log_probs = small[:, 2 * LATENT:]
    return recon, log_probs, mu, logvar


if __name__ == "__main__":
    B = 256          # 2 batch tiles of 128 rows -> exercises the grid/pipeline
    n_classes = 10

    key = jax.random.PRNGKey(0)
    k_x, k_eps, k_params = jax.random.split(key, 3)

    # PyTorch forward does x.view(-1, 784); the producer emits the flattened image
    # in bf16 so the kernel's dominant read stream is half-width (perf review).
    x_f32 = jax.random.uniform(k_x, (B, IN_DIM), jnp.float32)
    x = x_f32.astype(jnp.bfloat16)
    # torch.randn_like noise drawn in the wrapper and passed in explicitly.
    eps = jax.random.normal(k_eps, (B, LATENT), jnp.float32)
    params = make_vae_params(k_params, n_classes=n_classes)

    recon, log_probs, mu, logvar = vae_forward(x, eps, params, n_classes=n_classes)
    jax.block_until_ready((recon, log_probs, mu, logvar))

    # Pure-f32 JAX reference built from the same bf16 input the kernel sees.
    # The kernel uses bf16 MXU operands for the two 784-dim matmuls and emits
    # recon in bf16, so compare with a correspondingly relaxed tolerance.
    def ref_forward(xr, eps, p):
        h = jnp.maximum(xr @ p["enc1"][0] + p["enc1"][1], 0.0)
        h = jnp.maximum(h @ p["enc2"][0] + p["enc2"][1], 0.0)
        mu_r = h @ p["mu"][0] + p["mu"][1]
        lv_r = h @ p["logvar"][0] + p["logvar"][1]
        z = mu_r + eps * jnp.exp(0.5 * lv_r)
        d = jnp.maximum(z @ p["dec1"][0] + p["dec1"][1], 0.0)
        d = jnp.maximum(d @ p["dec2"][0] + p["dec2"][1], 0.0)
        rec = jax.nn.sigmoid(d @ p["dec3"][0] + p["dec3"][1])
        lg = z @ p["cls"][0] + p["cls"][1]
        lp = jax.nn.log_softmax(lg, axis=1)
        return rec, lp, mu_r, lv_r

    r_ref, lp_ref, mu_ref_v, lv_ref_v = ref_forward(x.astype(jnp.float32), eps, params)
    assert jnp.allclose(recon.astype(jnp.float32), r_ref, atol=5e-2, rtol=5e-2)
    assert jnp.allclose(log_probs, lp_ref, atol=5e-2, rtol=5e-2)
    assert jnp.allclose(mu, mu_ref_v, atol=5e-2, rtol=5e-2)
    assert jnp.allclose(logvar, lv_ref_v, atol=5e-2, rtol=5e-2)

    print("KERNEL_OK")
</pallas_src>

<mosaic_0001>
module attributes {stable_mosaic.version = 11 : i64} {
  func.func @vae_kernel(%arg0: i32, %arg1: memref<128x784xbf16, #tpu.memory_space<vmem>>, %arg2: memref<128x10xf32, #tpu.memory_space<vmem>>, %arg3: memref<784x128xbf16, #tpu.memory_space<vmem>>, %arg4: memref<1x128xf32, #tpu.memory_space<vmem>>, %arg5: memref<128x64xf32, #tpu.memory_space<vmem>>, %arg6: memref<1x64xf32, #tpu.memory_space<vmem>>, %arg7: memref<64x20xf32, #tpu.memory_space<vmem>>, %arg8: memref<1x20xf32, #tpu.memory_space<vmem>>, %arg9: memref<10x74xf32, #tpu.memory_space<vmem>>, %arg10: memref<1x74xf32, #tpu.memory_space<vmem>>, %arg11: memref<64x128xf32, #tpu.memory_space<vmem>>, %arg12: memref<1x128xf32, #tpu.memory_space<vmem>>, %arg13: memref<128x784xbf16, #tpu.memory_space<vmem>>, %arg14: memref<1x784xf32, #tpu.memory_space<vmem>>, %arg15: memref<128x784xbf16, #tpu.memory_space<vmem>>, %arg16: memref<128x128xf32, #tpu.memory_space<vmem>>) attributes {dimension_semantics = [#tpu.dimension_semantics<parallel>], iteration_bounds = array<i64: 2>, scalar_prefetch = 0 : i64, scratch_operands = 0 : i64, tpu.core_type = #tpu.core_type<tc>, window_params = [{transform_indices = @transform_0, window_bounds = array<i64: 128, 784>}, {transform_indices = @transform_1, window_bounds = array<i64: 128, 10>}, {pipeline_mode = #tpu.pipeline_mode<synchronous>, transform_indices = @transform_2, window_bounds = array<i64: 784, 128>}, {pipeline_mode = #tpu.pipeline_mode<synchronous>, transform_indices = @transform_3, window_bounds = array<i64: 1, 128>}, {pipeline_mode = #tpu.pipeline_mode<synchronous>, transform_indices = @transform_4, window_bounds = array<i64: 128, 64>}, {pipeline_mode = #tpu.pipeline_mode<synchronous>, transform_indices = @transform_5, window_bounds = array<i64: 1, 64>}, {pipeline_mode = #tpu.pipeline_mode<synchronous>, transform_indices = @transform_6, window_bounds = array<i64: 64, 20>}, {pipeline_mode = #tpu.pipeline_mode<synchronous>, transform_indices = @transform_7, window_bounds = array<i64: 1, 20>}, {pipeline_mode = #tpu.pipeline_mode<synchronous>, transform_indices = @transform_8, window_bounds = array<i64: 10, 74>}, {pipeline_mode = #tpu.pipeline_mode<synchronous>, transform_indices = @transform_9, window_bounds = array<i64: 1, 74>}, {pipeline_mode = #tpu.pipeline_mode<synchronous>, transform_indices = @transform_10, window_bounds = array<i64: 64, 128>}, {pipeline_mode = #tpu.pipeline_mode<synchronous>, transform_indices = @transform_11, window_bounds = array<i64: 1, 128>}, {pipeline_mode = #tpu.pipeline_mode<synchronous>, transform_indices = @transform_12, window_bounds = array<i64: 128, 784>}, {pipeline_mode = #tpu.pipeline_mode<synchronous>, transform_indices = @transform_13, window_bounds = array<i64: 1, 784>}, {transform_indices = @transform_14, window_bounds = array<i64: 128, 784>}, {transform_indices = @transform_15, window_bounds = array<i64: 128, 128>}]} {
    %c0 = arith.constant 0 : index
    %c0_0 = arith.constant 0 : index
    %0 = vector.load %arg1[%c0, %c0_0] : memref<128x784xbf16, #tpu.memory_space<vmem>>, vector<128x784xbf16>
    %c0_1 = arith.constant 0 : index
    %c0_2 = arith.constant 0 : index
    %1 = vector.load %arg3[%c0_1, %c0_2] : memref<784x128xbf16, #tpu.memory_space<vmem>>, vector<784x128xbf16>
    %cst = arith.constant dense<0.000000e+00> : vector<128x128xf32>
    %2 = tpu.matmul %0, %1, %cst {dimension_numbers = #tpu.dot_dimension_numbers<[1], [0], [0], [1], [0, 0, 1, 1], [], []>} : vector<128x784xbf16>, vector<784x128xbf16>, vector<128x128xf32> -> vector<128x128xf32>
    %c0_3 = arith.constant 0 : index
    %c0_4 = arith.constant 0 : index
    %3 = vector.load %arg4[%c0_3, %c0_4] : memref<1x128xf32, #tpu.memory_space<vmem>>, vector<1x128xf32>
    %4 = vector.broadcast %3 : vector<1x128xf32> to vector<128x128xf32>
    %5 = arith.addf %2, %4 : vector<128x128xf32>
    %cst_5 = arith.constant 0.000000e+00 : f32
    %6 = vector.broadcast %cst_5 : f32 to vector<128x128xf32>
    %7 = arith.maximumf %5, %6 : vector<128x128xf32>
    %c0_6 = arith.constant 0 : index
    %c0_7 = arith.constant 0 : index
    %8 = vector.load %arg5[%c0_6, %c0_7] : memref<128x64xf32, #tpu.memory_space<vmem>>, vector<128x64xf32>
    %cst_8 = arith.constant dense<0.000000e+00> : vector<128x64xf32>
    %9 = tpu.matmul %7, %8, %cst_8 {dimension_numbers = #tpu.dot_dimension_numbers<[1], [0], [0], [1], [0, 0, 1, 1], [], []>} : vector<128x128xf32>, vector<128x64xf32>, vector<128x64xf32> -> vector<128x64xf32>
    %c0_9 = arith.constant 0 : index
    %c0_10 = arith.constant 0 : index
    %10 = vector.load %arg6[%c0_9, %c0_10] : memref<1x64xf32, #tpu.memory_space<vmem>>, vector<1x64xf32>
    %11 = vector.broadcast %10 : vector<1x64xf32> to vector<128x64xf32>
    %12 = arith.addf %9, %11 : vector<128x64xf32>
    %cst_11 = arith.constant 0.000000e+00 : f32
    %13 = vector.broadcast %cst_11 : f32 to vector<128x64xf32>
    %14 = arith.maximumf %12, %13 : vector<128x64xf32>
    %c0_12 = arith.constant 0 : index
    %c0_13 = arith.constant 0 : index
    %15 = vector.load %arg7[%c0_12, %c0_13] : memref<64x20xf32, #tpu.memory_space<vmem>>, vector<64x20xf32>
    %cst_14 = arith.constant dense<0.000000e+00> : vector<128x20xf32>
    %16 = tpu.matmul %14, %15, %cst_14 {dimension_numbers = #tpu.dot_dimension_numbers<[1], [0], [0], [1], [0, 0, 1, 1], [], []>} : vector<128x64xf32>, vector<64x20xf32>, vector<128x20xf32> -> vector<128x20xf32>
    %c0_15 = arith.constant 0 : index
    %c0_16 = arith.constant 0 : index
    %17 = vector.load %arg8[%c0_15, %c0_16] : memref<1x20xf32, #tpu.memory_space<vmem>>, vector<1x20xf32>
    %18 = vector.broadcast %17 : vector<1x20xf32> to vector<128x20xf32>
    %19 = arith.addf %16, %18 : vector<128x20xf32>
    %20 = vector.extract_strided_slice %19 {offsets = [0, 0], sizes = [128, 10], strides = [1, 1]} : vector<128x20xf32> to vector<128x10xf32>
    %21 = vector.extract_strided_slice %19 {offsets = [0, 10], sizes = [128, 10], strides = [1, 1]} : vector<128x20xf32> to vector<128x10xf32>
    %c0_17 = arith.constant 0 : index
    %c0_18 = arith.constant 0 : index
    %22 = vector.load %arg2[%c0_17, %c0_18] : memref<128x10xf32, #tpu.memory_space<vmem>>, vector<128x10xf32>
    %cst_19 = arith.constant 5.000000e-01 : f32
    %23 = vector.broadcast %cst_19 : f32 to vector<128x10xf32>
    %24 = arith.mulf %23, %21 : vector<128x10xf32>
    %25 = math.exp %24 : vector<128x10xf32>
    %26 = arith.mulf %22, %25 : vector<128x10xf32>
    %27 = arith.addf %20, %26 : vector<128x10xf32>
    %c0_20 = arith.constant 0 : index
    %c0_21 = arith.constant 0 : index
    %28 = vector.load %arg9[%c0_20, %c0_21] : memref<10x74xf32, #tpu.memory_space<vmem>>, vector<10x74xf32>
    %cst_22 = arith.constant dense<0.000000e+00> : vector<128x74xf32>
    %29 = tpu.matmul %27, %28, %cst_22 {dimension_numbers = #tpu.dot_dimension_numbers<[1], [0], [0], [1], [0, 0, 1, 1], [], []>} : vector<128x10xf32>, vector<10x74xf32>, vector<128x74xf32> -> vector<128x74xf32>
    %c0_23 = arith.constant 0 : index
    %c0_24 = arith.constant 0 : index
    %30 = vector.load %arg10[%c0_23, %c0_24] : memref<1x74xf32, #tpu.memory_space<vmem>>, vector<1x74xf32>
    %31 = vector.broadcast %30 : vector<1x74xf32> to vector<128x74xf32>
    %32 = arith.addf %29, %31 : vector<128x74xf32>
    %33 = vector.extract_strided_slice %32 {offsets = [0, 0], sizes = [128, 64], strides = [1, 1]} : vector<128x74xf32> to vector<128x64xf32>
    %cst_25 = arith.constant 0.000000e+00 : f32
    %34 = vector.broadcast %cst_25 : f32 to vector<128x64xf32>
    %35 = arith.maximumf %33, %34 : vector<128x64xf32>
    %36 = vector.extract_strided_slice %32 {offsets = [0, 64], sizes = [128, 10], strides = [1, 1]} : vector<128x74xf32> to vector<128x10xf32>
    %c0_26 = arith.constant 0 : index
    %c0_27 = arith.constant 0 : index
    %37 = vector.load %arg11[%c0_26, %c0_27] : memref<64x128xf32, #tpu.memory_space<vmem>>, vector<64x128xf32>
    %cst_28 = arith.constant dense<0.000000e+00> : vector<128x128xf32>
    %38 = tpu.matmul %35, %37, %cst_28 {dimension_numbers = #tpu.dot_dimension_numbers<[1], [0], [0], [1], [0, 0, 1, 1], [], []>} : vector<128x64xf32>, vector<64x128xf32>, vector<128x128xf32> -> vector<128x128xf32>
    %c0_29 = arith.constant 0 : index
    %c0_30 = arith.constant 0 : index
    %39 = vector.load %arg12[%c0_29, %c0_30] : memref<1x128xf32, #tpu.memory_space<vmem>>, vector<1x128xf32>
    %40 = vector.broadcast %39 : vector<1x128xf32> to vector<128x128xf32>
    %41 = arith.addf %38, %40 : vector<128x128xf32>
    %cst_31 = arith.constant 0.000000e+00 : f32
    %42 = vector.broadcast %cst_31 : f32 to vector<128x128xf32>
    %43 = arith.maximumf %41, %42 : vector<128x128xf32>
    %44 = arith.truncf %43 : vector<128x128xf32> to vector<128x128xbf16>
    %c0_32 = arith.constant 0 : index
    %c0_33 = arith.constant 0 : index
    %45 = vector.load %arg13[%c0_32, %c0_33] : memref<128x784xbf16, #tpu.memory_space<vmem>>, vector<128x784xbf16>
    %cst_34 = arith.constant dense<0.000000e+00> : vector<128x784xf32>
    %46 = tpu.matmul %44, %45, %cst_34 {dimension_numbers = #tpu.dot_dimension_numbers<[1], [0], [0], [1], [0, 0, 1, 1], [], []>} : vector<128x128xbf16>, vector<128x784xbf16>, vector<128x784xf32> -> vector<128x784xf32>
    %c0_35 = arith.constant 0 : index
    %c0_36 = arith.constant 0 : index
    %47 = vector.load %arg14[%c0_35, %c0_36] : memref<1x784xf32, #tpu.memory_space<vmem>>, vector<1x784xf32>
    %48 = vector.broadcast %47 : vector<1x784xf32> to vector<128x784xf32>
    %49 = arith.addf %46, %48 : vector<128x784xf32>
    %cst_37 = arith.constant 5.000000e-01 : f32
    %50 = vector.broadcast %cst_37 : f32 to vector<128x784xf32>
    %51 = arith.mulf %50, %49 : vector<128x784xf32>
    %52 = math.tanh %51 : vector<128x784xf32>
    %cst_38 = arith.constant 5.000000e-01 : f32
    %53 = vector.broadcast %cst_38 : f32 to vector<128x784xf32>
    %54 = arith.mulf %53, %52 : vector<128x784xf32>
    %cst_39 = arith.constant 5.000000e-01 : f32
    %55 = vector.broadcast %cst_39 : f32 to vector<128x784xf32>
    %56 = arith.addf %54, %55 : vector<128x784xf32>
    %57 = arith.truncf %56 : vector<128x784xf32> to vector<128x784xbf16>
    %c0_40 = arith.constant 0 : index
    %c0_41 = arith.constant 0 : index
    %58 = vector.load %arg15[%c0_40, %c0_41] : memref<128x784xbf16, #tpu.memory_space<vmem>>, vector<128x784xbf16>
    tpu.vector_store %arg15[%c0_40, %c0_41], %57 {strides = array<i32>} : memref<128x784xbf16, #tpu.memory_space<vmem>>, vector<128x784xbf16>,
    %cst_42 = arith.constant dense<0xFF800000> : vector<128xf32>
    %59 = vector.multi_reduction <maximumf>, %36, %cst_42 [1] : vector<128x10xf32> to vector<128xf32>
    %60 = vector.shape_cast %59 : vector<128xf32> to vector<128x1xf32>
    %61 = vector.broadcast %60 : vector<128x1xf32> to vector<128x10xf32>
    %62 = arith.subf %36, %61 : vector<128x10xf32>
    %63 = math.exp %62 : vector<128x10xf32>
    %cst_43 = arith.constant dense<0.000000e+00> : vector<128xf32>
    %64 = vector.multi_reduction <add>, %63, %cst_43 [1] : vector<128x10xf32> to vector<128xf32>
    %65 = vector.shape_cast %64 : vector<128xf32> to vector<128x1xf32>
    %66 = math.log %65 : vector<128x1xf32>
    %67 = vector.broadcast %66 : vector<128x1xf32> to vector<128x10xf32>
    %68 = arith.subf %62, %67 : vector<128x10xf32>
    %69 = tpu.concatenate %19, %68 in 1 : vector<128x20xf32>, vector<128x10xf32> -> vector<128x30xf32>
    %cst_44 = arith.constant 0.000000e+00 : f32
    %70 = vector.broadcast %cst_44 : f32 to vector<128x98xf32>
    %71 = tpu.concatenate %69, %70 in 1 : vector<128x30xf32>, vector<128x98xf32> -> vector<128x128xf32>
    %c0_45 = arith.constant 0 : index
    %c0_46 = arith.constant 0 : index
    %72 = vector.load %arg16[%c0_45, %c0_46] : memref<128x128xf32, #tpu.memory_space<vmem>>, vector<128x128xf32>
    tpu.vector_store %arg16[%c0_45, %c0_46], %71 {strides = array<i32>} : memref<128x128xf32, #tpu.memory_space<vmem>>, vector<128x128xf32>,
    return
  }
  func.func @transform_0(%arg0: i32) -> (i32, i32) {
    %c0_i32 = arith.constant 0 : i32
    %c0_i32_0 = arith.constant 0 : i32
    return %arg0, %c0_i32 : i32, i32
  }
  func.func @transform_1(%arg0: i32) -> (i32, i32) {
    %c0_i32 = arith.constant 0 : i32
    %c0_i32_0 = arith.constant 0 : i32
    return %arg0, %c0_i32 : i32, i32
  }
  func.func @transform_2(%arg0: i32) -> (i32, i32) {
    %c0_i32 = arith.constant 0 : i32
    %c0_i32_0 = arith.constant 0 : i32
    %c0_i32_1 = arith.constant 0 : i32
    return %c0_i32, %c0_i32_0 : i32, i32
  }
  func.func @transform_3(%arg0: i32) -> (i32, i32) {
    %c0_i32 = arith.constant 0 : i32
    %c0_i32_0 = arith.constant 0 : i32
    %c0_i32_1 = arith.constant 0 : i32
    return %c0_i32, %c0_i32_0 : i32, i32
  }
  func.func @transform_4(%arg0: i32) -> (i32, i32) {
    %c0_i32 = arith.constant 0 : i32
    %c0_i32_0 = arith.constant 0 : i32
    %c0_i32_1 = arith.constant 0 : i32
    return %c0_i32, %c0_i32_0 : i32, i32
  }
  func.func @transform_5(%arg0: i32) -> (i32, i32) {
    %c0_i32 = arith.constant 0 : i32
    %c0_i32_0 = arith.constant 0 : i32
    %c0_i32_1 = arith.constant 0 : i32
    return %c0_i32, %c0_i32_0 : i32, i32
  }
  func.func @transform_6(%arg0: i32) -> (i32, i32) {
    %c0_i32 = arith.constant 0 : i32
    %c0_i32_0 = arith.constant 0 : i32
    %c0_i32_1 = arith.constant 0 : i32
    return %c0_i32, %c0_i32_0 : i32, i32
  }
  func.func @transform_7(%arg0: i32) -> (i32, i32) {
    %c0_i32 = arith.constant 0 : i32
    %c0_i32_0 = arith.constant 0 : i32
    %c0_i32_1 = arith.constant 0 : i32
    return %c0_i32, %c0_i32_0 : i32, i32
  }
  func.func @transform_8(%arg0: i32) -> (i32, i32) {
    %c0_i32 = arith.constant 0 : i32
    %c0_i32_0 = arith.constant 0 : i32
    %c0_i32_1 = arith.constant 0 : i32
    return %c0_i32, %c0_i32_0 : i32, i32
  }
  func.func @transform_9(%arg0: i32) -> (i32, i32) {
    %c0_i32 = arith.constant 0 : i32
    %c0_i32_0 = arith.constant 0 : i32
    %c0_i32_1 = arith.constant 0 : i32
    return %c0_i32, %c0_i32_0 : i32, i32
  }
  func.func @transform_10(%arg0: i32) -> (i32, i32) {
    %c0_i32 = arith.constant 0 : i32
    %c0_i32_0 = arith.constant 0 : i32
    %c0_i32_1 = arith.constant 0 : i32
    return %c0_i32, %c0_i32_0 : i32, i32
  }
  func.func @transform_11(%arg0: i32) -> (i32, i32) {
    %c0_i32 = arith.constant 0 : i32
    %c0_i32_0 = arith.constant 0 : i32
    %c0_i32_1 = arith.constant 0 : i32
    return %c0_i32, %c0_i32_0 : i32, i32
  }
  func.func @transform_12(%arg0: i32) -> (i32, i32) {
    %c0_i32 = arith.constant 0 : i32
    %c0_i32_0 = arith.constant 0 : i32
    %c0_i32_1 = arith.constant 0 : i32
    return %c0_i32, %c0_i32_0 : i32, i32
  }
  func.func @transform_13(%arg0: i32) -> (i32, i32) {
    %c0_i32 = arith.constant 0 : i32
    %c0_i32_0 = arith.constant 0 : i32
    %c0_i32_1 = arith.constant 0 : i32
    return %c0_i32, %c0_i32_0 : i32, i32
  }
  func.func @transform_14(%arg0: i32) -> (i32, i32) {
    %c0_i32 = arith.constant 0 : i32
    %c0_i32_0 = arith.constant 0 : i32
    return %arg0, %c0_i32 : i32, i32
  }
  func.func @transform_15(%arg0: i32) -> (i32, i32) {
    %c0_i32 = arith.constant 0 : i32
    %c0_i32_0 = arith.constant 0 : i32
    return %arg0, %c0_i32 : i32, i32
  }
}

</mosaic_0001>

<llo_original>
// kernel: vae_forward.1
$region0: #{vae_forward.1}
  #allocation0 [shape = 'u32[]', space=smem, size = 0x4, offset = 0x4, fixed_abs, tag = 'smem constant byte address 0x4 - core index']
  #allocation1 [shape = 'u32[72,128]{1,0:T(1,128)}', space=vmem, size = 0x9000, scoped, tag = 'internal scratch']
  %s0 = inlined_call_operand.vmem [shape: bf16[256,784], index: 0, kind: input, shape index: {}]
  %s1 = inlined_call_operand.vmem [shape: f32[256,10], index: 1, kind: input, shape index: {}]
  %s2 = inlined_call_operand.vmem [shape: bf16[784,128], index: 2, kind: input, shape index: {}]
  %s3 = inlined_call_operand.vmem [shape: f32[1,128], index: 3, kind: input, shape index: {}]
  %s4 = inlined_call_operand.vmem [shape: f32[128,64], index: 4, kind: input, shape index: {}]
  %s5 = inlined_call_operand.vmem [shape: f32[1,64], index: 5, kind: input, shape index: {}]
  %s6 = inlined_call_operand.vmem [shape: f32[64,20], index: 6, kind: input, shape index: {}]
  %s7 = inlined_call_operand.vmem [shape: f32[1,20], index: 7, kind: input, shape index: {}]
  %s8 = inlined_call_operand.vmem [shape: f32[10,74], index: 8, kind: input, shape index: {}]
  %s9 = inlined_call_operand.vmem [shape: f32[1,74], index: 9, kind: input, shape index: {}]
  %s10 = inlined_call_operand.vmem [shape: f32[64,128], index: 10, kind: input, shape index: {}]
  %s11 = inlined_call_operand.vmem [shape: f32[1,128], index: 11, kind: input, shape index: {}]
  %s12 = inlined_call_operand.vmem [shape: bf16[128,784], index: 12, kind: input, shape index: {}]
  %s13 = inlined_call_operand.vmem [shape: f32[1,784], index: 13, kind: input, shape index: {}]
  %s14 = inlined_call_operand.vmem [shape: bf16[256,784], index: 14, kind: output, shape index: {0}]
  %s15 = inlined_call_operand.vmem [shape: f32[256,128], index: 15, kind: output, shape index: {1}]
  %16 = xla_tuple %s14, %s15
  %s17 = sld [smem:[#allocation0]]
  $region97: #{vae_forward.1} parent=0
    _
  %s19 = ssub.s32 1, %s17
  %s20 = scalar_select 0, %s19, %s17
  loop: start=0, step=1, limit=4
  $region2: #{vae_forward.1} parent=0 // loop_pre_header
    _
  $region3: #{vae_forward.1} parent=0 // loop_header
    %s22 = sphi 0, %s26
    %p23 = scmp.ge.s32.totalorder %s22, 4
    %s32 = sphi 0, %s34
    %s35 = sphi 0, %s32
    %s36 = sphi 0, %s35
    %s52 = sphi 0, %s36
    %s58 = sphi 0, %s60
    %s61 = sphi 0, %s58
    %s62 = sphi 0, %s61
    %s78 = sphi 0, %s62
    %s82 = sphi 0, %s82
    %s84 = sphi 0, %s82
    %s85 = sphi 0, %s84
    %s99 = sphi 0, %s85
    %s103 = sphi 0, %s103
    %s105 = sphi 0, %s103
    %s106 = sphi 0, %s105
    %s120 = sphi 0, %s106
    %s124 = sphi 0, %s124
    %s126 = sphi 0, %s124
    %s127 = sphi 0, %s126
    %s141 = sphi 0, %s127
    %s145 = sphi 0, %s145
    %s147 = sphi 0, %s145
    %s148 = sphi 0, %s147
    %s162 = sphi 0, %s148
    %s166 = sphi 0, %s166
    %s168 = sphi 0, %s166
    %s169 = sphi 0, %s168
    %s183 = sphi 0, %s169
    %s187 = sphi 0, %s187
    %s189 = sphi 0, %s187
    %s190 = sphi 0, %s189
    %s204 = sphi 0, %s190
    %s208 = sphi 0, %s208
    %s210 = sphi 0, %s208
    %s211 = sphi 0, %s210
    %s225 = sphi 0, %s211
    %s229 = sphi 0, %s229
    %s231 = sphi 0, %s229
    %s232 = sphi 0, %s231
    %s246 = sphi 0, %s232
    %s250 = sphi 0, %s250
    %s252 = sphi 0, %s250
    %s253 = sphi 0, %s252
    %s267 = sphi 0, %s253
    %s271 = sphi 0, %s271
    %s273 = sphi 0, %s271
    %s274 = sphi 0, %s273
    %s288 = sphi 0, %s274
    %s292 = sphi 0, %s292
    %s294 = sphi 0, %s292
    %s295 = sphi 0, %s294
    %s309 = sphi 0, %s295
    %s313 = sphi 0, %s313
    %s315 = sphi 0, %s313
    %s316 = sphi 0, %s315
    %s330 = sphi 0, %s316
    %s336 = sphi 0, %s338
    %s339 = sphi 0, %s336
    %s340 = sphi 0, %s339
    %s356 = sphi 0, %s340
    %s362 = sphi 0, %s364
    %s365 = sphi 0, %s362
    %s366 = sphi 0, %s365
    %s382 = sphi 0, %s366
  $region4: #{vae_forward.1} parent=0 // loop_header_branch
    %25 = sbr.rel (%p23) target = $region8
  $region5: #{vae_forward.1} parent=0 // loop_body
    %s27 = ssub.s32 %s22, 1
    %s28 = ssub.s32 %s22, 2
    %s29 = sadd.s32 %s22, 1
    %s30 = ssub.s32 %s22, %s29
    %p31 = scmp.eq.s32.totalorder %s30, 0
    %s33 = sadd.s32 %s32, 1
    %s34 = scalar_select %p31, %s32, %s33
    %p37 = pneg %p31
    %p38 = scmp.eq.s32.totalorder %s22, 1
    %p39 = por %p37, %p38
    %p40 = scmp.ne.s32.totalorder %s32, %s35
    %p41 = scmp.eq.s32.totalorder %s22, 0
    %p42 = por %p40, %p41
    %p43 = scmp.ne.s32.totalorder %s32, %s35
    %p44 = scmp.eq.s32.totalorder %s27, 1
    %p45 = por %p43, %p44
    %p46 = scmp.ne.s32.totalorder %s35, %s36
    %p47 = scmp.eq.s32.totalorder %s27, 0
    %p48 = por %p46, %p47
    %p49 = scmp.ne.s32.totalorder %s35, %s36
    %p50 = scmp.eq.s32.totalorder %s28, 1
    %p51 = por %p49, %p50
    %p53 = scmp.ne.s32.totalorder %s36, %s52
    %p54 = scmp.eq.s32.totalorder %s28, 0
    %p55 = por %p53, %p54
    %s56 = ssub.s32 %s22, %s29
    %p57 = scmp.eq.s32.totalorder %s56, 0
    %s59 = sadd.s32 %s58, 1
    %s60 = scalar_select %p57, %s58, %s59
    %p63 = pneg %p57
    %p64 = scmp.eq.s32.totalorder %s22, 1
    %p65 = por %p63, %p64
    %p66 = scmp.ne.s32.totalorder %s58, %s61
    %p67 = scmp.eq.s32.totalorder %s22, 0
    %p68 = por %p66, %p67
    %p69 = scmp.ne.s32.totalorder %s58, %s61
    %p70 = scmp.eq.s32.totalorder %s27, 1
    %p71 = por %p69, %p70
    %p72 = scmp.ne.s32.totalorder %s61, %s62
    %p73 = scmp.eq.s32.totalorder %s27, 0
    %p74 = por %p72, %p73
    %p75 = scmp.ne.s32.totalorder %s61, %s62
    %p76 = scmp.eq.s32.totalorder %s28, 1
    %p77 = por %p75, %p76
    %p79 = scmp.ne.s32.totalorder %s62, %s78
    %p80 = scmp.eq.s32.totalorder %s28, 0
    %p81 = por %p79, %p80
    %s83 = sadd.s32 %s82, 1
    %p86 = scmp.eq.s32.totalorder %s22, 1
    %p87 = scmp.ne.s32.totalorder %s82, %s84
    %p88 = scmp.eq.s32.totalorder %s22, 0
    %p89 = por %p87, %p88
    %p90 = scmp.ne.s32.totalorder %s82, %s84
    %p91 = scmp.eq.s32.totalorder %s27, 1
    %p92 = por %p90, %p91
    %p93 = scmp.ne.s32.totalorder %s84, %s85
    %p94 = scmp.eq.s32.totalorder %s27, 0
    %p95 = por %p93, %p94
    %p96 = scmp.ne.s32.totalorder %s84, %s85
    %p97 = scmp.eq.s32.totalorder %s28, 1
    %p98 = por %p96, %p97
    %p100 = scmp.ne.s32.totalorder %s85, %s99
    %p101 = scmp.eq.s32.totalorder %s28, 0
    %p102 = por %p100, %p101
    %s104 = sadd.s32 %s103, 1
    %p107 = scmp.eq.s32.totalorder %s22, 1
    %p108 = scmp.ne.s32.totalorder %s103, %s105
    %p109 = scmp.eq.s32.totalorder %s22, 0
    %p110 = por %p108, %p109
    %p111 = scmp.ne.s32.totalorder %s103, %s105
    %p112 = scmp.eq.s32.totalorder %s27, 1
    %p113 = por %p111, %p112
    %p114 = scmp.ne.s32.totalorder %s105, %s106
    %p115 = scmp.eq.s32.totalorder %s27, 0
    %p116 = por %p114, %p115
    %p117 = scmp.ne.s32.totalorder %s105, %s106
    %p118 = scmp.eq.s32.totalorder %s28, 1
    %p119 = por %p117, %p118
    %p121 = scmp.ne.s32.totalorder %s106, %s120
    %p122 = scmp.eq.s32.totalorder %s28, 0
    %p123 = por %p121, %p122
    %s125 = sadd.s32 %s124, 1
    %p128 = scmp.eq.s32.totalorder %s22, 1
    %p129 = scmp.ne.s32.totalorder %s124, %s126
    %p130 = scmp.eq.s32.totalorder %s22, 0
    %p131 = por %p129, %p130
    %p132 = scmp.ne.s32.totalorder %s124, %s126
    %p133 = scmp.eq.s32.totalorder %s27, 1
    %p134 = por %p132, %p133
    %p135 = scmp.ne.s32.totalorder %s126, %s127
    %p136 = scmp.eq.s32.totalorder %s27, 0
    %p137 = por %p135, %p136
    %p138 = scmp.ne.s32.totalorder %s126, %s127
    %p139 = scmp.eq.s32.totalorder %s28, 1
    %p140 = por %p138, %p139
    %p142 = scmp.ne.s32.totalorder %s127, %s141
    %p143 = scmp.eq.s32.totalorder %s28, 0
    %p144 = por %p142, %p143
    %s146 = sadd.s32 %s145, 1
    %p149 = scmp.eq.s32.totalorder %s22, 1
    %p150 = scmp.ne.s32.totalorder %s145, %s147
    %p151 = scmp.eq.s32.totalorder %s22, 0
    %p152 = por %p150, %p151
    %p153 = scmp.ne.s32.totalorder %s145, %s147
    %p154 = scmp.eq.s32.totalorder %s27, 1
    %p155 = por %p153, %p154
    %p156 = scmp.ne.s32.totalorder %s147, %s148
    %p157 = scmp.eq.s32.totalorder %s27, 0
    %p158 = por %p156, %p157
    %p159 = scmp.ne.s32.totalorder %s147, %s148
    %p160 = scmp.eq.s32.totalorder %s28, 1
    %p161 = por %p159, %p160
    %p163 = scmp.ne.s32.totalorder %s148, %s162
    %p164 = scmp.eq.s32.totalorder %s28, 0
    %p165 = por %p163, %p164
    %s167 = sadd.s32 %s166, 1
    %p170 = scmp.eq.s32.totalorder %s22, 1
    %p171 = scmp.ne.s32.totalorder %s166, %s168
    %p172 = scmp.eq.s32.totalorder %s22, 0
    %p173 = por %p171, %p172
    %p174 = scmp.ne.s32.totalorder %s166, %s168
    %p175 = scmp.eq.s32.totalorder %s27, 1
    %p176 = por %p174, %p175
    %p177 = scmp.ne.s32.totalorder %s168, %s169
    %p178 = scmp.eq.s32.totalorder %s27, 0
    %p179 = por %p177, %p178
    %p180 = scmp.ne.s32.totalorder %s168, %s169
    %p181 = scmp.eq.s32.totalorder %s28, 1
    %p182 = por %p180, %p181
    %p184 = scmp.ne.s32.totalorder %s169, %s183
    %p185 = scmp.eq.s32.totalorder %s28, 0
    %p186 = por %p184, %p185
    %s188 = sadd.s32 %s187, 1
    %p191 = scmp.eq.s32.totalorder %s22, 1
    %p192 = scmp.ne.s32.totalorder %s187, %s189
    %p193 = scmp.eq.s32.totalorder %s22, 0
    %p194 = por %p192, %p193
    %p195 = scmp.ne.s32.totalorder %s187, %s189
    %p196 = scmp.eq.s32.totalorder %s27, 1
    %p197 = por %p195, %p196
    %p198 = scmp.ne.s32.totalorder %s189, %s190
    %p199 = scmp.eq.s32.totalorder %s27, 0
    %p200 = por %p198, %p199
    %p201 = scmp.ne.s32.totalorder %s189, %s190
    %p202 = scmp.eq.s32.totalorder %s28, 1
    %p203 = por %p201, %p202
    %p205 = scmp.ne.s32.totalorder %s190, %s204
    %p206 = scmp.eq.s32.totalorder %s28, 0
    %p207 = por %p205, %p206
    %s209 = sadd.s32 %s208, 1
    %p212 = scmp.eq.s32.totalorder %s22, 1
    %p213 = scmp.ne.s32.totalorder %s208, %s210
    %p214 = scmp.eq.s32.totalorder %s22, 0
    %p215 = por %p213, %p214
    %p216 = scmp.ne.s32.totalorder %s208, %s210
    %p217 = scmp.eq.s32.totalorder %s27, 1
    %p218 = por %p216, %p217
    %p219 = scmp.ne.s32.totalorder %s210, %s211
    %p220 = scmp.eq.s32.totalorder %s27, 0
    %p221 = por %p219, %p220
    %p222 = scmp.ne.s32.totalorder %s210, %s211
    %p223 = scmp.eq.s32.totalorder %s28, 1
    %p224 = por %p222, %p223
    %p226 = scmp.ne.s32.totalorder %s211, %s225
    %p227 = scmp.eq.s32.totalorder %s28, 0
    %p228 = por %p226, %p227
    %s230 = sadd.s32 %s229, 1
    %p233 = scmp.eq.s32.totalorder %s22, 1
    %p234 = scmp.ne.s32.totalorder %s229, %s231
    %p235 = scmp.eq.s32.totalorder %s22, 0
    %p236 = por %p234, %p235
    %p237 = scmp.ne.s32.totalorder %s229, %s231
    %p238 = scmp.eq.s32.totalorder %s27, 1
    %p239 = por %p237, %p238
    %p240 = scmp.ne.s32.totalorder %s231, %s232
    %p241 = scmp.eq.s32.totalorder %s27, 0
    %p242 = por %p240, %p241
    %p243 = scmp.ne.s32.totalorder %s231, %s232
    %p244 = scmp.eq.s32.totalorder %s28, 1
    %p245 = por %p243, %p244
    %p247 = scmp.ne.s32.totalorder %s232, %s246
    %p248 = scmp.eq.s32.totalorder %s28, 0
    %p249 = por %p247, %p248
    %s251 = sadd.s32 %s250, 1
    %p254 = scmp.eq.s32.totalorder %s22, 1
    %p255 = scmp.ne.s32.totalorder %s250, %s252
    %p256 = scmp.eq.s32.totalorder %s22, 0
    %p257 = por %p255, %p256
    %p258 = scmp.ne.s32.totalorder %s250, %s252
    %p259 = scmp.eq.s32.totalorder %s27, 1
    %p260 = por %p258, %p259
    %p261 = scmp.ne.s32.totalorder %s252, %s253
    %p262 = scmp.eq.s32.totalorder %s27, 0
    %p263 = por %p261, %p262
    %p264 = scmp.ne.s32.totalorder %s252, %s253
    %p265 = scmp.eq.s32.totalorder %s28, 1
    %p266 = por %p264, %p265
    %p268 = scmp.ne.s32.totalorder %s253, %s267
    %p269 = scmp.eq.s32.totalorder %s28, 0
    %p270 = por %p268, %p269
    %s272 = sadd.s32 %s271, 1
    %p275 = scmp.eq.s32.totalorder %s22, 1
    %p276 = scmp.ne.s32.totalorder %s271, %s273
    %p277 = scmp.eq.s32.totalorder %s22, 0
    %p278 = por %p276, %p277
    %p279 = scmp.ne.s32.totalorder %s271, %s273
    %p280 = scmp.eq.s32.totalorder %s27, 1
    %p281 = por %p279, %p280
    %p282 = scmp.ne.s32.totalorder %s273, %s274
    %p283 = scmp.eq.s32.totalorder %s27, 0
    %p284 = por %p282, %p283
    %p285 = scmp.ne.s32.totalorder %s273, %s274
    %p286 = scmp.eq.s32.totalorder %s28, 1
    %p287 = por %p285, %p286
    %p289 = scmp.ne.s32.totalorder %s274, %s288
    %p290 = scmp.eq.s32.totalorder %s28, 0
    %p291 = por %p289, %p290
    %s293 = sadd.s32 %s292, 1
    %p296 = scmp.eq.s32.totalorder %s22, 1
    %p297 = scmp.ne.s32.totalorder %s292, %s294
    %p298 = scmp.eq.s32.totalorder %s22, 0
    %p299 = por %p297, %p298
    %p300 = scmp.ne.s32.totalorder %s292, %s294
    %p301 = scmp.eq.s32.totalorder %s27, 1
    %p302 = por %p300, %p301
    %p303 = scmp.ne.s32.totalorder %s294, %s295
    %p304 = scmp.eq.s32.totalorder %s27, 0
    %p305 = por %p303, %p304
    %p306 = scmp.ne.s32.totalorder %s294, %s295
    %p307 = scmp.eq.s32.totalorder %s28, 1
    %p308 = por %p306, %p307
    %p310 = scmp.ne.s32.totalorder %s295, %s309
    %p311 = scmp.eq.s32.totalorder %s28, 0
    %p312 = por %p310, %p311
    %s314 = sadd.s32 %s313, 1
    %p317 = scmp.eq.s32.totalorder %s22, 1
    %p318 = scmp.ne.s32.totalorder %s313, %s315
    %p319 = scmp.eq.s32.totalorder %s22, 0
    %p320 = por %p318, %p319
    %p321 = scmp.ne.s32.totalorder %s313, %s315
    %p322 = scmp.eq.s32.totalorder %s27, 1
    %p323 = por %p321, %p322
    %p324 = scmp.ne.s32.totalorder %s315, %s316
    %p325 = scmp.eq.s32.totalorder %s27, 0
    %p326 = por %p324, %p325
    %p327 = scmp.ne.s32.totalorder %s315, %s316
    %p328 = scmp.eq.s32.totalorder %s28, 1
    %p329 = por %p327, %p328
    %p331 = scmp.ne.s32.totalorder %s316, %s330
    %p332 = scmp.eq.s32.totalorder %s28, 0
    %p333 = por %p331, %p332
    %s334 = ssub.s32 %s22, %s29
    %p335 = scmp.eq.s32.totalorder %s334, 0
    %s337 = sadd.s32 %s336, 1
    %s338 = scalar_select %p335, %s336, %s337
    %p341 = pneg %p335
    %p342 = scmp.eq.s32.totalorder %s22, 1
    %p343 = por %p341, %p342
    %p344 = scmp.ne.s32.totalorder %s336, %s339
    %p345 = scmp.eq.s32.totalorder %s22, 0
    %p346 = por %p344, %p345
    %p347 = scmp.ne.s32.totalorder %s336, %s339
    %p348 = scmp.eq.s32.totalorder %s27, 1
    %p349 = por %p347, %p348
    %p350 = scmp.ne.s32.totalorder %s339, %s340
    %p351 = scmp.eq.s32.totalorder %s27, 0
    %p352 = por %p350, %p351
    %p353 = scmp.ne.s32.totalorder %s339, %s340
    %p354 = scmp.eq.s32.totalorder %s28, 1
    %p355 = por %p353, %p354
    %p357 = scmp.ne.s32.totalorder %s340, %s356
    %p358 = scmp.eq.s32.totalorder %s28, 0
    %p359 = por %p357, %p358
    %s360 = ssub.s32 %s22, %s29
    %p361 = scmp.eq.s32.totalorder %s360, 0
    %s363 = sadd.s32 %s362, 1
    %s364 = scalar_select %p361, %s362, %s363
    %p367 = pneg %p361
    %p368 = scmp.eq.s32.totalorder %s22, 1
    %p369 = por %p367, %p368
    %p370 = scmp.ne.s32.totalorder %s362, %s365
    %p371 = scmp.eq.s32.totalorder %s22, 0
    %p372 = por %p370, %p371
    %p373 = scmp.ne.s32.totalorder %s362, %s365
    %p374 = scmp.eq.s32.totalorder %s27, 1
    %p375 = por %p373, %p374
    %p376 = scmp.ne.s32.totalorder %s365, %s366
    %p377 = scmp.eq.s32.totalorder %s27, 0
    %p378 = por %p376, %p377
    %p379 = scmp.ne.s32.totalorder %s365, %s366
    %p380 = scmp.eq.s32.totalorder %s28, 1
    %p381 = por %p379, %p380
    %p383 = scmp.ne.s32.totalorder %s366, %s382
    %p384 = scmp.eq.s32.totalorder %s28, 0
    %p385 = por %p383, %p384
    %p386 = scmp.le.s32.totalorder 1, %s22
    %p387 = scmp.lt.s32.totalorder %s22, 3
    %p388 = pnand %p386, %p387
    %p389 = pneg %p388
    // Predicated region
    $region9: #{vae_forward.1} parent=5 // pred_check
      _
    $region10: #{vae_forward.1} parent=5 // pred_check_branch
      %391 = sbr.rel (%p388) target = $region12
    $region11: #{vae_forward.1} parent=5 // pred_region
      %s392 = ssub.s32 %s22, 1
      // Predicated region
      $region13: #{vae_forward.1} parent=11 // pred_check
        %p393 = pneg %p95
      $region14: #{vae_forward.1} parent=11 // pred_check_branch
        %395 = sbr.rel (%p393) target = $region16
      $region15: #{vae_forward.1} parent=11 // pred_region
        _
      $region16: #{vae_forward.1} parent=11 // pred_fallthru
        _
      // Predicated region
      $region17: #{vae_forward.1} parent=11 // pred_check
        %p396 = pneg %p116
      $region18: #{vae_forward.1} parent=11 // pred_check_branch
        %398 = sbr.rel (%p396) target = $region20
      $region19: #{vae_forward.1} parent=11 // pred_region
        _
      $region20: #{vae_forward.1} parent=11 // pred_fallthru
        _
      // Predicated region
      $region21: #{vae_forward.1} parent=11 // pred_check
        %p399 = pneg %p137
      $region22: #{vae_forward.1} parent=11 // pred_check_branch
        %401 = sbr.rel (%p399) target = $region24
      $region23: #{vae_forward.1} parent=11 // pred_region
        _
      $region24: #{vae_forward.1} parent=11 // pred_fallthru
        _
      // Predicated region
      $region25: #{vae_forward.1} parent=11 // pred_check
        %p402 = pneg %p158
      $region26: #{vae_forward.1} parent=11 // pred_check_branch
        %404 = sbr.rel (%p402) target = $region28
      $region27: #{vae_forward.1} parent=11 // pred_region
        _
      $region28: #{vae_forward.1} parent=11 // pred_fallthru
        _
      // Predicated region
      $region29: #{vae_forward.1} parent=11 // pred_check
        %p405 = pneg %p179
      $region30: #{vae_forward.1} parent=11 // pred_check_branch
        %407 = sbr.rel (%p405) target = $region32
      $region31: #{vae_forward.1} parent=11 // pred_region
        _
      $region32: #{vae_forward.1} parent=11 // pred_fallthru
        _
      // Predicated region
      $region33: #{vae_forward.1} parent=11 // pred_check
        %p408 = pneg %p200
      $region34: #{vae_forward.1} parent=11 // pred_check_branch
        %410 = sbr.rel (%p408) target = $region36
      $region35: #{vae_forward.1} parent=11 // pred_region
        _
      $region36: #{vae_forward.1} parent=11 // pred_fallthru
        _
      // Predicated region
      $region37: #{vae_forward.1} parent=11 // pred_check
        %p411 = pneg %p221
      $region38: #{vae_forward.1} parent=11 // pred_check_branch
        %413 = sbr.rel (%p411) target = $region40
      $region39: #{vae_forward.1} parent=11 // pred_region
        _
      $region40: #{vae_forward.1} parent=11 // pred_fallthru
        _
      // Predicated region
      $region41: #{vae_forward.1} parent=11 // pred_check
        %p414 = pneg %p242
      $region42: #{vae_forward.1} parent=11 // pred_check_branch
        %416 = sbr.rel (%p414) target = $region44
      $region43: #{vae_forward.1} parent=11 // pred_region
        _
      $region44: #{vae_forward.1} parent=11 // pred_fallthru
        _
      // Predicated region
      $region45: #{vae_forward.1} parent=11 // pred_check
        %p417 = pneg %p263
      $region46: #{vae_forward.1} parent=11 // pred_check_branch
        %419 = sbr.rel (%p417) target = $region48
      $region47: #{vae_forward.1} parent=11 // pred_region
        _
      $region48: #{vae_forward.1} parent=11 // pred_fallthru
        _
      // Predicated region
      $region49: #{vae_forward.1} parent=11 // pred_check
        %p420 = pneg %p284
      $region50: #{vae_forward.1} parent=11 // pred_check_branch
        %422 = sbr.rel (%p420) target = $region52
      $region51: #{vae_forward.1} parent=11 // pred_region
        _
      $region52: #{vae_forward.1} parent=11 // pred_fallthru
        _
      // Predicated region
      $region53: #{vae_forward.1} parent=11 // pred_check
        %p423 = pneg %p305
      $region54: #{vae_forward.1} parent=11 // pred_check_branch
        %425 = sbr.rel (%p423) target = $region56
      $region55: #{vae_forward.1} parent=11 // pred_region
        _
      $region56: #{vae_forward.1} parent=11 // pred_fallthru
        _
      // Predicated region
      $region57: #{vae_forward.1} parent=11 // pred_check
        %p426 = pneg %p326
      $region58: #{vae_forward.1} parent=11 // pred_check_branch
        %428 = sbr.rel (%p426) target = $region60
      $region59: #{vae_forward.1} parent=11 // pred_region
        _
      $region60: #{vae_forward.1} parent=11 // pred_fallthru
        _
    $region12: #{vae_forward.1} parent=5 // pred_fallthru
      _
    %p429 = scmp.lt.s32.totalorder %s22, 2
    // Predicated region
    $region61: #{vae_forward.1} parent=5 // pred_check
      %p430 = pneg %p429
    $region62: #{vae_forward.1} parent=5 // pred_check_branch
      %432 = sbr.rel (%p430) target = $region64
    $region63: #{vae_forward.1} parent=5 // pred_region
      // Predicated region
      $region65: #{vae_forward.1} parent=63 // pred_check
        %p433 = pneg %p42
      $region66: #{vae_forward.1} parent=63 // pred_check_branch
        %435 = sbr.rel (%p433) target = $region68
      $region67: #{vae_forward.1} parent=63 // pred_region
        %s436 = smul.u32 16, %s22
        %p437 = scmp.lt.s32.totalorder %s436, 31
        %s438 = scalar_select %p437, %s436, 31
        %s439 = smul.addr %s438, 7
        %s440 = smul.addr %s439, 4
        %s441 = scalar_lea.vmem %s0, %s440
        %s442 = smul.u32 16, %s22
      $region68: #{vae_forward.1} parent=63 // pred_fallthru
        _
      // Predicated region
      $region69: #{vae_forward.1} parent=63 // pred_check
        %p443 = pneg %p68
      $region70: #{vae_forward.1} parent=63 // pred_check_branch
        %445 = sbr.rel (%p443) target = $region72
      $region71: #{vae_forward.1} parent=63 // pred_region
        %s446 = smul.u32 16, %s22
        %p447 = scmp.lt.s32.totalorder %s446, 31
        %s448 = scalar_select %p447, %s446, 31
        %s449 = smul.addr %s448, 8
        %s450 = scalar_lea.vmem %s1, %s449
        %s451 = smul.u32 16, %s22
      $region72: #{vae_forward.1} parent=63 // pred_fallthru
        _
    $region64: #{vae_forward.1} parent=5 // pred_fallthru
      _
    %p452 = scmp.le.s32.totalorder 1, %s22
    %p453 = scmp.lt.s32.totalorder %s22, 3
    %p454 = pnand %p452, %p453
    %p455 = pneg %p454
    // Predicated region
    $region73: #{vae_forward.1} parent=5 // pred_check
      _
    $region74: #{vae_forward.1} parent=5 // pred_check_branch
      %457 = sbr.rel (%p454) target = $region76
    $region75: #{vae_forward.1} parent=5 // pred_region
      %s458 = ssub.s32 %s22, 1
      %s459 = smul.u32 16, %s27
      %p460 = scmp.lt.s32.totalorder %s459, 31
      %s461 = scalar_select %p460, %s459, 31
      %s462 = smul.addr %s461, 7
      %s463 = smul.addr %s462, 4
      %s464 = scalar_lea.vmem %s0, %s463
      %p465 = pneg %p48
      %p466 = pneg %p45
      %s467 = smul.u32 16, %s27
      %p468 = scmp.lt.s32.totalorder %s467, 31
      %s469 = scalar_select %p468, %s467, 31
      %s470 = smul.addr %s469, 8
      %s471 = scalar_lea.vmem %s1, %s470
      %p472 = pneg %p74
      %p473 = pneg %p71
      %p474 = pneg %p95
      %p475 = pneg %p92
      %p476 = pneg %p116
      %p477 = pneg %p113
      %p478 = pneg %p137
      %p479 = pneg %p134
      %p480 = pneg %p158
      %p481 = pneg %p155
      %p482 = pneg %p179
      %p483 = pneg %p176
      %p484 = pneg %p200
      %p485 = pneg %p197
      %p486 = pneg %p221
      %p487 = pneg %p218
      %p488 = pneg %p242
      %p489 = pneg %p239
      %p490 = pneg %p263
      %p491 = pneg %p260
      %p492 = pneg %p284
      %p493 = pneg %p281
      %p494 = pneg %p305
      %p495 = pneg %p302
      %p496 = pneg %p326
      %p497 = pneg %p323
      %p498 = pneg %p352
      %p499 = pneg %p349
      %s500 = smul.u32 16, %s27
      %p501 = scmp.lt.s32.totalorder %s500, 31
      %s502 = scalar_select %p501, %s500, 31
      %s503 = smul.addr %s502, 7
      %s504 = smul.addr %s503, 4
      %s505 = scalar_lea.vmem %s14, %s504
      %p506 = pneg %p378
      %p507 = pneg %p375
      %s508 = smul.u32 16, %s27
      %p509 = scmp.lt.s32.totalorder %s508, 31
      %s510 = scalar_select %p509, %s508, 31
      %s511 = smul.addr %s510, 8
      %s512 = scalar_lea.vmem %s15, %s511
      %s513 = smul.u32 16, %s27
      %p514 = scmp.lt.s32.totalorder %s513, 31
      %s515 = scalar_select %p514, %s513, 31
      %s516 = smul.addr %s515, 7
      %s517 = smul.addr %s516, 4
      %s518 = scalar_lea.vmem %s0, %s517
      %s519 = smul.u32 16, %s27
      %s520 = smul.u32 16, %s27
      %p521 = scmp.lt.s32.totalorder %s520, 31
      %s522 = scalar_select %p521, %s520, 31
      %s523 = smul.addr %s522, 8
      %s524 = scalar_lea.vmem %s1, %s523
      %s525 = smul.u32 16, %s27
      %s526 = smul.u32 16, %s27
      %p527 = scmp.lt.s32.totalorder %s526, 31
      %s528 = scalar_select %p527, %s526, 31
      %s529 = smul.addr %s528, 7
      %s530 = smul.addr %s529, 4
      %s531 = scalar_lea.vmem %s14, %s530
      %s532 = smul.u32 16, %s27
      %s533 = smul.u32 16, %s27
      %p534 = scmp.lt.s32.totalorder %s533, 31
      %s535 = scalar_select %p534, %s533, 31
      %s536 = smul.addr %s535, 8
      %s537 = scalar_lea.vmem %s15, %s536
      %s538 = smul.u32 16, %s27
      %v540 = vld [vmem:[%s518] sm:$0xff]
      %v541 = vld [vmem:[%s518 + $0x8] sm:$0xff]
      %v542 = vld [vmem:[%s518 + $0x10] sm:$0xff]
      %v543 = vld [vmem:[%s518 + $0x18] sm:$0xf]
      %v544 = vld [vmem:[%s518 + $0x1c] sm:$0xff]
      %v545 = vld [vmem:[%s518 + $0x24] sm:$0xff]
      %v546 = vld [vmem:[%s518 + $0x2c] sm:$0xff]
      %v547 = vld [vmem:[%s518 + $0x34] sm:$0xf]
      %v548 = vld [vmem:[%s518 + $0x38] sm:$0xff]
      %v549 = vld [vmem:[%s518 + $0x40] sm:$0xff]
      %v550 = vld [vmem:[%s518 + $0x48] sm:$0xff]
      %v551 = vld [vmem:[%s518 + $0x50] sm:$0xf]
      %v552 = vld [vmem:[%s518 + $0x54] sm:$0xff]
      %v553 = vld [vmem:[%s518 + $0x5c] sm:$0xff]
      %v554 = vld [vmem:[%s518 + $0x64] sm:$0xff]
      %v555 = vld [vmem:[%s518 + $0x6c] sm:$0xf]
      %v556 = vld [vmem:[%s518 + $0x70] sm:$0xff]
      %v557 = vld [vmem:[%s518 + $0x78] sm:$0xff]
      %v558 = vld [vmem:[%s518 + $0x80] sm:$0xff]
      %v559 = vld [vmem:[%s518 + $0x88] sm:$0xf]
      %v560 = vld [vmem:[%s518 + $0x8c] sm:$0xff]
      %v561 = vld [vmem:[%s518 + $0x94] sm:$0xff]
      %v562 = vld [vmem:[%s518 + $0x9c] sm:$0xff]
      %v563 = vld [vmem:[%s518 + $0xa4] sm:$0xf]
      %v564 = vld [vmem:[%s518 + $0xa8] sm:$0xff]
      %v565 = vld [vmem:[%s518 + $0xb0] sm:$0xff]
      %v566 = vld [vmem:[%s518 + $0xb8] sm:$0xff]
      %v567 = vld [vmem:[%s518 + $0xc0] sm:$0xf]
      %v568 = vld [vmem:[%s518 + $0xc4] sm:$0xff]
      %v569 = vld [vmem:[%s518 + $0xcc] sm:$0xff]
      %v570 = vld [vmem:[%s518 + $0xd4] sm:$0xff]
      %v571 = vld [vmem:[%s518 + $0xdc] sm:$0xf]
      %v572 = vld [vmem:[%s518 + $0xe0] sm:$0xff]
      %v573 = vld [vmem:[%s518 + $0xe8] sm:$0xff]
      %v574 = vld [vmem:[%s518 + $0xf0] sm:$0xff]
      %v575 = vld [vmem:[%s518 + $0xf8] sm:$0xf]
      %v576 = vld [vmem:[%s518 + $0xfc] sm:$0xff]
      %v577 = vld [vmem:[%s518 + $0x104] sm:$0xff]
      %v578 = vld [vmem:[%s518 + $0x10c] sm:$0xff]
      %v579 = vld [vmem:[%s518 + $0x114] sm:$0xf]
      %v580 = vld [vmem:[%s518 + $0x118] sm:$0xff]
      %v581 = vld [vmem:[%s518 + $0x120] sm:$0xff]
      %v582 = vld [vmem:[%s518 + $0x128] sm:$0xff]
      %v583 = vld [vmem:[%s518 + $0x130] sm:$0xf]
      %v584 = vld [vmem:[%s518 + $0x134] sm:$0xff]
      %v585 = vld [vmem:[%s518 + $0x13c] sm:$0xff]
      %v586 = vld [vmem:[%s518 + $0x144] sm:$0xff]
      %v587 = vld [vmem:[%s518 + $0x14c] sm:$0xf]
      %v588 = vld [vmem:[%s518 + $0x150] sm:$0xff]
      %v589 = vld [vmem:[%s518 + $0x158] sm:$0xff]
      %v590 = vld [vmem:[%s518 + $0x160] sm:$0xff]
      %v591 = vld [vmem:[%s518 + $0x168] sm:$0xf]
      %v592 = vld [vmem:[%s518 + $0x16c] sm:$0xff]
      %v593 = vld [vmem:[%s518 + $0x174] sm:$0xff]
      %v594 = vld [vmem:[%s518 + $0x17c] sm:$0xff]
      %v595 = vld [vmem:[%s518 + $0x184] sm:$0xf]
      %v596 = vld [vmem:[%s518 + $0x188] sm:$0xff]
      %v597 = vld [vmem:[%s518 + $0x190] sm:$0xff]
      %v598 = vld [vmem:[%s518 + $0x198] sm:$0xff]
      %v599 = vld [vmem:[%s518 + $0x1a0] sm:$0xf]
      %v600 = vld [vmem:[%s518 + $0x1a4] sm:$0xff]
      %v601 = vld [vmem:[%s518 + $0x1ac] sm:$0xff]
      %v602 = vld [vmem:[%s518 + $0x1b4] sm:$0xff]
      %v603 = vld [vmem:[%s518 + $0x1bc] sm:$0xf]
      %v604 = vld [vmem:[%s2] sm:$0xf]
      %v605 = vld [vmem:[%s2 + $0x4] sm:$0xf]
      %v606 = vld [vmem:[%s2 + $0x8] sm:$0xf]
      %v607 = vld [vmem:[%s2 + $0xc] sm:$0xf]
      %v608 = vld [vmem:[%s2 + $0x10] sm:$0xf]
      %v609 = vld [vmem:[%s2 + $0x14] sm:$0xf]
      %v610 = vld [vmem:[%s2 + $0x18] sm:$0xf]
      %v611 = vld [vmem:[%s2 + $0x1c] sm:$0xf]
      %v612 = vld [vmem:[%s2 + $0x20] sm:$0xf]
      %v613 = vld [vmem:[%s2 + $0x24] sm:$0xf]
      %v614 = vld [vmem:[%s2 + $0x28] sm:$0xf]
      %v615 = vld [vmem:[%s2 + $0x2c] sm:$0xf]
      %v616 = vld [vmem:[%s2 + $0x30] sm:$0xf]
      %v617 = vld [vmem:[%s2 + $0x34] sm:$0xf]
      %v618 = vld [vmem:[%s2 + $0x38] sm:$0xf]
      %v619 = vld [vmem:[%s2 + $0x3c] sm:$0xf]
      %v620 = vld [vmem:[%s2 + $0x40] sm:$0xf]
      %v621 = vld [vmem:[%s2 + $0x44] sm:$0xf]
      %v622 = vld [vmem:[%s2 + $0x48] sm:$0xf]
      %v623 = vld [vmem:[%s2 + $0x4c] sm:$0xf]
      %v624 = vld [vmem:[%s2 + $0x50] sm:$0xf]
      %v625 = vld [vmem:[%s2 + $0x54] sm:$0xf]
      %v626 = vld [vmem:[%s2 + $0x58] sm:$0xf]
      %v627 = vld [vmem:[%s2 + $0x5c] sm:$0xf]
      %v628 = vld [vmem:[%s2 + $0x60] sm:$0xf]
      %v629 = vld [vmem:[%s2 + $0x64] sm:$0xf]
      %v630 = vld [vmem:[%s2 + $0x68] sm:$0xf]
      %v631 = vld [vmem:[%s2 + $0x6c] sm:$0xf]
      %v632 = vld [vmem:[%s2 + $0x70] sm:$0xf]
      %v633 = vld [vmem:[%s2 + $0x74] sm:$0xf]
      %v634 = vld [vmem:[%s2 + $0x78] sm:$0xf]
      %v635 = vld [vmem:[%s2 + $0x7c] sm:$0xf]
      %v636 = vld [vmem:[%s2 + $0x80] sm:$0xf]
      %v637 = vld [vmem:[%s2 + $0x84] sm:$0xf]
      %v638 = vld [vmem:[%s2 + $0x88] sm:$0xf]
      %v639 = vld [vmem:[%s2 + $0x8c] sm:$0xf]
      %v640 = vld [vmem:[%s2 + $0x90] sm:$0xf]
      %v641 = vld [vmem:[%s2 + $0x94] sm:$0xf]
      %v642 = vld [vmem:[%s2 + $0x98] sm:$0xf]
      %v643 = vld [vmem:[%s2 + $0x9c] sm:$0xf]
      %v644 = vld [vmem:[%s2 + $0xa0] sm:$0xf]
      %v645 = vld [vmem:[%s2 + $0xa4] sm:$0xf]
      %v646 = vld [vmem:[%s2 + $0xa8] sm:$0xf]
      %v647 = vld [vmem:[%s2 + $0xac] sm:$0xf]
      %v648 = vld [vmem:[%s2 + $0xb0] sm:$0xf]
      %v649 = vld [vmem:[%s2 + $0xb4] sm:$0xf]
      %v650 = vld [vmem:[%s2 + $0xb8] sm:$0xf]
      %v651 = vld [vmem:[%s2 + $0xbc] sm:$0xf]
      %v652 = vld [vmem:[%s2 + $0xc0] sm:$0xf]
      %v653 = vld [vmem:[%s2 + $0xc4] sm:$0xf]
      %v654 = vld [vmem:[%s2 + $0xc8] sm:$0xf]
      %v655 = vld [vmem:[%s2 + $0xcc] sm:$0xf]
      %v656 = vld [vmem:[%s2 + $0xd0] sm:$0xf]
      %v657 = vld [vmem:[%s2 + $0xd4] sm:$0xf]
      %v658 = vld [vmem:[%s2 + $0xd8] sm:$0xf]
      %v659 = vld [vmem:[%s2 + $0xdc] sm:$0xf]
      %v660 = vld [vmem:[%s2 + $0xe0] sm:$0xf]
      %v661 = vld [vmem:[%s2 + $0xe4] sm:$0xf]
      %v662 = vld [vmem:[%s2 + $0xe8] sm:$0xf]
      %v663 = vld [vmem:[%s2 + $0xec] sm:$0xf]
      %v664 = vld [vmem:[%s2 + $0xf0] sm:$0xf]
      %v665 = vld [vmem:[%s2 + $0xf4] sm:$0xf]
      %v666 = vld [vmem:[%s2 + $0xf8] sm:$0xf]
      %v667 = vld [vmem:[%s2 + $0xfc] sm:$0xf]
      %v668 = vld [vmem:[%s2 + $0x100] sm:$0xf]
      %v669 = vld [vmem:[%s2 + $0x104] sm:$0xf]
      %v670 = vld [vmem:[%s2 + $0x108] sm:$0xf]
      %v671 = vld [vmem:[%s2 + $0x10c] sm:$0xf]
      %v672 = vld [vmem:[%s2 + $0x110] sm:$0xf]
      %v673 = vld [vmem:[%s2 + $0x114] sm:$0xf]
      %v674 = vld [vmem:[%s2 + $0x118] sm:$0xf]
      %v675 = vld [vmem:[%s2 + $0x11c] sm:$0xf]
      %v676 = vld [vmem:[%s2 + $0x120] sm:$0xf]
      %v677 = vld [vmem:[%s2 + $0x124] sm:$0xf]
      %v678 = vld [vmem:[%s2 + $0x128] sm:$0xf]
      %v679 = vld [vmem:[%s2 + $0x12c] sm:$0xf]
      %v680 = vld [vmem:[%s2 + $0x130] sm:$0xf]
      %v681 = vld [vmem:[%s2 + $0x134] sm:$0xf]
      %v682 = vld [vmem:[%s2 + $0x138] sm:$0xf]
      %v683 = vld [vmem:[%s2 + $0x13c] sm:$0xf]
      %v684 = vld [vmem:[%s2 + $0x140] sm:$0xf]
      %v685 = vld [vmem:[%s2 + $0x144] sm:$0xf]
      %v686 = vld [vmem:[%s2 + $0x148] sm:$0xf]
      %v687 = vld [vmem:[%s2 + $0x14c] sm:$0xf]
      %v688 = vld [vmem:[%s2 + $0x150] sm:$0xf]
      %v689 = vld [vmem:[%s2 + $0x154] sm:$0xf]
      %v690 = vld [vmem:[%s2 + $0x158] sm:$0xf]
      %v691 = vld [vmem:[%s2 + $0x15c] sm:$0xf]
      %v692 = vld [vmem:[%s2 + $0x160] sm:$0xf]
      %v693 = vld [vmem:[%s2 + $0x164] sm:$0xf]
      %v694 = vld [vmem:[%s2 + $0x168] sm:$0xf]
      %v695 = vld [vmem:[%s2 + $0x16c] sm:$0xf]
      %v696 = vld [vmem:[%s2 + $0x170] sm:$0xf]
      %v697 = vld [vmem:[%s2 + $0x174] sm:$0xf]
      %v698 = vld [vmem:[%s2 + $0x178] sm:$0xf]
      %v699 = vld [vmem:[%s2 + $0x17c] sm:$0xf]
      %v700 = vld [vmem:[%s2 + $0x180] sm:$0xf]
      %v701 = vld [vmem:[%s2 + $0x184] sm:$0xf]
      %v702 = vld [vmem:[%s3] sm:$0x1]
      %v704 = vperm.slane %v702, 0
      %v770 = vunpack.c.l.b16 %v540
      %v771 = vunpack.c.h.b16 %v540
      %v772 = vunpack.c.l.b16 %v541
      %v773 = vunpack.c.h.b16 %v541
      %v774 = vunpack.c.l.b16 %v542
      %v775 = vunpack.c.h.b16 %v542
      %v776 = vunpack.c.l.b16 %v543
      %v777 = vunpack.c.l.b16 %v544
      %v778 = vunpack.c.h.b16 %v544
      %v779 = vunpack.c.l.b16 %v545
      %v780 = vunpack.c.h.b16 %v545
      %v781 = vunpack.c.l.b16 %v546
      %v782 = vunpack.c.h.b16 %v546
      %v783 = vunpack.c.l.b16 %v547
      %v784 = vunpack.c.l.b16 %v548
      %v785 = vunpack.c.h.b16 %v548
      %v786 = vunpack.c.l.b16 %v549
      %v787 = vunpack.c.h.b16 %v549
      %v788 = vunpack.c.l.b16 %v550
      %v789 = vunpack.c.h.b16 %v550
      %v790 = vunpack.c.l.b16 %v551
      %v791 = vunpack.c.l.b16 %v552
      %v792 = vunpack.c.h.b16 %v552
      %v793 = vunpack.c.l.b16 %v553
      %v794 = vunpack.c.h.b16 %v553
      %v795 = vunpack.c.l.b16 %v554
      %v796 = vunpack.c.h.b16 %v554
      %v797 = vunpack.c.l.b16 %v555
      %v798 = vunpack.c.l.b16 %v556
      %v799 = vunpack.c.h.b16 %v556
      %v800 = vunpack.c.l.b16 %v557
      %v801 = vunpack.c.h.b16 %v557
      %v802 = vunpack.c.l.b16 %v558
      %v803 = vunpack.c.h.b16 %v558
      %v804 = vunpack.c.l.b16 %v559
      %v805 = vunpack.c.l.b16 %v560
      %v806 = vunpack.c.h.b16 %v560
      %v807 = vunpack.c.l.b16 %v561
      %v808 = vunpack.c.h.b16 %v561
      %v809 = vunpack.c.l.b16 %v562
      %v810 = vunpack.c.h.b16 %v562
      %v811 = vunpack.c.l.b16 %v563
      %v812 = vunpack.c.l.b16 %v564
      %v813 = vunpack.c.h.b16 %v564
      %v814 = vunpack.c.l.b16 %v565
      %v815 = vunpack.c.h.b16 %v565
      %v816 = vunpack.c.l.b16 %v566
      %v817 = vunpack.c.h.b16 %v566
      %v818 = vunpack.c.l.b16 %v567
      %v819 = vunpack.c.l.b16 %v568
      %v820 = vunpack.c.h.b16 %v568
      %v821 = vunpack.c.l.b16 %v569
      %v822 = vunpack.c.h.b16 %v569
      %v823 = vunpack.c.l.b16 %v570
      %v824 = vunpack.c.h.b16 %v570
      %v825 = vunpack.c.l.b16 %v571
      %v826 = vunpack.c.l.b16 %v572
      %v827 = vunpack.c.h.b16 %v572
      %v828 = vunpack.c.l.b16 %v573
      %v829 = vunpack.c.h.b16 %v573
      %v830 = vunpack.c.l.b16 %v574
      %v831 = vunpack.c.h.b16 %v574
      %v832 = vunpack.c.l.b16 %v575
      %v833 = vunpack.c.l.b16 %v576
      %v834 = vunpack.c.h.b16 %v576
      %v835 = vunpack.c.l.b16 %v577
      %v836 = vunpack.c.h.b16 %v577
      %v837 = vunpack.c.l.b16 %v578
      %v838 = vunpack.c.h.b16 %v578
      %v839 = vunpack.c.l.b16 %v579
      %v840 = vunpack.c.l.b16 %v580
      %v841 = vunpack.c.h.b16 %v580
      %v842 = vunpack.c.l.b16 %v581
      %v843 = vunpack.c.h.b16 %v581
      %v844 = vunpack.c.l.b16 %v582
      %v845 = vunpack.c.h.b16 %v582
      %v846 = vunpack.c.l.b16 %v583
      %v847 = vunpack.c.l.b16 %v584
      %v848 = vunpack.c.h.b16 %v584
      %v849 = vunpack.c.l.b16 %v585
      %v850 = vunpack.c.h.b16 %v585
      %v851 = vunpack.c.l.b16 %v586
      %v852 = vunpack.c.h.b16 %v586
      %v853 = vunpack.c.l.b16 %v587
      %v854 = vunpack.c.l.b16 %v588
      %v855 = vunpack.c.h.b16 %v588
      %v856 = vunpack.c.l.b16 %v589
      %v857 = vunpack.c.h.b16 %v589
      %v858 = vunpack.c.l.b16 %v590
      %v859 = vunpack.c.h.b16 %v590
      %v860 = vunpack.c.l.b16 %v591
      %v861 = vunpack.c.l.b16 %v592
      %v862 = vunpack.c.h.b16 %v592
      %v863 = vunpack.c.l.b16 %v593
      %v864 = vunpack.c.h.b16 %v593
      %v865 = vunpack.c.l.b16 %v594
      %v866 = vunpack.c.h.b16 %v594
      %v867 = vunpack.c.l.b16 %v595
      %v868 = vunpack.c.l.b16 %v596
      %v869 = vunpack.c.h.b16 %v596
      %v870 = vunpack.c.l.b16 %v597
      %v871 = vunpack.c.h.b16 %v597
      %v872 = vunpack.c.l.b16 %v598
      %v873 = vunpack.c.h.b16 %v598
      %v874 = vunpack.c.l.b16 %v599
      %v875 = vunpack.c.l.b16 %v600
      %v876 = vunpack.c.h.b16 %v600
      %v877 = vunpack.c.l.b16 %v601
      %v878 = vunpack.c.h.b16 %v601
      %v879 = vunpack.c.l.b16 %v602
      %v880 = vunpack.c.h.b16 %v602
      %v881 = vunpack.c.l.b16 %v603
      %v882 = vpack.c.b16 %v777, %v770
      %v883 = vpack.c.b16 %v778, %v771
      %v884 = vpack.c.b16 %v779, %v772
      %v885 = vpack.c.b16 %v780, %v773
      %v886 = vpack.c.b16 %v781, %v774
      %v887 = vpack.c.b16 %v782, %v775
      %v888 = vpack.c.b16 %v783, %v776
      %v889 = vpack.c.b16 %v791, %v784
      %v890 = vpack.c.b16 %v792, %v785
      %v891 = vpack.c.b16 %v793, %v786
      %v892 = vpack.c.b16 %v794, %v787
      %v893 = vpack.c.b16 %v795, %v788
      %v894 = vpack.c.b16 %v796, %v789
      %v895 = vpack.c.b16 %v797, %v790
      %v896 = vpack.c.b16 %v805, %v798
      %v897 = vpack.c.b16 %v806, %v799
      %v898 = vpack.c.b16 %v807, %v800
      %v899 = vpack.c.b16 %v808, %v801
      %v900 = vpack.c.b16 %v809, %v802
      %v901 = vpack.c.b16 %v810, %v803
      %v902 = vpack.c.b16 %v811, %v804
      %v903 = vpack.c.b16 %v819, %v812
      %v904 = vpack.c.b16 %v820, %v813
      %v905 = vpack.c.b16 %v821, %v814
      %v906 = vpack.c.b16 %v822, %v815
      %v907 = vpack.c.b16 %v823, %v816
      %v908 = vpack.c.b16 %v824, %v817
      %v909 = vpack.c.b16 %v825, %v818
      %v910 = vpack.c.b16 %v833, %v826
      %v911 = vpack.c.b16 %v834, %v827
      %v912 = vpack.c.b16 %v835, %v828
      %v913 = vpack.c.b16 %v836, %v829
      %v914 = vpack.c.b16 %v837, %v830
      %v915 = vpack.c.b16 %v838, %v831
      %v916 = vpack.c.b16 %v839, %v832
      %v917 = vpack.c.b16 %v847, %v840
      %v918 = vpack.c.b16 %v848, %v841
      %v919 = vpack.c.b16 %v849, %v842
      %v920 = vpack.c.b16 %v850, %v843
      %v921 = vpack.c.b16 %v851, %v844
      %v922 = vpack.c.b16 %v852, %v845
      %v923 = vpack.c.b16 %v853, %v846
      %v924 = vpack.c.b16 %v861, %v854
      %v925 = vpack.c.b16 %v862, %v855
      %v926 = vpack.c.b16 %v863, %v856
      %v927 = vpack.c.b16 %v864, %v857
      %v928 = vpack.c.b16 %v865, %v858
      %v929 = vpack.c.b16 %v866, %v859
      %v930 = vpack.c.b16 %v867, %v860
      %v931 = vpack.c.b16 %v875, %v868
      %v932 = vpack.c.b16 %v876, %v869
      %v933 = vpack.c.b16 %v877, %v870
      %v934 = vpack.c.b16 %v878, %v871
      %v935 = vpack.c.b16 %v879, %v872
      %v936 = vpack.c.b16 %v880, %v873
      %v937 = vpack.c.b16 %v881, %v874
      %v1084 = vunpack.c.l.b16 %v604
      %v1085 = vunpack.c.l.b16 %v605
      %v1086 = vunpack.c.l.b16 %v606
      %v1087 = vunpack.c.l.b16 %v607
      %v1088 = vunpack.c.l.b16 %v608
      %v1089 = vunpack.c.l.b16 %v609
      %v1090 = vunpack.c.l.b16 %v610
      %v1091 = vunpack.c.l.b16 %v611
      %v1092 = vunpack.c.l.b16 %v612
      %v1093 = vunpack.c.l.b16 %v613
      %v1094 = vunpack.c.l.b16 %v614
      %v1095 = vunpack.c.l.b16 %v615
      %v1096 = vunpack.c.l.b16 %v616
      %v1097 = vunpack.c.l.b16 %v617
      %v1098 = vunpack.c.l.b16 %v618
      %v1099 = vunpack.c.l.b16 %v619
      %v1100 = vunpack.c.l.b16 %v620
      %v1101 = vunpack.c.l.b16 %v621
      %v1102 = vunpack.c.l.b16 %v622
      %v1103 = vunpack.c.l.b16 %v623
      %v1104 = vunpack.c.l.b16 %v624
      %v1105 = vunpack.c.l.b16 %v625
      %v1106 = vunpack.c.l.b16 %v626
      %v1107 = vunpack.c.l.b16 %v627
      %v1108 = vunpack.c.l.b16 %v628
      %v1109 = vunpack.c.l.b16 %v629
      %v1110 = vunpack.c.l.b16 %v630
      %v1111 = vunpack.c.l.b16 %v631
      %v1112 = vunpack.c.l.b16 %v632
      %v1113 = vunpack.c.l.b16 %v633
      %v1114 = vunpack.c.l.b16 %v634
      %v1115 = vunpack.c.l.b16 %v635
      %v1116 = vunpack.c.l.b16 %v636
      %v1117 = vunpack.c.l.b16 %v637
      %v1118 = vunpack.c.l.b16 %v638
      %v1119 = vunpack.c.l.b16 %v639
      %v1120 = vunpack.c.l.b16 %v640
      %v1121 = vunpack.c.l.b16 %v641
      %v1122 = vunpack.c.l.b16 %v642
      %v1123 = vunpack.c.l.b16 %v643
      %v1124 = vunpack.c.l.b16 %v644
      %v1125 = vunpack.c.l.b16 %v645
      %v1126 = vunpack.c.l.b16 %v646
      %v1127 = vunpack.c.l.b16 %v647
      %v1128 = vunpack.c.l.b16 %v648
      %v1129 = vunpack.c.l.b16 %v649
      %v1130 = vunpack.c.l.b16 %v650
      %v1131 = vunpack.c.l.b16 %v651
      %v1132 = vunpack.c.l.b16 %v652
      %v1133 = vunpack.c.l.b16 %v653
      %v1134 = vunpack.c.l.b16 %v654
      %v1135 = vunpack.c.l.b16 %v655
      %v1136 = vunpack.c.l.b16 %v656
      %v1137 = vunpack.c.l.b16 %v657
      %v1138 = vunpack.c.l.b16 %v658
      %v1139 = vunpack.c.l.b16 %v659
      %v1140 = vunpack.c.l.b16 %v660
      %v1141 = vunpack.c.l.b16 %v661
      %v1142 = vunpack.c.l.b16 %v662
      %v1143 = vunpack.c.l.b16 %v663
      %v1144 = vunpack.c.l.b16 %v664
      %v1145 = vunpack.c.l.b16 %v665
      %v1146 = vunpack.c.l.b16 %v666
      %v1147 = vunpack.c.l.b16 %v667
      %v1148 = vunpack.c.l.b16 %v668
      %v1149 = vunpack.c.l.b16 %v669
      %v1150 = vunpack.c.l.b16 %v670
      %v1151 = vunpack.c.l.b16 %v671
      %v1152 = vunpack.c.l.b16 %v672
      %v1153 = vunpack.c.l.b16 %v673
      %v1154 = vunpack.c.l.b16 %v674
      %v1155 = vunpack.c.l.b16 %v675
      %v1156 = vunpack.c.l.b16 %v676
      %v1157 = vunpack.c.l.b16 %v677
      %v1158 = vunpack.c.l.b16 %v678
      %v1159 = vunpack.c.l.b16 %v679
      %v1160 = vunpack.c.l.b16 %v680
      %v1161 = vunpack.c.l.b16 %v681
      %v1162 = vunpack.c.l.b16 %v682
      %v1163 = vunpack.c.l.b16 %v683
      %v1164 = vunpack.c.l.b16 %v684
      %v1165 = vunpack.c.l.b16 %v685
      %v1166 = vunpack.c.l.b16 %v686
      %v1167 = vunpack.c.l.b16 %v687
      %v1168 = vunpack.c.l.b16 %v688
      %v1169 = vunpack.c.l.b16 %v689
      %v1170 = vunpack.c.l.b16 %v690
      %v1171 = vunpack.c.l.b16 %v691
      %v1172 = vunpack.c.l.b16 %v692
      %v1173 = vunpack.c.l.b16 %v693
      %v1174 = vunpack.c.l.b16 %v694
      %v1175 = vunpack.c.l.b16 %v695
      %v1176 = vunpack.c.l.b16 %v696
      %v1177 = vunpack.c.l.b16 %v697
      %v1178 = vunpack.c.l.b16 %v698
      %v1179 = vunpack.c.l.b16 %v699
      %v1180 = vunpack.c.l.b16 %v700
      %v1181 = vunpack.c.l.b16 %v701
      %v1182 = vpack.c.b16 %v1085, %v1084
      %v1183 = vpack.c.b16 %v1087, %v1086
      %v1184 = vpack.c.b16 %v1089, %v1088
      %v1185 = vpack.c.b16 %v1091, %v1090
      %v1186 = vpack.c.b16 %v1093, %v1092
      %v1187 = vpack.c.b16 %v1095, %v1094
      %v1188 = vpack.c.b16 %v1097, %v1096
      %v1189 = vpack.c.b16 %v1099, %v1098
      %v1190 = vpack.c.b16 %v1101, %v1100
      %v1191 = vpack.c.b16 %v1103, %v1102
      %v1192 = vpack.c.b16 %v1105, %v1104
      %v1193 = vpack.c.b16 %v1107, %v1106
      %v1194 = vpack.c.b16 %v1109, %v1108
      %v1195 = vpack.c.b16 %v1111, %v1110
      %v1196 = vpack.c.b16 %v1113, %v1112
      %v1197 = vpack.c.b16 %v1115, %v1114
      %v1198 = vpack.c.b16 %v1117, %v1116
      %v1199 = vpack.c.b16 %v1119, %v1118
      %v1200 = vpack.c.b16 %v1121, %v1120
      %v1201 = vpack.c.b16 %v1123, %v1122
      %v1202 = vpack.c.b16 %v1125, %v1124
      %v1203 = vpack.c.b16 %v1127, %v1126
      %v1204 = vpack.c.b16 %v1129, %v1128
      %v1205 = vpack.c.b16 %v1131, %v1130
      %v1206 = vpack.c.b16 %v1133, %v1132
      %v1207 = vpack.c.b16 %v1135, %v1134
      %v1208 = vpack.c.b16 %v1137, %v1136
      %v1209 = vpack.c.b16 %v1139, %v1138
      %v1210 = vpack.c.b16 %v1141, %v1140
      %v1211 = vpack.c.b16 %v1143, %v1142
      %v1212 = vpack.c.b16 %v1145, %v1144
      %v1213 = vpack.c.b16 %v1147, %v1146
      %v1214 = vpack.c.b16 %v1149, %v1148
      %v1215 = vpack.c.b16 %v1151, %v1150
      %v1216 = vpack.c.b16 %v1153, %v1152
      %v1217 = vpack.c.b16 %v1155, %v1154
      %v1218 = vpack.c.b16 %v1157, %v1156
      %v1219 = vpack.c.b16 %v1159, %v1158
      %v1220 = vpack.c.b16 %v1161, %v1160
      %v1221 = vpack.c.b16 %v1163, %v1162
      %v1222 = vpack.c.b16 %v1165, %v1164
      %v1223 = vpack.c.b16 %v1167, %v1166
      %v1224 = vpack.c.b16 %v1169, %v1168
      %v1225 = vpack.c.b16 %v1171, %v1170
      %v1226 = vpack.c.b16 %v1173, %v1172
      %v1227 = vpack.c.b16 %v1175, %v1174
      %v1228 = vpack.c.b16 %v1177, %v1176
      %v1229 = vpack.c.b16 %v1179, %v1178
      %v1230 = vpack.c.b16 %v1181, %v1180
      %vm1280 = vcmask 130048
      %v1282 = vsel %vm1280, %v888, 0
      %v1285 = vsel %vm1280, %v895, 0
      %v1288 = vsel %vm1280, %v902, 0
      %v1291 = vsel %vm1280, %v909, 0
      %v1294 = vsel %vm1280, %v916, 0
      %v1297 = vsel %vm1280, %v923, 0
      %v1300 = vsel %vm1280, %v930, 0
      %v1303 = vsel %vm1280, %v937, 0
      %1305 = vmatpush.bf16.msra.mxu0 %v1189
      %1306 = vmatpush.bf16.msra.mxu0 %v1188
      %1307 = vmatpush.bf16.msra.mxu0 %v1187
      %1308 = vmatpush.bf16.msra.mxu0 %v1186
      %1309 = vmatpush.bf16.msra.mxu0 %v1185
      %1310 = vmatpush.bf16.msra.mxu0 %v1184
      %1311 = vmatpush.bf16.msra.mxu0 %v1183
      %1312 = vmatpush.bf16.msra.mxu0 %v1182
      %1313 = vmatmul.bf16.gmra.mxu0 %v882
      %v1314 = vpop.f32.mrf.mxu0
      %v1315 = vadd.f32 %v704, %v1314
      %v1316 = vpop.f32.mrf.mxu0
      %v1317 = vadd.f32 %v704, %v1316
      %1318 = vmatmul.bf16.gmra.mxu0 %v889
      %v1319 = vpop.f32.mrf.mxu0
      %v1320 = vadd.f32 %v704, %v1319
      %v1321 = vpop.f32.mrf.mxu0
      %v1322 = vadd.f32 %v704, %v1321
      %1323 = vmatmul.bf16.gmra.mxu0 %v896
      %v1324 = vpop.f32.mrf.mxu0
      %v1325 = vadd.f32 %v704, %v1324
      %v1326 = vpop.f32.mrf.mxu0
      %v1327 = vadd.f32 %v704, %v1326
      %1328 = vmatmul.bf16.gmra.mxu0 %v903
      %v1329 = vpop.f32.mrf.mxu0
      %v1330 = vadd.f32 %v704, %v1329
      %v1331 = vpop.f32.mrf.mxu0
      %v1332 = vadd.f32 %v704, %v1331
      %1333 = vmatmul.bf16.gmra.mxu0 %v910
      %v1334 = vpop.f32.mrf.mxu0
      %v1335 = vadd.f32 %v704, %v1334
      %v1336 = vpop.f32.mrf.mxu0
      %v1337 = vadd.f32 %v704, %v1336
      %1338 = vmatmul.bf16.gmra.mxu0 %v917
      %v1339 = vpop.f32.mrf.mxu0
      %v1340 = vadd.f32 %v704, %v1339
      %v1341 = vpop.f32.mrf.mxu0
      %v1342 = vadd.f32 %v704, %v1341
      %1343 = vmatmul.bf16.gmra.mxu0 %v924
      %v1344 = vpop.f32.mrf.mxu0
      %v1345 = vadd.f32 %v704, %v1344
      %v1346 = vpop.f32.mrf.mxu0
      %v1347 = vadd.f32 %v704, %v1346
      %1348 = vmatmul.bf16.gmra.mxu0 %v931
      %v1349 = vpop.f32.mrf.mxu0
      %v1350 = vadd.f32 %v704, %v1349
      %v1351 = vpop.f32.mrf.mxu0
      %v1352 = vadd.f32 %v704, %v1351
      %1353 = vdwg.mxu0
      %1354 = vmatpush.bf16.msra.mxu0 %v1197
      %1355 = vmatpush.bf16.msra.mxu0 %v1196
      %1356 = vmatpush.bf16.msra.mxu0 %v1195
      %1357 = vmatpush.bf16.msra.mxu0 %v1194
      %1358 = vmatpush.bf16.msra.mxu0 %v1193
      %1359 = vmatpush.bf16.msra.mxu0 %v1192
      %1360 = vmatpush.bf16.msra.mxu0 %v1191
      %1361 = vmatpush.bf16.msra.mxu0 %v1190
      %1362 = vmatmul.bf16.gmra.mxu0 %v883
      %v1363 = vpop.f32.mrf.mxu0
      %v1364 = vadd.f32 %v1315, %v1363
      %v1365 = vpop.f32.mrf.mxu0
      %v1366 = vadd.f32 %v1317, %v1365
      %1367 = vmatmul.bf16.gmra.mxu0 %v890
      %v1368 = vpop.f32.mrf.mxu0
      %v1369 = vadd.f32 %v1320, %v1368
      %v1370 = vpop.f32.mrf.mxu0
      %v1371 = vadd.f32 %v1322, %v1370
      %1372 = vmatmul.bf16.gmra.mxu0 %v897
      %v1373 = vpop.f32.mrf.mxu0
      %v1374 = vadd.f32 %v1325, %v1373
      %v1375 = vpop.f32.mrf.mxu0
      %v1376 = vadd.f32 %v1327, %v1375
      %1377 = vmatmul.bf16.gmra.mxu0 %v904
      %v1378 = vpop.f32.mrf.mxu0
      %v1379 = vadd.f32 %v1330, %v1378
      %v1380 = vpop.f32.mrf.mxu0
      %v1381 = vadd.f32 %v1332, %v1380
      %1382 = vmatmul.bf16.gmra.mxu0 %v911
      %v1383 = vpop.f32.mrf.mxu0
      %v1384 = vadd.f32 %v1335, %v1383
      %v1385 = vpop.f32.mrf.mxu0
      %v1386 = vadd.f32 %v1337, %v1385
      %1387 = vmatmul.bf16.gmra.mxu0 %v918
      %v1388 = vpop.f32.mrf.mxu0
      %v1389 = vadd.f32 %v1340, %v1388
      %v1390 = vpop.f32.mrf.mxu0
      %v1391 = vadd.f32 %v1342, %v1390
      %1392 = vmatmul.bf16.gmra.mxu0 %v925
      %v1393 = vpop.f32.mrf.mxu0
      %v1394 = vadd.f32 %v1345, %v1393
      %v1395 = vpop.f32.mrf.mxu0
      %v1396 = vadd.f32 %v1347, %v1395
      %1397 = vmatmul.bf16.gmra.mxu0 %v932
      %v1398 = vpop.f32.mrf.mxu0
      %v1399 = vadd.f32 %v1350, %v1398
      %v1400 = vpop.f32.mrf.mxu0
      %v1401 = vadd.f32 %v1352, %v1400
      %1402 = vdwg.mxu0
      %1403 = vmatpush.bf16.msra.mxu0 %v1205
      %1404 = vmatpush.bf16.msra.mxu0 %v1204
      %1405 = vmatpush.bf16.msra.mxu0 %v1203
      %1406 = vmatpush.bf16.msra.mxu0 %v1202
      %1407 = vmatpush.bf16.msra.mxu0 %v1201
      %1408 = vmatpush.bf16.msra.mxu0 %v1200
      %1409 = vmatpush.bf16.msra.mxu0 %v1199
      %1410 = vmatpush.bf16.msra.mxu0 %v1198
      %1411 = vmatmul.bf16.gmra.mxu0 %v884
      %v1412 = vpop.f32.mrf.mxu0
      %v1413 = vadd.f32 %v1364, %v1412
      %v1414 = vpop.f32.mrf.mxu0
      %v1415 = vadd.f32 %v1366, %v1414
      %1416 = vmatmul.bf16.gmra.mxu0 %v891
      %v1417 = vpop.f32.mrf.mxu0
      %v1418 = vadd.f32 %v1369, %v1417
      %v1419 = vpop.f32.mrf.mxu0
      %v1420 = vadd.f32 %v1371, %v1419
      %1421 = vmatmul.bf16.gmra.mxu0 %v898
      %v1422 = vpop.f32.mrf.mxu0
      %v1423 = vadd.f32 %v1374, %v1422
      %v1424 = vpop.f32.mrf.mxu0
      %v1425 = vadd.f32 %v1376, %v1424
      %1426 = vmatmul.bf16.gmra.mxu0 %v905
      %v1427 = vpop.f32.mrf.mxu0
      %v1428 = vadd.f32 %v1379, %v1427
      %v1429 = vpop.f32.mrf.mxu0
      %v1430 = vadd.f32 %v1381, %v1429
      %1431 = vmatmul.bf16.gmra.mxu0 %v912
      %v1432 = vpop.f32.mrf.mxu0
      %v1433 = vadd.f32 %v1384, %v1432
      %v1434 = vpop.f32.mrf.mxu0
      %v1435 = vadd.f32 %v1386, %v1434
      %1436 = vmatmul.bf16.gmra.mxu0 %v919
      %v1437 = vpop.f32.mrf.mxu0
      %v1438 = vadd.f32 %v1389, %v1437
      %v1439 = vpop.f32.mrf.mxu0
      %v1440 = vadd.f32 %v1391, %v1439
      %1441 = vmatmul.bf16.gmra.mxu0 %v926
      %v1442 = vpop.f32.mrf.mxu0
      %v1443 = vadd.f32 %v1394, %v1442
      %v1444 = vpop.f32.mrf.mxu0
      %v1445 = vadd.f32 %v1396, %v1444
      %1446 = vmatmul.bf16.gmra.mxu0 %v933
      %v1447 = vpop.f32.mrf.mxu0
      %v1448 = vadd.f32 %v1399, %v1447
      %v1449 = vpop.f32.mrf.mxu0
      %v1450 = vadd.f32 %v1401, %v1449
      %1451 = vdwg.mxu0
      %1452 = vmatpush.bf16.msra.mxu0 %v1213
      %1453 = vmatpush.bf16.msra.mxu0 %v1212
      %1454 = vmatpush.bf16.msra.mxu0 %v1211
      %1455 = vmatpush.bf16.msra.mxu0 %v1210
      %1456 = vmatpush.bf16.msra.mxu0 %v1209
      %1457 = vmatpush.bf16.msra.mxu0 %v1208
      %1458 = vmatpush.bf16.msra.mxu0 %v1207
      %1459 = vmatpush.bf16.msra.mxu0 %v1206
      %1460 = vmatmul.bf16.gmra.mxu0 %v885
      %v1461 = vpop.f32.mrf.mxu0
      %v1462 = vadd.f32 %v1413, %v1461
      %v1463 = vpop.f32.mrf.mxu0
      %v1464 = vadd.f32 %v1415, %v1463
      %1465 = vmatmul.bf16.gmra.mxu0 %v892
      %v1466 = vpop.f32.mrf.mxu0
      %v1467 = vadd.f32 %v1418, %v1466
      %v1468 = vpop.f32.mrf.mxu0
      %v1469 = vadd.f32 %v1420, %v1468
      %1470 = vmatmul.bf16.gmra.mxu0 %v899
      %v1471 = vpop.f32.mrf.mxu0
      %v1472 = vadd.f32 %v1423, %v1471
      %v1473 = vpop.f32.mrf.mxu0
      %v1474 = vadd.f32 %v1425, %v1473
      %1475 = vmatmul.bf16.gmra.mxu0 %v906
      %v1476 = vpop.f32.mrf.mxu0
      %v1477 = vadd.f32 %v1428, %v1476
      %v1478 = vpop.f32.mrf.mxu0
      %v1479 = vadd.f32 %v1430, %v1478
      %1480 = vmatmul.bf16.gmra.mxu0 %v913
      %v1481 = vpop.f32.mrf.mxu0
      %v1482 = vadd.f32 %v1433, %v1481
      %v1483 = vpop.f32.mrf.mxu0
      %v1484 = vadd.f32 %v1435, %v1483
      %1485 = vmatmul.bf16.gmra.mxu0 %v920
      %v1486 = vpop.f32.mrf.mxu0
      %v1487 = vadd.f32 %v1438, %v1486
      %v1488 = vpop.f32.mrf.mxu0
      %v1489 = vadd.f32 %v1440, %v1488
      %1490 = vmatmul.bf16.gmra.mxu0 %v927
      %v1491 = vpop.f32.mrf.mxu0
      %v1492 = vadd.f32 %v1443, %v1491
      %v1493 = vpop.f32.mrf.mxu0
      %v1494 = vadd.f32 %v1445, %v1493
      %1495 = vmatmul.bf16.gmra.mxu0 %v934
      %v1496 = vpop.f32.mrf.mxu0
      %v1497 = vadd.f32 %v1448, %v1496
      %v1498 = vpop.f32.mrf.mxu0
      %v1499 = vadd.f32 %v1450, %v1498
      %1500 = vdwg.mxu0
      %1501 = vmatpush.bf16.msra.mxu0 %v1221
      %1502 = vmatpush.bf16.msra.mxu0 %v1220
      %1503 = vmatpush.bf16.msra.mxu0 %v1219
      %1504 = vmatpush.bf16.msra.mxu0 %v1218
      %1505 = vmatpush.bf16.msra.mxu0 %v1217
      %1506 = vmatpush.bf16.msra.mxu0 %v1216
      %1507 = vmatpush.bf16.msra.mxu0 %v1215
      %1508 = vmatpush.bf16.msra.mxu0 %v1214
      %1509 = vmatmul.bf16.gmra.mxu0 %v886
      %v1510 = vpop.f32.mrf.mxu0
      %v1511 = vadd.f32 %v1462, %v1510
      %v1512 = vpop.f32.mrf.mxu0
      %v1513 = vadd.f32 %v1464, %v1512
      %1514 = vmatmul.bf16.gmra.mxu0 %v893
      %v1515 = vpop.f32.mrf.mxu0
      %v1516 = vadd.f32 %v1467, %v1515
      %v1517 = vpop.f32.mrf.mxu0
      %v1518 = vadd.f32 %v1469, %v1517
      %1519 = vmatmul.bf16.gmra.mxu0 %v900
      %v1520 = vpop.f32.mrf.mxu0
      %v1521 = vadd.f32 %v1472, %v1520
      %v1522 = vpop.f32.mrf.mxu0
      %v1523 = vadd.f32 %v1474, %v1522
      %1524 = vmatmul.bf16.gmra.mxu0 %v907
      %v1525 = vpop.f32.mrf.mxu0
      %v1526 = vadd.f32 %v1477, %v1525
      %v1527 = vpop.f32.mrf.mxu0
      %v1528 = vadd.f32 %v1479, %v1527
      %1529 = vmatmul.bf16.gmra.mxu0 %v914
      %v1530 = vpop.f32.mrf.mxu0
      %v1531 = vadd.f32 %v1482, %v1530
      %v1532 = vpop.f32.mrf.mxu0
      %v1533 = vadd.f32 %v1484, %v1532
      %1534 = vmatmul.bf16.gmra.mxu0 %v921
      %v1535 = vpop.f32.mrf.mxu0
      %v1536 = vadd.f32 %v1487, %v1535
      %v1537 = vpop.f32.mrf.mxu0
      %v1538 = vadd.f32 %v1489, %v1537
      %1539 = vmatmul.bf16.gmra.mxu0 %v928
      %v1540 = vpop.f32.mrf.mxu0
      %v1541 = vadd.f32 %v1492, %v1540
      %v1542 = vpop.f32.mrf.mxu0
      %v1543 = vadd.f32 %v1494, %v1542
      %1544 = vmatmul.bf16.gmra.mxu0 %v935
      %v1545 = vpop.f32.mrf.mxu0
      %v1546 = vadd.f32 %v1497, %v1545
      %v1547 = vpop.f32.mrf.mxu0
      %v1548 = vadd.f32 %v1499, %v1547
      %1549 = vdwg.mxu0
      %1550 = vmatpush.bf16.msra.mxu0 %v1229
      %1551 = vmatpush.bf16.msra.mxu0 %v1228
      %1552 = vmatpush.bf16.msra.mxu0 %v1227
      %1553 = vmatpush.bf16.msra.mxu0 %v1226
      %1554 = vmatpush.bf16.msra.mxu0 %v1225
      %1555 = vmatpush.bf16.msra.mxu0 %v1224
      %1556 = vmatpush.bf16.msra.mxu0 %v1223
      %1557 = vmatpush.bf16.msra.mxu0 %v1222
      %1558 = vmatmul.bf16.gmra.mxu0 %v887
      %v1559 = vpop.f32.mrf.mxu0
      %v1560 = vadd.f32 %v1511, %v1559
      %v1561 = vpop.f32.mrf.mxu0
      %v1562 = vadd.f32 %v1513, %v1561
      %1563 = vmatmul.bf16.gmra.mxu0 %v894
      %v1564 = vpop.f32.mrf.mxu0
      %v1565 = vadd.f32 %v1516, %v1564
      %v1566 = vpop.f32.mrf.mxu0
      %v1567 = vadd.f32 %v1518, %v1566
      %1568 = vmatmul.bf16.gmra.mxu0 %v901
      %v1569 = vpop.f32.mrf.mxu0
      %v1570 = vadd.f32 %v1521, %v1569
      %v1571 = vpop.f32.mrf.mxu0
      %v1572 = vadd.f32 %v1523, %v1571
      %1573 = vmatmul.bf16.gmra.mxu0 %v908
      %v1574 = vpop.f32.mrf.mxu0
      %v1575 = vadd.f32 %v1526, %v1574
      %v1576 = vpop.f32.mrf.mxu0
      %v1577 = vadd.f32 %v1528, %v1576
      %1578 = vmatmul.bf16.gmra.mxu0 %v915
      %v1579 = vpop.f32.mrf.mxu0
      %v1580 = vadd.f32 %v1531, %v1579
      %v1581 = vpop.f32.mrf.mxu0
      %v1582 = vadd.f32 %v1533, %v1581
      %1583 = vmatmul.bf16.gmra.mxu0 %v922
      %v1584 = vpop.f32.mrf.mxu0
      %v1585 = vadd.f32 %v1536, %v1584
      %v1586 = vpop.f32.mrf.mxu0
      %v1587 = vadd.f32 %v1538, %v1586
      %1588 = vmatmul.bf16.gmra.mxu0 %v929
      %v1589 = vpop.f32.mrf.mxu0
      %v1590 = vadd.f32 %v1541, %v1589
      %v1591 = vpop.f32.mrf.mxu0
      %v1592 = vadd.f32 %v1543, %v1591
      %1593 = vmatmul.bf16.gmra.mxu0 %v936
      %v1594 = vpop.f32.mrf.mxu0
      %v1595 = vadd.f32 %v1546, %v1594
      %v1596 = vpop.f32.mrf.mxu0
      %v1597 = vadd.f32 %v1548, %v1596
      %1598 = vdwg.mxu0
      %1599 = vmatpush.bf16.msra.mxu0 0
      %1600 = vmatpush.bf16.msra.mxu0 0
      %1601 = vmatpush.bf16.msra.mxu0 0
      %1602 = vmatpush.bf16.msra.mxu0 0
      %1603 = vmatpush.bf16.msra.mxu0 0
      %1604 = vmatpush.bf16.msra.mxu0 0
      %1605 = vmatpush.bf16.msra.mxu0 0
      %1606 = vmatpush.bf16.msra.mxu0 %v1230
      %1607 = vmatmul.bf16.gmra.mxu0 %v1282
      %v1608 = vpop.f32.mrf.mxu0
      %v1609 = vadd.f32 %v1560, %v1608
      %v1610 = vpop.f32.mrf.mxu0
      %v1611 = vadd.f32 %v1562, %v1610
      %1612 = vmatmul.bf16.gmra.mxu0 %v1285
      %v1613 = vpop.f32.mrf.mxu0
      %v1614 = vadd.f32 %v1565, %v1613
      %v1615 = vpop.f32.mrf.mxu0
      %v1616 = vadd.f32 %v1567, %v1615
      %1617 = vmatmul.bf16.gmra.mxu0 %v1288
      %v1618 = vpop.f32.mrf.mxu0
      %v1619 = vadd.f32 %v1570, %v1618
      %v1620 = vpop.f32.mrf.mxu0
      %v1621 = vadd.f32 %v1572, %v1620
      %1622 = vmatmul.bf16.gmra.mxu0 %v1291
      %v1623 = vpop.f32.mrf.mxu0
      %v1624 = vadd.f32 %v1575, %v1623
      %v1625 = vpop.f32.mrf.mxu0
      %v1626 = vadd.f32 %v1577, %v1625
      %1627 = vmatmul.bf16.gmra.mxu0 %v1294
      %v1628 = vpop.f32.mrf.mxu0
      %v1629 = vadd.f32 %v1580, %v1628
      %v1630 = vpop.f32.mrf.mxu0
      %v1631 = vadd.f32 %v1582, %v1630
      %1632 = vmatmul.bf16.gmra.mxu0 %v1297
      %v1633 = vpop.f32.mrf.mxu0
      %v1634 = vadd.f32 %v1585, %v1633
      %v1635 = vpop.f32.mrf.mxu0
      %v1636 = vadd.f32 %v1587, %v1635
      %1637 = vmatmul.bf16.gmra.mxu0 %v1300
      %v1638 = vpop.f32.mrf.mxu0
      %v1639 = vadd.f32 %v1590, %v1638
      %v1640 = vpop.f32.mrf.mxu0
      %v1641 = vadd.f32 %v1592, %v1640
      %1642 = vmatmul.bf16.gmra.mxu0 %v1303
      %v1643 = vpop.f32.mrf.mxu0
      %v1644 = vadd.f32 %v1595, %v1643
      %v1645 = vpop.f32.mrf.mxu0
      %v1646 = vadd.f32 %v1597, %v1645
      %1647 = vdwg.mxu0
      %v1648 = vmax.f32 %v1609, 0.0
      %v1649 = vmax.f32 %v1611, 0.0
      %v1650 = vmax.f32 %v1614, 0.0
      %v1651 = vmax.f32 %v1616, 0.0
      %v1652 = vmax.f32 %v1619, 0.0
      %v1653 = vmax.f32 %v1621, 0.0
      %v1654 = vmax.f32 %v1624, 0.0
      %v1655 = vmax.f32 %v1626, 0.0
      %v1656 = vmax.f32 %v1629, 0.0
      %v1657 = vmax.f32 %v1631, 0.0
      %v1658 = vmax.f32 %v1634, 0.0
      %v1659 = vmax.f32 %v1636, 0.0
      %v1660 = vmax.f32 %v1639, 0.0
      %v1661 = vmax.f32 %v1641, 0.0
      %v1662 = vmax.f32 %v1644, 0.0
      %v1663 = vmax.f32 %v1646, 0.0
      %v1664 = vld [vmem:[%s4] sm:$0xff]
      %v1665 = vld [vmem:[%s4 + $0x8] sm:$0xff]
      %v1666 = vld [vmem:[%s4 + $0x10] sm:$0xff]
      %v1667 = vld [vmem:[%s4 + $0x18] sm:$0xff]
      %v1668 = vld [vmem:[%s4 + $0x20] sm:$0xff]
      %v1669 = vld [vmem:[%s4 + $0x28] sm:$0xff]
      %v1670 = vld [vmem:[%s4 + $0x30] sm:$0xff]
      %v1671 = vld [vmem:[%s4 + $0x38] sm:$0xff]
      %v1672 = vld [vmem:[%s4 + $0x40] sm:$0xff]
      %v1673 = vld [vmem:[%s4 + $0x48] sm:$0xff]
      %v1674 = vld [vmem:[%s4 + $0x50] sm:$0xff]
      %v1675 = vld [vmem:[%s4 + $0x58] sm:$0xff]
      %v1676 = vld [vmem:[%s4 + $0x60] sm:$0xff]
      %v1677 = vld [vmem:[%s4 + $0x68] sm:$0xff]
      %v1678 = vld [vmem:[%s4 + $0x70] sm:$0xff]
      %v1679 = vld [vmem:[%s4 + $0x78] sm:$0xff]
      %v1680 = vld [vmem:[%s5] sm:$0x1]
      %v1682 = vperm.slane %v1680, 0
      %1684 = vmatpush.msra.mxu0 %v1679
      %1685 = vmatpush.msra.mxu0 %v1678
      %1686 = vmatpush.msra.mxu0 %v1677
      %1687 = vmatpush.msra.mxu0 %v1676
      %1688 = vmatpush.msra.mxu0 %v1675
      %1689 = vmatpush.msra.mxu0 %v1674
      %1690 = vmatpush.msra.mxu0 %v1673
      %1691 = vmatpush.msra.mxu0 %v1672
      %1692 = vmatpush.msra.mxu0 %v1671
      %1693 = vmatpush.msra.mxu0 %v1670
      %1694 = vmatpush.msra.mxu0 %v1669
      %1695 = vmatpush.msra.mxu0 %v1668
      %1696 = vmatpush.msra.mxu0 %v1667
      %1697 = vmatpush.msra.mxu0 %v1666
      %1698 = vmatpush.msra.mxu0 %v1665
      %1699 = vmatpush.msra.mxu0 %v1664
      %1700 = vmatmul.f32.gmra.mxu0 %v1648
      %v1701 = vpop.f32.mrf.mxu0
      %v1702 = vadd.f32 %v1682, %v1701
      %1703 = vmatmul.f32.gmra.mxu0 %v1649
      %v1704 = vpop.f32.mrf.mxu0
      %v1705 = vadd.f32 %v1682, %v1704
      %1706 = vmatmul.f32.gmra.mxu0 %v1650
      %v1707 = vpop.f32.mrf.mxu0
      %v1708 = vadd.f32 %v1682, %v1707
      %1709 = vmatmul.f32.gmra.mxu0 %v1651
      %v1710 = vpop.f32.mrf.mxu0
      %v1711 = vadd.f32 %v1682, %v1710
      %1712 = vmatmul.f32.gmra.mxu0 %v1652
      %v1713 = vpop.f32.mrf.mxu0
      %v1714 = vadd.f32 %v1682, %v1713
      %1715 = vmatmul.f32.gmra.mxu0 %v1653
      %v1716 = vpop.f32.mrf.mxu0
      %v1717 = vadd.f32 %v1682, %v1716
      %1718 = vmatmul.f32.gmra.mxu0 %v1654
      %v1719 = vpop.f32.mrf.mxu0
      %v1720 = vadd.f32 %v1682, %v1719
      %1721 = vmatmul.f32.gmra.mxu0 %v1655
      %v1722 = vpop.f32.mrf.mxu0
      %v1723 = vadd.f32 %v1682, %v1722
      %1724 = vmatmul.f32.gmra.mxu0 %v1656
      %v1725 = vpop.f32.mrf.mxu0
      %v1726 = vadd.f32 %v1682, %v1725
      %1727 = vmatmul.f32.gmra.mxu0 %v1657
      %v1728 = vpop.f32.mrf.mxu0
      %v1729 = vadd.f32 %v1682, %v1728
      %1730 = vmatmul.f32.gmra.mxu0 %v1658
      %v1731 = vpop.f32.mrf.mxu0
      %v1732 = vadd.f32 %v1682, %v1731
      %1733 = vmatmul.f32.gmra.mxu0 %v1659
      %v1734 = vpop.f32.mrf.mxu0
      %v1735 = vadd.f32 %v1682, %v1734
      %1736 = vmatmul.f32.gmra.mxu0 %v1660
      %v1737 = vpop.f32.mrf.mxu0
      %v1738 = vadd.f32 %v1682, %v1737
      %1739 = vmatmul.f32.gmra.mxu0 %v1661
      %v1740 = vpop.f32.mrf.mxu0
      %v1741 = vadd.f32 %v1682, %v1740
      %1742 = vmatmul.f32.gmra.mxu0 %v1662
      %v1743 = vpop.f32.mrf.mxu0
      %v1744 = vadd.f32 %v1682, %v1743
      %1745 = vmatmul.f32.gmra.mxu0 %v1663
      %v1746 = vpop.f32.mrf.mxu0
      %v1747 = vadd.f32 %v1682, %v1746
      %1748 = vdwg.mxu0
      %v1749 = vmax.f32 %v1702, 0.0
      %v1750 = vmax.f32 %v1705, 0.0
      %v1751 = vmax.f32 %v1708, 0.0
      %v1752 = vmax.f32 %v1711, 0.0
      %v1753 = vmax.f32 %v1714, 0.0
      %v1754 = vmax.f32 %v1717, 0.0
      %v1755 = vmax.f32 %v1720, 0.0
      %v1756 = vmax.f32 %v1723, 0.0
      %v1757 = vmax.f32 %v1726, 0.0
      %v1758 = vmax.f32 %v1729, 0.0
      %v1759 = vmax.f32 %v1732, 0.0
      %v1760 = vmax.f32 %v1735, 0.0
      %v1761 = vmax.f32 %v1738, 0.0
      %v1762 = vmax.f32 %v1741, 0.0
      %v1763 = vmax.f32 %v1744, 0.0
      %v1764 = vmax.f32 %v1747, 0.0
      %v1765 = vld [vmem:[%s6] sm:$0xff]
      %v1766 = vld [vmem:[%s6 + $0x8] sm:$0xff]
      %v1767 = vld [vmem:[%s6 + $0x10] sm:$0xff]
      %v1768 = vld [vmem:[%s6 + $0x18] sm:$0xff]
      %v1769 = vld [vmem:[%s6 + $0x20] sm:$0xff]
      %v1770 = vld [vmem:[%s6 + $0x28] sm:$0xff]
      %v1771 = vld [vmem:[%s6 + $0x30] sm:$0xff]
      %v1772 = vld [vmem:[%s6 + $0x38] sm:$0xff]
      %v1773 = vld [vmem:[%s7] sm:$0x1]
      %v1775 = vperm.slane %v1773, 0
      %vm1777 = vcmask 523264
      %v1779 = vsel %vm1777, %v1749, 0
      %v1782 = vsel %vm1777, %v1750, 0
      %v1785 = vsel %vm1777, %v1751, 0
      %v1788 = vsel %vm1777, %v1752, 0
      %v1791 = vsel %vm1777, %v1753, 0
      %v1794 = vsel %vm1777, %v1754, 0
      %v1797 = vsel %vm1777, %v1755, 0
      %v1800 = vsel %vm1777, %v1756, 0
      %v1803 = vsel %vm1777, %v1757, 0
      %v1806 = vsel %vm1777, %v1758, 0
      %v1809 = vsel %vm1777, %v1759, 0
      %v1812 = vsel %vm1777, %v1760, 0
      %v1815 = vsel %vm1777, %v1761, 0
      %v1818 = vsel %vm1777, %v1762, 0
      %v1821 = vsel %vm1777, %v1763, 0
      %v1824 = vsel %vm1777, %v1764, 0
      %1826 = vmatpush.msra.mxu0 0.0
      %1827 = vmatpush.msra.mxu0 0.0
      %1828 = vmatpush.msra.mxu0 0.0
      %1829 = vmatpush.msra.mxu0 0.0
      %1830 = vmatpush.msra.mxu0 0.0
      %1831 = vmatpush.msra.mxu0 0.0
      %1832 = vmatpush.msra.mxu0 0.0
      %1833 = vmatpush.msra.mxu0 0.0
      %1834 = vmatpush.msra.mxu0 %v1772
      %1835 = vmatpush.msra.mxu0 %v1771
      %1836 = vmatpush.msra.mxu0 %v1770
      %1837 = vmatpush.msra.mxu0 %v1769
      %1838 = vmatpush.msra.mxu0 %v1768
      %1839 = vmatpush.msra.mxu0 %v1767
      %1840 = vmatpush.msra.mxu0 %v1766
      %1841 = vmatpush.msra.mxu0 %v1765
      %1842 = vmatmul.f32.gmra.mxu0 %v1779
      %v1843 = vpop.f32.mrf.mxu0
      %v1844 = vadd.f32 %v1775, %v1843
      %1845 = vmatmul.f32.gmra.mxu0 %v1782
      %v1846 = vpop.f32.mrf.mxu0
      %v1847 = vadd.f32 %v1775, %v1846
      %1848 = vmatmul.f32.gmra.mxu0 %v1785
      %v1849 = vpop.f32.mrf.mxu0
      %v1850 = vadd.f32 %v1775, %v1849
      %1851 = vmatmul.f32.gmra.mxu0 %v1788
      %v1852 = vpop.f32.mrf.mxu0
      %v1853 = vadd.f32 %v1775, %v1852
      %1854 = vmatmul.f32.gmra.mxu0 %v1791
      %v1855 = vpop.f32.mrf.mxu0
      %v1856 = vadd.f32 %v1775, %v1855
      %1857 = vmatmul.f32.gmra.mxu0 %v1794
      %v1858 = vpop.f32.mrf.mxu0
      %v1859 = vadd.f32 %v1775, %v1858
      %1860 = vmatmul.f32.gmra.mxu0 %v1797
      %v1861 = vpop.f32.mrf.mxu0
      %v1862 = vadd.f32 %v1775, %v1861
      %1863 = vmatmul.f32.gmra.mxu0 %v1800
      %v1864 = vpop.f32.mrf.mxu0
      %v1865 = vadd.f32 %v1775, %v1864
      %1866 = vmatmul.f32.gmra.mxu0 %v1803
      %v1867 = vpop.f32.mrf.mxu0
      %v1868 = vadd.f32 %v1775, %v1867
      %1869 = vmatmul.f32.gmra.mxu0 %v1806
      %v1870 = vpop.f32.mrf.mxu0
      %v1871 = vadd.f32 %v1775, %v1870
      %1872 = vmatmul.f32.gmra.mxu0 %v1809
      %v1873 = vpop.f32.mrf.mxu0
      %v1874 = vadd.f32 %v1775, %v1873
      %1875 = vmatmul.f32.gmra.mxu0 %v1812
      %v1876 = vpop.f32.mrf.mxu0
      %v1877 = vadd.f32 %v1775, %v1876
      %1878 = vmatmul.f32.gmra.mxu0 %v1815
      %v1879 = vpop.f32.mrf.mxu0
      %v1880 = vadd.f32 %v1775, %v1879
      %1881 = vmatmul.f32.gmra.mxu0 %v1818
      %v1882 = vpop.f32.mrf.mxu0
      %v1883 = vadd.f32 %v1775, %v1882
      %1884 = vmatmul.f32.gmra.mxu0 %v1821
      %v1885 = vpop.f32.mrf.mxu0
      %v1886 = vadd.f32 %v1775, %v1885
      %1887 = vmatmul.f32.gmra.mxu0 %v1824
      %v1888 = vpop.f32.mrf.mxu0
      %v1889 = vadd.f32 %v1775, %v1888
      %1890 = vdwg.mxu0
      %v1891 = vld [vmem:[%s524] sm:$0xff]
      %v1892 = vld [vmem:[%s524 + $0x8] sm:$0xff]
      %v1893 = vld [vmem:[%s524 + $0x10] sm:$0xff]
      %v1894 = vld [vmem:[%s524 + $0x18] sm:$0xff]
      %v1895 = vld [vmem:[%s524 + $0x20] sm:$0xff]
      %v1896 = vld [vmem:[%s524 + $0x28] sm:$0xff]
      %v1897 = vld [vmem:[%s524 + $0x30] sm:$0xff]
      %v1898 = vld [vmem:[%s524 + $0x38] sm:$0xff]
      %v1899 = vld [vmem:[%s524 + $0x40] sm:$0xff]
      %v1900 = vld [vmem:[%s524 + $0x48] sm:$0xff]
      %v1901 = vld [vmem:[%s524 + $0x50] sm:$0xff]
      %v1902 = vld [vmem:[%s524 + $0x58] sm:$0xff]
      %v1903 = vld [vmem:[%s524 + $0x60] sm:$0xff]
      %v1904 = vld [vmem:[%s524 + $0x68] sm:$0xff]
      %v1905 = vld [vmem:[%s524 + $0x70] sm:$0xff]
      %v1906 = vld [vmem:[%s524 + $0x78] sm:$0xff]
      %v1907 = vmul.f32 %v1844, 0.5
      %v1908 = vmul.f32 %v1847, 0.5
      %v1909 = vmul.f32 %v1850, 0.5
      %v1910 = vmul.f32 %v1853, 0.5
      %v1911 = vmul.f32 %v1856, 0.5
      %v1912 = vmul.f32 %v1859, 0.5
      %v1913 = vmul.f32 %v1862, 0.5
      %v1914 = vmul.f32 %v1865, 0.5
      %v1915 = vmul.f32 %v1868, 0.5
      %v1916 = vmul.f32 %v1871, 0.5
      %v1917 = vmul.f32 %v1874, 0.5
      %v1918 = vmul.f32 %v1877, 0.5
      %v1919 = vmul.f32 %v1880, 0.5
      %v1920 = vmul.f32 %v1883, 0.5
      %v1921 = vmul.f32 %v1886, 0.5
      %v1922 = vmul.f32 %v1889, 0.5
      %v1923 = vmul.f32 %v1907, 1.442695
      %v1924 = vpow.pop %v1923
      %v1925 = vmul.f32 %v1908, 1.442695
      %v1926 = vpow.pop %v1925
      %v1927 = vmul.f32 %v1909, 1.442695
      %v1928 = vpow.pop %v1927
      %v1929 = vmul.f32 %v1910, 1.442695
      %v1930 = vpow.pop %v1929
      %v1931 = vmul.f32 %v1911, 1.442695
      %v1932 = vpow.pop %v1931
      %v1933 = vmul.f32 %v1912, 1.442695
      %v1934 = vpow.pop %v1933
      %v1935 = vmul.f32 %v1913, 1.442695
      %v1936 = vpow.pop %v1935
      %v1937 = vmul.f32 %v1914, 1.442695
      %v1938 = vpow.pop %v1937
      %v1939 = vmul.f32 %v1915, 1.442695
      %v1940 = vpow.pop %v1939
      %v1941 = vmul.f32 %v1916, 1.442695
      %v1942 = vpow.pop %v1941
      %v1943 = vmul.f32 %v1917, 1.442695
      %v1944 = vpow.pop %v1943
      %v1945 = vmul.f32 %v1918, 1.442695
      %v1946 = vpow.pop %v1945
      %v1947 = vmul.f32 %v1919, 1.442695
      %v1948 = vpow.pop %v1947
      %v1949 = vmul.f32 %v1920, 1.442695
      %v1950 = vpow.pop %v1949
      %v1951 = vmul.f32 %v1921, 1.442695
      %v1952 = vpow.pop %v1951
      %v1953 = vmul.f32 %v1922, 1.442695
      %v1954 = vpow.pop %v1953
      %1971 = vrot.lane.b32.xlu0 %v1924, 118
      %v1972 = vpop.permute.xlu0 %1971
      %1973 = vrot.lane.b32.xlu0 %v1926, 118
      %v1974 = vpop.permute.xlu0 %1973
      %1975 = vrot.lane.b32.xlu0 %v1928, 118
      %v1976 = vpop.permute.xlu0 %1975
      %1977 = vrot.lane.b32.xlu0 %v1930, 118
      %v1978 = vpop.permute.xlu0 %1977
      %1979 = vrot.lane.b32.xlu0 %v1932, 118
      %v1980 = vpop.permute.xlu0 %1979
      %1981 = vrot.lane.b32.xlu0 %v1934, 118
      %v1982 = vpop.permute.xlu0 %1981
      %1983 = vrot.lane.b32.xlu0 %v1936, 118
      %v1984 = vpop.permute.xlu0 %1983
      %1985 = vrot.lane.b32.xlu0 %v1938, 118
      %v1986 = vpop.permute.xlu0 %1985
      %1987 = vrot.lane.b32.xlu0 %v1940, 118
      %v1988 = vpop.permute.xlu0 %1987
      %1989 = vrot.lane.b32.xlu0 %v1942, 118
      %v1990 = vpop.permute.xlu0 %1989
      %1991 = vrot.lane.b32.xlu0 %v1944, 118
      %v1992 = vpop.permute.xlu0 %1991
      %1993 = vrot.lane.b32.xlu0 %v1946, 118
      %v1994 = vpop.permute.xlu0 %1993
      %1995 = vrot.lane.b32.xlu0 %v1948, 118
      %v1996 = vpop.permute.xlu0 %1995
      %1997 = vrot.lane.b32.xlu0 %v1950, 118
      %v1998 = vpop.permute.xlu0 %1997
      %1999 = vrot.lane.b32.xlu0 %v1952, 118
      %v2000 = vpop.permute.xlu0 %1999
      %2001 = vrot.lane.b32.xlu0 %v1954, 118
      %v2002 = vpop.permute.xlu0 %2001
      %v2019 = vmul.f32 %v1891, %v1972
      %v2020 = vmul.f32 %v1892, %v1974
      %v2021 = vmul.f32 %v1893, %v1976
      %v2022 = vmul.f32 %v1894, %v1978
      %v2023 = vmul.f32 %v1895, %v1980
      %v2024 = vmul.f32 %v1896, %v1982
      %v2025 = vmul.f32 %v1897, %v1984
      %v2026 = vmul.f32 %v1898, %v1986
      %v2027 = vmul.f32 %v1899, %v1988
      %v2028 = vmul.f32 %v1900, %v1990
      %v2029 = vmul.f32 %v1901, %v1992
      %v2030 = vmul.f32 %v1902, %v1994
      %v2031 = vmul.f32 %v1903, %v1996
      %v2032 = vmul.f32 %v1904, %v1998
      %v2033 = vmul.f32 %v1905, %v2000
      %v2034 = vmul.f32 %v1906, %v2002
      %v2035 = vadd.f32 %v1844, %v2019
      %v2036 = vadd.f32 %v1847, %v2020
      %v2037 = vadd.f32 %v1850, %v2021
      %v2038 = vadd.f32 %v1853, %v2022
      %v2039 = vadd.f32 %v1856, %v2023
      %v2040 = vadd.f32 %v1859, %v2024
      %v2041 = vadd.f32 %v1862, %v2025
      %v2042 = vadd.f32 %v1865, %v2026
      %v2043 = vadd.f32 %v1868, %v2027
      %v2044 = vadd.f32 %v1871, %v2028
      %v2045 = vadd.f32 %v1874, %v2029
      %v2046 = vadd.f32 %v1877, %v2030
      %v2047 = vadd.f32 %v1880, %v2031
      %v2048 = vadd.f32 %v1883, %v2032
      %v2049 = vadd.f32 %v1886, %v2033
      %v2050 = vadd.f32 %v1889, %v2034
      %v2051 = vld [vmem:[%s8] sm:$0xff]
      %v2052 = vld [vmem:[%s8 + $0x8] sm:$0x3]
      %v2053 = vld [vmem:[%s9] sm:$0x1]
      %v2055 = vperm.slane %v2053, 0
      %vm2057 = vcmask 80896
      %v2059 = vsel %vm2057, %v2035, 0
      %v2062 = vsel %vm2057, %v2036, 0
      %v2065 = vsel %vm2057, %v2037, 0
      %v2068 = vsel %vm2057, %v2038, 0
      %v2071 = vsel %vm2057, %v2039, 0
      %v2074 = vsel %vm2057, %v2040, 0
      %v2077 = vsel %vm2057, %v2041, 0
      %v2080 = vsel %vm2057, %v2042, 0
      %v2083 = vsel %vm2057, %v2043, 0
      %v2086 = vsel %vm2057, %v2044, 0
      %v2089 = vsel %vm2057, %v2045, 0
      %v2092 = vsel %vm2057, %v2046, 0
      %v2095 = vsel %vm2057, %v2047, 0
      %v2098 = vsel %vm2057, %v2048, 0
      %v2101 = vsel %vm2057, %v2049, 0
      %v2104 = vsel %vm2057, %v2050, 0
      %vm2106 = vcmask 1041408
      %v2108 = vsel %vm2106, %v2052, 0
      %2110 = vmatpush.msra.mxu0 0.0
      %2111 = vmatpush.msra.mxu0 0.0
      %2112 = vmatpush.msra.mxu0 0.0
      %2113 = vmatpush.msra.mxu0 0.0
      %2114 = vmatpush.msra.mxu0 0.0
      %2115 = vmatpush.msra.mxu0 0.0
      %2116 = vmatpush.msra.mxu0 0.0
      %2117 = vmatpush.msra.mxu0 0.0
      %2118 = vmatpush.msra.mxu0 0.0
      %2119 = vmatpush.msra.mxu0 0.0
      %2120 = vmatpush.msra.mxu0 0.0
      %2121 = vmatpush.msra.mxu0 0.0
      %2122 = vmatpush.msra.mxu0 0.0
      %2123 = vmatpush.msra.mxu0 0.0
      %2124 = vmatpush.msra.mxu0 %v2108
      %2125 = vmatpush.msra.mxu0 %v2051
      %2126 = vmatmul.f32.gmra.mxu0 %v2059
      %v2127 = vpop.f32.mrf.mxu0
      %v2128 = vadd.f32 %v2055, %v2127
      %2129 = vmatmul.f32.gmra.mxu0 %v2062
      %v2130 = vpop.f32.mrf.mxu0
      %v2131 = vadd.f32 %v2055, %v2130
      %2132 = vmatmul.f32.gmra.mxu0 %v2065
      %v2133 = vpop.f32.mrf.mxu0
      %v2134 = vadd.f32 %v2055, %v2133
      %2135 = vmatmul.f32.gmra.mxu0 %v2068
      %v2136 = vpop.f32.mrf.mxu0
      %v2137 = vadd.f32 %v2055, %v2136
      %2138 = vmatmul.f32.gmra.mxu0 %v2071
      %v2139 = vpop.f32.mrf.mxu0
      %v2140 = vadd.f32 %v2055, %v2139
      %2141 = vmatmul.f32.gmra.mxu0 %v2074
      %v2142 = vpop.f32.mrf.mxu0
      %v2143 = vadd.f32 %v2055, %v2142
      %2144 = vmatmul.f32.gmra.mxu0 %v2077
      %v2145 = vpop.f32.mrf.mxu0
      %v2146 = vadd.f32 %v2055, %v2145
      %2147 = vmatmul.f32.gmra.mxu0 %v2080
      %v2148 = vpop.f32.mrf.mxu0
      %v2149 = vadd.f32 %v2055, %v2148
      %2150 = vmatmul.f32.gmra.mxu0 %v2083
      %v2151 = vpop.f32.mrf.mxu0
      %v2152 = vadd.f32 %v2055, %v2151
      %2153 = vmatmul.f32.gmra.mxu0 %v2086
      %v2154 = vpop.f32.mrf.mxu0
      %v2155 = vadd.f32 %v2055, %v2154
      %2156 = vmatmul.f32.gmra.mxu0 %v2089
      %v2157 = vpop.f32.mrf.mxu0
      %v2158 = vadd.f32 %v2055, %v2157
      %2159 = vmatmul.f32.gmra.mxu0 %v2092
      %v2160 = vpop.f32.mrf.mxu0
      %v2161 = vadd.f32 %v2055, %v2160
      %2162 = vmatmul.f32.gmra.mxu0 %v2095
      %v2163 = vpop.f32.mrf.mxu0
      %v2164 = vadd.f32 %v2055, %v2163
      %2165 = vmatmul.f32.gmra.mxu0 %v2098
      %v2166 = vpop.f32.mrf.mxu0
      %v2167 = vadd.f32 %v2055, %v2166
      %2168 = vmatmul.f32.gmra.mxu0 %v2101
      %v2169 = vpop.f32.mrf.mxu0
      %v2170 = vadd.f32 %v2055, %v2169
      %2171 = vmatmul.f32.gmra.mxu0 %v2104
      %v2172 = vpop.f32.mrf.mxu0
      %v2173 = vadd.f32 %v2055, %v2172
      %2174 = vdwg.mxu0
      %v2175 = vmax.f32 %v2128, 0.0
      %v2176 = vmax.f32 %v2131, 0.0
      %v2177 = vmax.f32 %v2134, 0.0
      %v2178 = vmax.f32 %v2137, 0.0
      %v2179 = vmax.f32 %v2140, 0.0
      %v2180 = vmax.f32 %v2143, 0.0
      %v2181 = vmax.f32 %v2146, 0.0
      %v2182 = vmax.f32 %v2149, 0.0
      %v2183 = vmax.f32 %v2152, 0.0
      %v2184 = vmax.f32 %v2155, 0.0
      %v2185 = vmax.f32 %v2158, 0.0
      %v2186 = vmax.f32 %v2161, 0.0
      %v2187 = vmax.f32 %v2164, 0.0
      %v2188 = vmax.f32 %v2167, 0.0
      %v2189 = vmax.f32 %v2170, 0.0
      %v2190 = vmax.f32 %v2173, 0.0
      %v2191 = vld [vmem:[%s10] sm:$0xff]
      %v2192 = vld [vmem:[%s10 + $0x8] sm:$0xff]
      %v2193 = vld [vmem:[%s10 + $0x10] sm:$0xff]
      %v2194 = vld [vmem:[%s10 + $0x18] sm:$0xff]
      %v2195 = vld [vmem:[%s10 + $0x20] sm:$0xff]
      %v2196 = vld [vmem:[%s10 + $0x28] sm:$0xff]
      %v2197 = vld [vmem:[%s10 + $0x30] sm:$0xff]
      %v2198 = vld [vmem:[%s10 + $0x38] sm:$0xff]
      %v2199 = vld [vmem:[%s11] sm:$0x1]
      %v2201 = vperm.slane %v2199, 0
      %v2204 = vsel %vm1777, %v2175, 0
      %v2207 = vsel %vm1777, %v2176, 0
      %v2210 = vsel %vm1777, %v2177, 0
      %v2213 = vsel %vm1777, %v2178, 0
      %v2216 = vsel %vm1777, %v2179, 0
      %v2219 = vsel %vm1777, %v2180, 0
      %v2222 = vsel %vm1777, %v2181, 0
      %v2225 = vsel %vm1777, %v2182, 0
      %v2228 = vsel %vm1777, %v2183, 0
      %v2231 = vsel %vm1777, %v2184, 0
      %v2234 = vsel %vm1777, %v2185, 0
      %v2237 = vsel %vm1777, %v2186, 0
      %v2240 = vsel %vm1777, %v2187, 0
      %v2243 = vsel %vm1777, %v2188, 0
      %v2246 = vsel %vm1777, %v2189, 0
      %v2249 = vsel %vm1777, %v2190, 0
      %2251 = vmatpush.msra.mxu0 0.0
      %2252 = vmatpush.msra.mxu0 0.0
      %2253 = vmatpush.msra.mxu0 0.0
      %2254 = vmatpush.msra.mxu0 0.0
      %2255 = vmatpush.msra.mxu0 0.0
      %2256 = vmatpush.msra.mxu0 0.0
      %2257 = vmatpush.msra.mxu0 0.0
      %2258 = vmatpush.msra.mxu0 0.0
      %2259 = vmatpush.msra.mxu0 %v2198
      %2260 = vmatpush.msra.mxu0 %v2197
      %2261 = vmatpush.msra.mxu0 %v2196
      %2262 = vmatpush.msra.mxu0 %v2195
      %2263 = vmatpush.msra.mxu0 %v2194
      %2264 = vmatpush.msra.mxu0 %v2193
      %2265 = vmatpush.msra.mxu0 %v2192
      %2266 = vmatpush.msra.mxu0 %v2191
      %2267 = vmatmul.f32.gmra.mxu0 %v2204
      %v2268 = vpop.f32.mrf.mxu0
      %v2269 = vadd.f32 %v2201, %v2268
      %2270 = vmatmul.f32.gmra.mxu0 %v2207
      %v2271 = vpop.f32.mrf.mxu0
      %v2272 = vadd.f32 %v2201, %v2271
      %2273 = vmatmul.f32.gmra.mxu0 %v2210
      %v2274 = vpop.f32.mrf.mxu0
      %v2275 = vadd.f32 %v2201, %v2274
      %2276 = vmatmul.f32.gmra.mxu0 %v2213
      %v2277 = vpop.f32.mrf.mxu0
      %v2278 = vadd.f32 %v2201, %v2277
      %2279 = vmatmul.f32.gmra.mxu0 %v2216
      %v2280 = vpop.f32.mrf.mxu0
      %v2281 = vadd.f32 %v2201, %v2280
      %2282 = vmatmul.f32.gmra.mxu0 %v2219
      %v2283 = vpop.f32.mrf.mxu0
      %v2284 = vadd.f32 %v2201, %v2283
      %2285 = vmatmul.f32.gmra.mxu0 %v2222
      %v2286 = vpop.f32.mrf.mxu0
      %v2287 = vadd.f32 %v2201, %v2286
      %2288 = vmatmul.f32.gmra.mxu0 %v2225
      %v2289 = vpop.f32.mrf.mxu0
      %v2290 = vadd.f32 %v2201, %v2289
      %2291 = vmatmul.f32.gmra.mxu0 %v2228
      %v2292 = vpop.f32.mrf.mxu0
      %v2293 = vadd.f32 %v2201, %v2292
      %2294 = vmatmul.f32.gmra.mxu0 %v2231
      %v2295 = vpop.f32.mrf.mxu0
      %v2296 = vadd.f32 %v2201, %v2295
      %2297 = vmatmul.f32.gmra.mxu0 %v2234
      %v2298 = vpop.f32.mrf.mxu0
      %v2299 = vadd.f32 %v2201, %v2298
      %2300 = vmatmul.f32.gmra.mxu0 %v2237
      %v2301 = vpop.f32.mrf.mxu0
      %v2302 = vadd.f32 %v2201, %v2301
      %2303 = vmatmul.f32.gmra.mxu0 %v2240
      %v2304 = vpop.f32.mrf.mxu0
      %v2305 = vadd.f32 %v2201, %v2304
      %2306 = vmatmul.f32.gmra.mxu0 %v2243
      %v2307 = vpop.f32.mrf.mxu0
      %v2308 = vadd.f32 %v2201, %v2307
      %2309 = vmatmul.f32.gmra.mxu0 %v2246
      %v2310 = vpop.f32.mrf.mxu0
      %v2311 = vadd.f32 %v2201, %v2310
      %2312 = vmatmul.f32.gmra.mxu0 %v2249
      %v2313 = vpop.f32.mrf.mxu0
      %v2314 = vadd.f32 %v2201, %v2313
      %2315 = vdwg.mxu0
      %v2316 = vmax.f32 %v2269, 0.0
      %v2317 = vmax.f32 %v2272, 0.0
      %v2318 = vmax.f32 %v2275, 0.0
      %v2319 = vmax.f32 %v2278, 0.0
      %v2320 = vmax.f32 %v2281, 0.0
      %v2321 = vmax.f32 %v2284, 0.0
      %v2322 = vmax.f32 %v2287, 0.0
      %v2323 = vmax.f32 %v2290, 0.0
      %v2324 = vmax.f32 %v2293, 0.0
      %v2325 = vmax.f32 %v2296, 0.0
      %v2326 = vmax.f32 %v2299, 0.0
      %v2327 = vmax.f32 %v2302, 0.0
      %v2328 = vmax.f32 %v2305, 0.0
      %v2329 = vmax.f32 %v2308, 0.0
      %v2330 = vmax.f32 %v2311, 0.0
      %v2331 = vmax.f32 %v2314, 0.0
      %v2332 = vpack.c.bf16 %v2317, %v2316
      %v2333 = vpack.c.bf16 %v2319, %v2318
      %v2334 = vpack.c.bf16 %v2321, %v2320
      %v2335 = vpack.c.bf16 %v2323, %v2322
      %v2336 = vpack.c.bf16 %v2325, %v2324
      %v2337 = vpack.c.bf16 %v2327, %v2326
      %v2338 = vpack.c.bf16 %v2329, %v2328
      %v2339 = vpack.c.bf16 %v2331, %v2330
      %v2340 = vld [vmem:[%s12] sm:$0xff]
      %v2341 = vld [vmem:[%s12 + $0x8] sm:$0xff]
      %v2342 = vld [vmem:[%s12 + $0x10] sm:$0xff]
      %v2343 = vld [vmem:[%s12 + $0x18] sm:$0xf]
      %v2344 = vld [vmem:[%s12 + $0x1c] sm:$0xff]
      %v2345 = vld [vmem:[%s12 + $0x24] sm:$0xff]
      %v2346 = vld [vmem:[%s12 + $0x2c] sm:$0xff]
      %v2347 = vld [vmem:[%s12 + $0x34] sm:$0xf]
      %v2348 = vld [vmem:[%s12 + $0x38] sm:$0xff]
      %v2349 = vld [vmem:[%s12 + $0x40] sm:$0xff]
      %v2350 = vld [vmem:[%s12 + $0x48] sm:$0xff]
      %v2351 = vld [vmem:[%s12 + $0x50] sm:$0xf]
      %v2352 = vld [vmem:[%s12 + $0x54] sm:$0xff]
      %v2353 = vld [vmem:[%s12 + $0x5c] sm:$0xff]
      %v2354 = vld [vmem:[%s12 + $0x64] sm:$0xff]
      %v2355 = vld [vmem:[%s12 + $0x6c] sm:$0xf]
      %v2356 = vld [vmem:[%s12 + $0x70] sm:$0xff]
      %v2357 = vld [vmem:[%s12 + $0x78] sm:$0xff]
      %v2358 = vld [vmem:[%s12 + $0x80] sm:$0xff]
      %v2359 = vld [vmem:[%s12 + $0x88] sm:$0xf]
      %v2360 = vld [vmem:[%s12 + $0x8c] sm:$0xff]
      %v2361 = vld [vmem:[%s12 + $0x94] sm:$0xff]
      %v2362 = vld [vmem:[%s12 + $0x9c] sm:$0xff]
      %v2363 = vld [vmem:[%s12 + $0xa4] sm:$0xf]
      %v2364 = vld [vmem:[%s12 + $0xa8] sm:$0xff]
      %v2365 = vld [vmem:[%s12 + $0xb0] sm:$0xff]
      %v2366 = vld [vmem:[%s12 + $0xb8] sm:$0xff]
      %v2367 = vld [vmem:[%s12 + $0xc0] sm:$0xf]
      %v2368 = vld [vmem:[%s12 + $0xc4] sm:$0xff]
      %v2369 = vld [vmem:[%s12 + $0xcc] sm:$0xff]
      %v2370 = vld [vmem:[%s12 + $0xd4] sm:$0xff]
      %v2371 = vld [vmem:[%s12 + $0xdc] sm:$0xf]
      %v2372 = vld [vmem:[%s12 + $0xe0] sm:$0xff]
      %v2373 = vld [vmem:[%s12 + $0xe8] sm:$0xff]
      %v2374 = vld [vmem:[%s12 + $0xf0] sm:$0xff]
      %v2375 = vld [vmem:[%s12 + $0xf8] sm:$0xf]
      %v2376 = vld [vmem:[%s12 + $0xfc] sm:$0xff]
      %v2377 = vld [vmem:[%s12 + $0x104] sm:$0xff]
      %v2378 = vld [vmem:[%s12 + $0x10c] sm:$0xff]
      %v2379 = vld [vmem:[%s12 + $0x114] sm:$0xf]
      %v2380 = vld [vmem:[%s12 + $0x118] sm:$0xff]
      %v2381 = vld [vmem:[%s12 + $0x120] sm:$0xff]
      %v2382 = vld [vmem:[%s12 + $0x128] sm:$0xff]
      %v2383 = vld [vmem:[%s12 + $0x130] sm:$0xf]
      %v2384 = vld [vmem:[%s12 + $0x134] sm:$0xff]
      %v2385 = vld [vmem:[%s12 + $0x13c] sm:$0xff]
      %v2386 = vld [vmem:[%s12 + $0x144] sm:$0xff]
      %v2387 = vld [vmem:[%s12 + $0x14c] sm:$0xf]
      %v2388 = vld [vmem:[%s12 + $0x150] sm:$0xff]
      %v2389 = vld [vmem:[%s12 + $0x158] sm:$0xff]
      %v2390 = vld [vmem:[%s12 + $0x160] sm:$0xff]
      %v2391 = vld [vmem:[%s12 + $0x168] sm:$0xf]
      %v2392 = vld [vmem:[%s12 + $0x16c] sm:$0xff]
      %v2393 = vld [vmem:[%s12 + $0x174] sm:$0xff]
      %v2394 = vld [vmem:[%s12 + $0x17c] sm:$0xff]
      %v2395 = vld [vmem:[%s12 + $0x184] sm:$0xf]
      %v2396 = vld [vmem:[%s12 + $0x188] sm:$0xff]
      %v2397 = vld [vmem:[%s12 + $0x190] sm:$0xff]
      %v2398 = vld [vmem:[%s12 + $0x198] sm:$0xff]
      %v2399 = vld [vmem:[%s12 + $0x1a0] sm:$0xf]
      %v2400 = vld [vmem:[%s12 + $0x1a4] sm:$0xff]
      %v2401 = vld [vmem:[%s12 + $0x1ac] sm:$0xff]
      %v2402 = vld [vmem:[%s12 + $0x1b4] sm:$0xff]
      %v2403 = vld [vmem:[%s12 + $0x1bc] sm:$0xf]
      %v2404 = vld [vmem:[%s13] sm:$0x7f]
      %v2406 = vperm.slane %v2404, 0
      %v2407 = vperm.slane %v2404, 1
      %v2408 = vperm.slane %v2404, 2
      %v2409 = vperm.slane %v2404, 3
      %v2410 = vperm.slane %v2404, 4
      %v2411 = vperm.slane %v2404, 5
      %v2412 = vperm.slane %v2404, 6
      %v2484 = vunpack.c.l.b16 %v2340
      %v2485 = vunpack.c.h.b16 %v2340
      %v2486 = vunpack.c.l.b16 %v2341
      %v2487 = vunpack.c.h.b16 %v2341
      %v2488 = vunpack.c.l.b16 %v2342
      %v2489 = vunpack.c.h.b16 %v2342
      %v2490 = vunpack.c.l.b16 %v2343
      %v2491 = vunpack.c.l.b16 %v2344
      %v2492 = vunpack.c.h.b16 %v2344
      %v2493 = vunpack.c.l.b16 %v2345
      %v2494 = vunpack.c.h.b16 %v2345
      %v2495 = vunpack.c.l.b16 %v2346
      %v2496 = vunpack.c.h.b16 %v2346
      %v2497 = vunpack.c.l.b16 %v2347
      %v2498 = vunpack.c.l.b16 %v2348
      %v2499 = vunpack.c.h.b16 %v2348
      %v2500 = vunpack.c.l.b16 %v2349
      %v2501 = vunpack.c.h.b16 %v2349
      %v2502 = vunpack.c.l.b16 %v2350
      %v2503 = vunpack.c.h.b16 %v2350
      %v2504 = vunpack.c.l.b16 %v2351
      %v2505 = vunpack.c.l.b16 %v2352
      %v2506 = vunpack.c.h.b16 %v2352
      %v2507 = vunpack.c.l.b16 %v2353
      %v2508 = vunpack.c.h.b16 %v2353
      %v2509 = vunpack.c.l.b16 %v2354
      %v2510 = vunpack.c.h.b16 %v2354
      %v2511 = vunpack.c.l.b16 %v2355
      %v2512 = vunpack.c.l.b16 %v2356
      %v2513 = vunpack.c.h.b16 %v2356
      %v2514 = vunpack.c.l.b16 %v2357
      %v2515 = vunpack.c.h.b16 %v2357
      %v2516 = vunpack.c.l.b16 %v2358
      %v2517 = vunpack.c.h.b16 %v2358
      %v2518 = vunpack.c.l.b16 %v2359
      %v2519 = vunpack.c.l.b16 %v2360
      %v2520 = vunpack.c.h.b16 %v2360
      %v2521 = vunpack.c.l.b16 %v2361
      %v2522 = vunpack.c.h.b16 %v2361
      %v2523 = vunpack.c.l.b16 %v2362
      %v2524 = vunpack.c.h.b16 %v2362
      %v2525 = vunpack.c.l.b16 %v2363
      %v2526 = vunpack.c.l.b16 %v2364
      %v2527 = vunpack.c.h.b16 %v2364
      %v2528 = vunpack.c.l.b16 %v2365
      %v2529 = vunpack.c.h.b16 %v2365
      %v2530 = vunpack.c.l.b16 %v2366
      %v2531 = vunpack.c.h.b16 %v2366
      %v2532 = vunpack.c.l.b16 %v2367
      %v2533 = vunpack.c.l.b16 %v2368
      %v2534 = vunpack.c.h.b16 %v2368
      %v2535 = vunpack.c.l.b16 %v2369
      %v2536 = vunpack.c.h.b16 %v2369
      %v2537 = vunpack.c.l.b16 %v2370
      %v2538 = vunpack.c.h.b16 %v2370
      %v2539 = vunpack.c.l.b16 %v2371
      %v2540 = vunpack.c.l.b16 %v2372
      %v2541 = vunpack.c.h.b16 %v2372
      %v2542 = vunpack.c.l.b16 %v2373
      %v2543 = vunpack.c.h.b16 %v2373
      %v2544 = vunpack.c.l.b16 %v2374
      %v2545 = vunpack.c.h.b16 %v2374
      %v2546 = vunpack.c.l.b16 %v2375
      %v2547 = vunpack.c.l.b16 %v2376
      %v2548 = vunpack.c.h.b16 %v2376
      %v2549 = vunpack.c.l.b16 %v2377
      %v2550 = vunpack.c.h.b16 %v2377
      %v2551 = vunpack.c.l.b16 %v2378
      %v2552 = vunpack.c.h.b16 %v2378
      %v2553 = vunpack.c.l.b16 %v2379
      %v2554 = vunpack.c.l.b16 %v2380
      %v2555 = vunpack.c.h.b16 %v2380
      %v2556 = vunpack.c.l.b16 %v2381
      %v2557 = vunpack.c.h.b16 %v2381
      %v2558 = vunpack.c.l.b16 %v2382
      %v2559 = vunpack.c.h.b16 %v2382
      %v2560 = vunpack.c.l.b16 %v2383
      %v2561 = vunpack.c.l.b16 %v2384
      %v2562 = vunpack.c.h.b16 %v2384
      %v2563 = vunpack.c.l.b16 %v2385
      %v2564 = vunpack.c.h.b16 %v2385
      %v2565 = vunpack.c.l.b16 %v2386
      %v2566 = vunpack.c.h.b16 %v2386
      %v2567 = vunpack.c.l.b16 %v2387
      %v2568 = vunpack.c.l.b16 %v2388
      %v2569 = vunpack.c.h.b16 %v2388
      %v2570 = vunpack.c.l.b16 %v2389
      %v2571 = vunpack.c.h.b16 %v2389
      %v2572 = vunpack.c.l.b16 %v2390
      %v2573 = vunpack.c.h.b16 %v2390
      %v2574 = vunpack.c.l.b16 %v2391
      %v2575 = vunpack.c.l.b16 %v2392
      %v2576 = vunpack.c.h.b16 %v2392
      %v2577 = vunpack.c.l.b16 %v2393
      %v2578 = vunpack.c.h.b16 %v2393
      %v2579 = vunpack.c.l.b16 %v2394
      %v2580 = vunpack.c.h.b16 %v2394
      %v2581 = vunpack.c.l.b16 %v2395
      %v2582 = vunpack.c.l.b16 %v2396
      %v2583 = vunpack.c.h.b16 %v2396
      %v2584 = vunpack.c.l.b16 %v2397
      %v2585 = vunpack.c.h.b16 %v2397
      %v2586 = vunpack.c.l.b16 %v2398
      %v2587 = vunpack.c.h.b16 %v2398
      %v2588 = vunpack.c.l.b16 %v2399
      %v2589 = vunpack.c.l.b16 %v2400
      %v2590 = vunpack.c.h.b16 %v2400
      %v2591 = vunpack.c.l.b16 %v2401
      %v2592 = vunpack.c.h.b16 %v2401
      %v2593 = vunpack.c.l.b16 %v2402
      %v2594 = vunpack.c.h.b16 %v2402
      %v2595 = vunpack.c.l.b16 %v2403
      %v2596 = vpack.c.b16 %v2491, %v2484
      %v2597 = vpack.c.b16 %v2492, %v2485
      %v2598 = vpack.c.b16 %v2493, %v2486
      %v2599 = vpack.c.b16 %v2494, %v2487
      %v2600 = vpack.c.b16 %v2495, %v2488
      %v2601 = vpack.c.b16 %v2496, %v2489
      %v2602 = vpack.c.b16 %v2497, %v2490
      %v2603 = vpack.c.b16 %v2505, %v2498
      %v2604 = vpack.c.b16 %v2506, %v2499
      %v2605 = vpack.c.b16 %v2507, %v2500
      %v2606 = vpack.c.b16 %v2508, %v2501
      %v2607 = vpack.c.b16 %v2509, %v2502
      %v2608 = vpack.c.b16 %v2510, %v2503
      %v2609 = vpack.c.b16 %v2511, %v2504
      %v2610 = vpack.c.b16 %v2519, %v2512
      %v2611 = vpack.c.b16 %v2520, %v2513
      %v2612 = vpack.c.b16 %v2521, %v2514
      %v2613 = vpack.c.b16 %v2522, %v2515
      %v2614 = vpack.c.b16 %v2523, %v2516
      %v2615 = vpack.c.b16 %v2524, %v2517
      %v2616 = vpack.c.b16 %v2525, %v2518
      %v2617 = vpack.c.b16 %v2533, %v2526
      %v2618 = vpack.c.b16 %v2534, %v2527
      %v2619 = vpack.c.b16 %v2535, %v2528
      %v2620 = vpack.c.b16 %v2536, %v2529
      %v2621 = vpack.c.b16 %v2537, %v2530
      %v2622 = vpack.c.b16 %v2538, %v2531
      %v2623 = vpack.c.b16 %v2539, %v2532
      %v2624 = vpack.c.b16 %v2547, %v2540
      %v2625 = vpack.c.b16 %v2548, %v2541
      %v2626 = vpack.c.b16 %v2549, %v2542
      %v2627 = vpack.c.b16 %v2550, %v2543
      %v2628 = vpack.c.b16 %v2551, %v2544
      %v2629 = vpack.c.b16 %v2552, %v2545
      %v2630 = vpack.c.b16 %v2553, %v2546
      %v2631 = vpack.c.b16 %v2561, %v2554
      %v2632 = vpack.c.b16 %v2562, %v2555
      %v2633 = vpack.c.b16 %v2563, %v2556
      %v2634 = vpack.c.b16 %v2564, %v2557
      %v2635 = vpack.c.b16 %v2565, %v2558
      %v2636 = vpack.c.b16 %v2566, %v2559
      %v2637 = vpack.c.b16 %v2567, %v2560
      %v2638 = vpack.c.b16 %v2575, %v2568
      %v2639 = vpack.c.b16 %v2576, %v2569
      %v2640 = vpack.c.b16 %v2577, %v2570
      %v2641 = vpack.c.b16 %v2578, %v2571
      %v2642 = vpack.c.b16 %v2579, %v2572
      %v2643 = vpack.c.b16 %v2580, %v2573
      %v2644 = vpack.c.b16 %v2581, %v2574
      %v2645 = vpack.c.b16 %v2589, %v2582
      %v2646 = vpack.c.b16 %v2590, %v2583
      %v2647 = vpack.c.b16 %v2591, %v2584
      %v2648 = vpack.c.b16 %v2592, %v2585
      %v2649 = vpack.c.b16 %v2593, %v2586
      %v2650 = vpack.c.b16 %v2594, %v2587
      %v2651 = vpack.c.b16 %v2595, %v2588
      %2708 = vmatpush.bf16.msra.mxu0 %v2645
      %2709 = vmatpush.bf16.msra.mxu0 %v2638
      %2710 = vmatpush.bf16.msra.mxu0 %v2631
      %2711 = vmatpush.bf16.msra.mxu0 %v2624
      %2712 = vmatpush.bf16.msra.mxu0 %v2617
      %2713 = vmatpush.bf16.msra.mxu0 %v2610
      %2714 = vmatpush.bf16.msra.mxu0 %v2603
      %2715 = vmatpush.bf16.msra.mxu0 %v2596
      %2716 = vmatmul.bf16.gmra.mxu0 %v2332
      %v2717 = vpop.f32.mrf.mxu0
      %v2718 = vadd.f32 %v2406, %v2717
      %v2719 = vpop.f32.mrf.mxu0
      %v2720 = vadd.f32 %v2406, %v2719
      %2721 = vmatmul.bf16.gmra.mxu0 %v2333
      %v2722 = vpop.f32.mrf.mxu0
      %v2723 = vadd.f32 %v2406, %v2722
      %v2724 = vpop.f32.mrf.mxu0
      %v2725 = vadd.f32 %v2406, %v2724
      %2726 = vmatmul.bf16.gmra.mxu0 %v2334
      %v2727 = vpop.f32.mrf.mxu0
      %v2728 = vadd.f32 %v2406, %v2727
      %v2729 = vpop.f32.mrf.mxu0
      %v2730 = vadd.f32 %v2406, %v2729
      %2731 = vmatmul.bf16.gmra.mxu0 %v2335
      %v2732 = vpop.f32.mrf.mxu0
      %v2733 = vadd.f32 %v2406, %v2732
      %v2734 = vpop.f32.mrf.mxu0
      %v2735 = vadd.f32 %v2406, %v2734
      %2736 = vmatmul.bf16.gmra.mxu0 %v2336
      %v2737 = vpop.f32.mrf.mxu0
      %v2738 = vadd.f32 %v2406, %v2737
      %v2739 = vpop.f32.mrf.mxu0
      %v2740 = vadd.f32 %v2406, %v2739
      %2741 = vmatmul.bf16.gmra.mxu0 %v2337
      %v2742 = vpop.f32.mrf.mxu0
      %v2743 = vadd.f32 %v2406, %v2742
      %v2744 = vpop.f32.mrf.mxu0
      %v2745 = vadd.f32 %v2406, %v2744
      %2746 = vmatmul.bf16.gmra.mxu0 %v2338
      %v2747 = vpop.f32.mrf.mxu0
      %v2748 = vadd.f32 %v2406, %v2747
      %v2749 = vpop.f32.mrf.mxu0
      %v2750 = vadd.f32 %v2406, %v2749
      %2751 = vmatmul.bf16.gmra.mxu0 %v2339
      %v2752 = vpop.f32.mrf.mxu0
      %v2753 = vadd.f32 %v2406, %v2752
      %v2754 = vpop.f32.mrf.mxu0
      %v2755 = vadd.f32 %v2406, %v2754
      %2756 = vdwg.mxu0
      %2757 = vmatpush.bf16.msra.mxu0 %v2646
      %2758 = vmatpush.bf16.msra.mxu0 %v2639
      %2759 = vmatpush.bf16.msra.mxu0 %v2632
      %2760 = vmatpush.bf16.msra.mxu0 %v2625
      %2761 = vmatpush.bf16.msra.mxu0 %v2618
      %2762 = vmatpush.bf16.msra.mxu0 %v2611
      %2763 = vmatpush.bf16.msra.mxu0 %v2604
      %2764 = vmatpush.bf16.msra.mxu0 %v2597
      %2765 = vmatmul.bf16.gmra.mxu0 %v2332
      %v2766 = vpop.f32.mrf.mxu0
      %v2767 = vadd.f32 %v2407, %v2766
      %v2768 = vpop.f32.mrf.mxu0
      %v2769 = vadd.f32 %v2407, %v2768
      %2770 = vmatmul.bf16.gmra.mxu0 %v2333
      %v2771 = vpop.f32.mrf.mxu0
      %v2772 = vadd.f32 %v2407, %v2771
      %v2773 = vpop.f32.mrf.mxu0
      %v2774 = vadd.f32 %v2407, %v2773
      %2775 = vmatmul.bf16.gmra.mxu0 %v2334
      %v2776 = vpop.f32.mrf.mxu0
      %v2777 = vadd.f32 %v2407, %v2776
      %v2778 = vpop.f32.mrf.mxu0
      %v2779 = vadd.f32 %v2407, %v2778
      %2780 = vmatmul.bf16.gmra.mxu0 %v2335
      %v2781 = vpop.f32.mrf.mxu0
      %v2782 = vadd.f32 %v2407, %v2781
      %v2783 = vpop.f32.mrf.mxu0
      %v2784 = vadd.f32 %v2407, %v2783
      %2785 = vmatmul.bf16.gmra.mxu0 %v2336
      %v2786 = vpop.f32.mrf.mxu0
      %v2787 = vadd.f32 %v2407, %v2786
      %v2788 = vpop.f32.mrf.mxu0
      %v2789 = vadd.f32 %v2407, %v2788
      %2790 = vmatmul.bf16.gmra.mxu0 %v2337
      %v2791 = vpop.f32.mrf.mxu0
      %v2792 = vadd.f32 %v2407, %v2791
      %v2793 = vpop.f32.mrf.mxu0
      %v2794 = vadd.f32 %v2407, %v2793
      %2795 = vmatmul.bf16.gmra.mxu0 %v2338
      %v2796 = vpop.f32.mrf.mxu0
      %v2797 = vadd.f32 %v2407, %v2796
      %v2798 = vpop.f32.mrf.mxu0
      %v2799 = vadd.f32 %v2407, %v2798
      %2800 = vmatmul.bf16.gmra.mxu0 %v2339
      %v2801 = vpop.f32.mrf.mxu0
      %v2802 = vadd.f32 %v2407, %v2801
      %v2803 = vpop.f32.mrf.mxu0
      %v2804 = vadd.f32 %v2407, %v2803
      %2805 = vdwg.mxu0
      %2806 = vmatpush.bf16.msra.mxu0 %v2647
      %2807 = vmatpush.bf16.msra.mxu0 %v2640
      %2808 = vmatpush.bf16.msra.mxu0 %v2633
      %2809 = vmatpush.bf16.msra.mxu0 %v2626
      %2810 = vmatpush.bf16.msra.mxu0 %v2619
      %2811 = vmatpush.bf16.msra.mxu0 %v2612
      %2812 = vmatpush.bf16.msra.mxu0 %v2605
      %2813 = vmatpush.bf16.msra.mxu0 %v2598
      %2814 = vmatmul.bf16.gmra.mxu0 %v2332
      %v2815 = vpop.f32.mrf.mxu0
      %v2816 = vadd.f32 %v2408, %v2815
      %v2817 = vpop.f32.mrf.mxu0
      %v2818 = vadd.f32 %v2408, %v2817
      %2819 = vmatmul.bf16.gmra.mxu0 %v2333
      %v2820 = vpop.f32.mrf.mxu0
      %v2821 = vadd.f32 %v2408, %v2820
      %v2822 = vpop.f32.mrf.mxu0
      %v2823 = vadd.f32 %v2408, %v2822
      %2824 = vmatmul.bf16.gmra.mxu0 %v2334
      %v2825 = vpop.f32.mrf.mxu0
      %v2826 = vadd.f32 %v2408, %v2825
      %v2827 = vpop.f32.mrf.mxu0
      %v2828 = vadd.f32 %v2408, %v2827
      %2829 = vmatmul.bf16.gmra.mxu0 %v2335
      %v2830 = vpop.f32.mrf.mxu0
      %v2831 = vadd.f32 %v2408, %v2830
      %v2832 = vpop.f32.mrf.mxu0
      %v2833 = vadd.f32 %v2408, %v2832
      %2834 = vmatmul.bf16.gmra.mxu0 %v2336
      %v2835 = vpop.f32.mrf.mxu0
      %v2836 = vadd.f32 %v2408, %v2835
      %v2837 = vpop.f32.mrf.mxu0
      %v2838 = vadd.f32 %v2408, %v2837
      %2839 = vmatmul.bf16.gmra.mxu0 %v2337
      %v2840 = vpop.f32.mrf.mxu0
      %v2841 = vadd.f32 %v2408, %v2840
      %v2842 = vpop.f32.mrf.mxu0
      %v2843 = vadd.f32 %v2408, %v2842
      %2844 = vmatmul.bf16.gmra.mxu0 %v2338
      %v2845 = vpop.f32.mrf.mxu0
      %v2846 = vadd.f32 %v2408, %v2845
      %v2847 = vpop.f32.mrf.mxu0
      %v2848 = vadd.f32 %v2408, %v2847
      %2849 = vmatmul.bf16.gmra.mxu0 %v2339
      %v2850 = vpop.f32.mrf.mxu0
      %v2851 = vadd.f32 %v2408, %v2850
      %v2852 = vpop.f32.mrf.mxu0
      %v2853 = vadd.f32 %v2408, %v2852
      %2854 = vdwg.mxu0
      %2855 = vmatpush.bf16.msra.mxu0 %v2648
      %2856 = vmatpush.bf16.msra.mxu0 %v2641
      %2857 = vmatpush.bf16.msra.mxu0 %v2634
      %2858 = vmatpush.bf16.msra.mxu0 %v2627
      %2859 = vmatpush.bf16.msra.mxu0 %v2620
      %2860 = vmatpush.bf16.msra.mxu0 %v2613
      %2861 = vmatpush.bf16.msra.mxu0 %v2606
      %2862 = vmatpush.bf16.msra.mxu0 %v2599
      %2863 = vmatmul.bf16.gmra.mxu0 %v2332
      %v2864 = vpop.f32.mrf.mxu0
      %v2865 = vadd.f32 %v2409, %v2864
      %v2866 = vpop.f32.mrf.mxu0
      %v2867 = vadd.f32 %v2409, %v2866
      %2868 = vmatmul.bf16.gmra.mxu0 %v2333
      %v2869 = vpop.f32.mrf.mxu0
      %v2870 = vadd.f32 %v2409, %v2869
      %v2871 = vpop.f32.mrf.mxu0
      %v2872 = vadd.f32 %v2409, %v2871
      %2873 = vmatmul.bf16.gmra.mxu0 %v2334
      %v2874 = vpop.f32.mrf.mxu0
      %v2875 = vadd.f32 %v2409, %v2874
      %v2876 = vpop.f32.mrf.mxu0
      %v2877 = vadd.f32 %v2409, %v2876
      %2878 = vmatmul.bf16.gmra.mxu0 %v2335
      %v2879 = vpop.f32.mrf.mxu0
      %v2880 = vadd.f32 %v2409, %v2879
      %v2881 = vpop.f32.mrf.mxu0
      %v2882 = vadd.f32 %v2409, %v2881
      %2883 = vmatmul.bf16.gmra.mxu0 %v2336
      %v2884 = vpop.f32.mrf.mxu0
      %v2885 = vadd.f32 %v2409, %v2884
      %v2886 = vpop.f32.mrf.mxu0
      %v2887 = vadd.f32 %v2409, %v2886
      %2888 = vmatmul.bf16.gmra.mxu0 %v2337
      %v2889 = vpop.f32.mrf.mxu0
      %v2890 = vadd.f32 %v2409, %v2889
      %v2891 = vpop.f32.mrf.mxu0
      %v2892 = vadd.f32 %v2409, %v2891
      %2893 = vmatmul.bf16.gmra.mxu0 %v2338
      %v2894 = vpop.f32.mrf.mxu0
      %v2895 = vadd.f32 %v2409, %v2894
      %v2896 = vpop.f32.mrf.mxu0
      %v2897 = vadd.f32 %v2409, %v2896
      %2898 = vmatmul.bf16.gmra.mxu0 %v2339
      %v2899 = vpop.f32.mrf.mxu0
      %v2900 = vadd.f32 %v2409, %v2899
      %v2901 = vpop.f32.mrf.mxu0
      %v2902 = vadd.f32 %v2409, %v2901
      %2903 = vdwg.mxu0
      %2904 = vmatpush.bf16.msra.mxu0 %v2649
      %2905 = vmatpush.bf16.msra.mxu0 %v2642
      %2906 = vmatpush.bf16.msra.mxu0 %v2635
      %2907 = vmatpush.bf16.msra.mxu0 %v2628
      %2908 = vmatpush.bf16.msra.mxu0 %v2621
      %2909 = vmatpush.bf16.msra.mxu0 %v2614
      %2910 = vmatpush.bf16.msra.mxu0 %v2607
      %2911 = vmatpush.bf16.msra.mxu0 %v2600
      %2912 = vmatmul.bf16.gmra.mxu0 %v2332
      %v2913 = vpop.f32.mrf.mxu0
      %v2914 = vadd.f32 %v2410, %v2913
      %v2915 = vpop.f32.mrf.mxu0
      %v2916 = vadd.f32 %v2410, %v2915
      %2917 = vmatmul.bf16.gmra.mxu0 %v2333
      %v2918 = vpop.f32.mrf.mxu0
      %v2919 = vadd.f32 %v2410, %v2918
      %v2920 = vpop.f32.mrf.mxu0
      %v2921 = vadd.f32 %v2410, %v2920
      %2922 = vmatmul.bf16.gmra.mxu0 %v2334
      %v2923 = vpop.f32.mrf.mxu0
      %v2924 = vadd.f32 %v2410, %v2923
      %v2925 = vpop.f32.mrf.mxu0
      %v2926 = vadd.f32 %v2410, %v2925
      %2927 = vmatmul.bf16.gmra.mxu0 %v2335
      %v2928 = vpop.f32.mrf.mxu0
      %v2929 = vadd.f32 %v2410, %v2928
      %v2930 = vpop.f32.mrf.mxu0
      %v2931 = vadd.f32 %v2410, %v2930
      %2932 = vmatmul.bf16.gmra.mxu0 %v2336
      %v2933 = vpop.f32.mrf.mxu0
      %v2934 = vadd.f32 %v2410, %v2933
      %v2935 = vpop.f32.mrf.mxu0
      %v2936 = vadd.f32 %v2410, %v2935
      %2937 = vmatmul.bf16.gmra.mxu0 %v2337
      %v2938 = vpop.f32.mrf.mxu0
      %v2939 = vadd.f32 %v2410, %v2938
      %v2940 = vpop.f32.mrf.mxu0
      %v2941 = vadd.f32 %v2410, %v2940
      %2942 = vmatmul.bf16.gmra.mxu0 %v2338
      %v2943 = vpop.f32.mrf.mxu0
      %v2944 = vadd.f32 %v2410, %v2943
      %v2945 = vpop.f32.mrf.mxu0
      %v2946 = vadd.f32 %v2410, %v2945
      %2947 = vmatmul.bf16.gmra.mxu0 %v2339
      %v2948 = vpop.f32.mrf.mxu0
      %v2949 = vadd.f32 %v2410, %v2948
      %v2950 = vpop.f32.mrf.mxu0
      %v2951 = vadd.f32 %v2410, %v2950
      %2952 = vdwg.mxu0
      %2953 = vmatpush.bf16.msra.mxu0 %v2650
      %2954 = vmatpush.bf16.msra.mxu0 %v2643
      %2955 = vmatpush.bf16.msra.mxu0 %v2636
      %2956 = vmatpush.bf16.msra.mxu0 %v2629
      %2957 = vmatpush.bf16.msra.mxu0 %v2622
      %2958 = vmatpush.bf16.msra.mxu0 %v2615
      %2959 = vmatpush.bf16.msra.mxu0 %v2608
      %2960 = vmatpush.bf16.msra.mxu0 %v2601
      %2961 = vmatmul.bf16.gmra.mxu0 %v2332
      %v2962 = vpop.f32.mrf.mxu0
      %v2963 = vadd.f32 %v2411, %v2962
      %v2964 = vpop.f32.mrf.mxu0
      %v2965 = vadd.f32 %v2411, %v2964
      %2966 = vmatmul.bf16.gmra.mxu0 %v2333
      %v2967 = vpop.f32.mrf.mxu0
      %v2968 = vadd.f32 %v2411, %v2967
      %v2969 = vpop.f32.mrf.mxu0
      %v2970 = vadd.f32 %v2411, %v2969
      %2971 = vmatmul.bf16.gmra.mxu0 %v2334
      %v2972 = vpop.f32.mrf.mxu0
      %v2973 = vadd.f32 %v2411, %v2972
      %v2974 = vpop.f32.mrf.mxu0
      %v2975 = vadd.f32 %v2411, %v2974
      %2976 = vmatmul.bf16.gmra.mxu0 %v2335
      %v2977 = vpop.f32.mrf.mxu0
      %v2978 = vadd.f32 %v2411, %v2977
      %v2979 = vpop.f32.mrf.mxu0
      %v2980 = vadd.f32 %v2411, %v2979
      %2981 = vmatmul.bf16.gmra.mxu0 %v2336
      %v2982 = vpop.f32.mrf.mxu0
      %v2983 = vadd.f32 %v2411, %v2982
      %v2984 = vpop.f32.mrf.mxu0
      %v2985 = vadd.f32 %v2411, %v2984
      %2986 = vmatmul.bf16.gmra.mxu0 %v2337
      %v2987 = vpop.f32.mrf.mxu0
      %v2988 = vadd.f32 %v2411, %v2987
      %v2989 = vpop.f32.mrf.mxu0
      %v2990 = vadd.f32 %v2411, %v2989
      %2991 = vmatmul.bf16.gmra.mxu0 %v2338
      %v2992 = vpop.f32.mrf.mxu0
      %v2993 = vadd.f32 %v2411, %v2992
      %v2994 = vpop.f32.mrf.mxu0
      %v2995 = vadd.f32 %v2411, %v2994
      %2996 = vmatmul.bf16.gmra.mxu0 %v2339
      %v2997 = vpop.f32.mrf.mxu0
      %v2998 = vadd.f32 %v2411, %v2997
      %v2999 = vpop.f32.mrf.mxu0
      %v3000 = vadd.f32 %v2411, %v2999
      %3001 = vdwg.mxu0
      %3002 = vmatpush.bf16.msra.mxu0 %v2651
      %3003 = vmatpush.bf16.msra.mxu0 %v2644
      %3004 = vmatpush.bf16.msra.mxu0 %v2637
      %3005 = vmatpush.bf16.msra.mxu0 %v2630
      %3006 = vmatpush.bf16.msra.mxu0 %v2623
      %3007 = vmatpush.bf16.msra.mxu0 %v2616
      %3008 = vmatpush.bf16.msra.mxu0 %v2609
      %3009 = vmatpush.bf16.msra.mxu0 %v2602
      %3010 = vmatmul.bf16.gmra.mxu0 %v2332
      %v3011 = vpop.f32.mrf.mxu0
      %v3012 = vadd.f32 %v2412, %v3011
      %v3013 = vpop.f32.mrf.mxu0
      %v3014 = vadd.f32 %v2412, %v3013
      %3015 = vmatmul.bf16.gmra.mxu0 %v2333
      %v3016 = vpop.f32.mrf.mxu0
      %v3017 = vadd.f32 %v2412, %v3016
      %v3018 = vpop.f32.mrf.mxu0
      %v3019 = vadd.f32 %v2412, %v3018
      %3020 = vmatmul.bf16.gmra.mxu0 %v2334
      %v3021 = vpop.f32.mrf.mxu0
      %v3022 = vadd.f32 %v2412, %v3021
      %v3023 = vpop.f32.mrf.mxu0
      %v3024 = vadd.f32 %v2412, %v3023
      %3025 = vmatmul.bf16.gmra.mxu0 %v2335
      %v3026 = vpop.f32.mrf.mxu0
      %v3027 = vadd.f32 %v2412, %v3026
      %v3028 = vpop.f32.mrf.mxu0
      %v3029 = vadd.f32 %v2412, %v3028
      %3030 = vmatmul.bf16.gmra.mxu0 %v2336
      %v3031 = vpop.f32.mrf.mxu0
      %v3032 = vadd.f32 %v2412, %v3031
      %v3033 = vpop.f32.mrf.mxu0
      %v3034 = vadd.f32 %v2412, %v3033
      %3035 = vmatmul.bf16.gmra.mxu0 %v2337
      %v3036 = vpop.f32.mrf.mxu0
      %v3037 = vadd.f32 %v2412, %v3036
      %v3038 = vpop.f32.mrf.mxu0
      %v3039 = vadd.f32 %v2412, %v3038
      %3040 = vmatmul.bf16.gmra.mxu0 %v2338
      %v3041 = vpop.f32.mrf.mxu0
      %v3042 = vadd.f32 %v2412, %v3041
      %v3043 = vpop.f32.mrf.mxu0
      %v3044 = vadd.f32 %v2412, %v3043
      %3045 = vmatmul.bf16.gmra.mxu0 %v2339
      %v3046 = vpop.f32.mrf.mxu0
      %v3047 = vadd.f32 %v2412, %v3046
      %v3048 = vpop.f32.mrf.mxu0
      %v3049 = vadd.f32 %v2412, %v3048
      %3050 = vdwg.mxu0
      %v3051 = vmul.f32 %v2718, 0.5
      %v3052 = vmul.f32 %v2767, 0.5
      %v3053 = vmul.f32 %v2816, 0.5
      %v3054 = vmul.f32 %v2865, 0.5
      %v3055 = vmul.f32 %v2914, 0.5
      %v3056 = vmul.f32 %v2963, 0.5
      %v3057 = vmul.f32 %v3012, 0.5
      %v3058 = vmul.f32 %v2720, 0.5
      %v3059 = vmul.f32 %v2769, 0.5
      %v3060 = vmul.f32 %v2818, 0.5
      %v3061 = vmul.f32 %v2867, 0.5
      %v3062 = vmul.f32 %v2916, 0.5
      %v3063 = vmul.f32 %v2965, 0.5
      %v3064 = vmul.f32 %v3014, 0.5
      %v3065 = vmul.f32 %v2723, 0.5
      %v3066 = vmul.f32 %v2772, 0.5
      %v3067 = vmul.f32 %v2821, 0.5
      %v3068 = vmul.f32 %v2870, 0.5
      %v3069 = vmul.f32 %v2919, 0.5
      %v3070 = vmul.f32 %v2968, 0.5
      %v3071 = vmul.f32 %v3017, 0.5
      %v3072 = vmul.f32 %v2725, 0.5
      %v3073 = vmul.f32 %v2774, 0.5
      %v3074 = vmul.f32 %v2823, 0.5
      %v3075 = vmul.f32 %v2872, 0.5
      %v3076 = vmul.f32 %v2921, 0.5
      %v3077 = vmul.f32 %v2970, 0.5
      %v3078 = vmul.f32 %v3019, 0.5
      %v3079 = vmul.f32 %v2728, 0.5
      %v3080 = vmul.f32 %v2777, 0.5
      %v3081 = vmul.f32 %v2826, 0.5
      %v3082 = vmul.f32 %v2875, 0.5
      %v3083 = vmul.f32 %v2924, 0.5
      %v3084 = vmul.f32 %v2973, 0.5
      %v3085 = vmul.f32 %v3022, 0.5
      %v3086 = vmul.f32 %v2730, 0.5
      %v3087 = vmul.f32 %v2779, 0.5
      %v3088 = vmul.f32 %v2828, 0.5
      %v3089 = vmul.f32 %v2877, 0.5
      %v3090 = vmul.f32 %v2926, 0.5
      %v3091 = vmul.f32 %v2975, 0.5
      %v3092 = vmul.f32 %v3024, 0.5
      %v3093 = vmul.f32 %v2733, 0.5
      %v3094 = vmul.f32 %v2782, 0.5
      %v3095 = vmul.f32 %v2831, 0.5
      %v3096 = vmul.f32 %v2880, 0.5
      %v3097 = vmul.f32 %v2929, 0.5
      %v3098 = vmul.f32 %v2978, 0.5
      %v3099 = vmul.f32 %v3027, 0.5
      %v3100 = vmul.f32 %v2735, 0.5
      %v3101 = vmul.f32 %v2784, 0.5
      %v3102 = vmul.f32 %v2833, 0.5
      %v3103 = vmul.f32 %v2882, 0.5
      %v3104 = vmul.f32 %v2931, 0.5
      %v3105 = vmul.f32 %v2980, 0.5
      %v3106 = vmul.f32 %v3029, 0.5
      %v3107 = vmul.f32 %v2738, 0.5
      %v3108 = vmul.f32 %v2787, 0.5
      %v3109 = vmul.f32 %v2836, 0.5
      %v3110 = vmul.f32 %v2885, 0.5
      %v3111 = vmul.f32 %v2934, 0.5
      %v3112 = vmul.f32 %v2983, 0.5
      %v3113 = vmul.f32 %v3032, 0.5
      %v3114 = vmul.f32 %v2740, 0.5
      %v3115 = vmul.f32 %v2789, 0.5
      %v3116 = vmul.f32 %v2838, 0.5
      %v3117 = vmul.f32 %v2887, 0.5
      %v3118 = vmul.f32 %v2936, 0.5
      %v3119 = vmul.f32 %v2985, 0.5
      %v3120 = vmul.f32 %v3034, 0.5
      %v3121 = vmul.f32 %v2743, 0.5
      %v3122 = vmul.f32 %v2792, 0.5
      %v3123 = vmul.f32 %v2841, 0.5
      %v3124 = vmul.f32 %v2890, 0.5
      %v3125 = vmul.f32 %v2939, 0.5
      %v3126 = vmul.f32 %v2988, 0.5
      %v3127 = vmul.f32 %v3037, 0.5
      %v3128 = vmul.f32 %v2745, 0.5
      %v3129 = vmul.f32 %v2794, 0.5
      %v3130 = vmul.f32 %v2843, 0.5
      %v3131 = vmul.f32 %v2892, 0.5
      %v3132 = vmul.f32 %v2941, 0.5
      %v3133 = vmul.f32 %v2990, 0.5
      %v3134 = vmul.f32 %v3039, 0.5
      %v3135 = vmul.f32 %v2748, 0.5
      %v3136 = vmul.f32 %v2797, 0.5
      %v3137 = vmul.f32 %v2846, 0.5
      %v3138 = vmul.f32 %v2895, 0.5
      %v3139 = vmul.f32 %v2944, 0.5
      %v3140 = vmul.f32 %v2993, 0.5
      %v3141 = vmul.f32 %v3042, 0.5
      %v3142 = vmul.f32 %v2750, 0.5
      %v3143 = vmul.f32 %v2799, 0.5
      %v3144 = vmul.f32 %v2848, 0.5
      %v3145 = vmul.f32 %v2897, 0.5
      %v3146 = vmul.f32 %v2946, 0.5
      %v3147 = vmul.f32 %v2995, 0.5
      %v3148 = vmul.f32 %v3044, 0.5
      %v3149 = vmul.f32 %v2753, 0.5
      %v3150 = vmul.f32 %v2802, 0.5
      %v3151 = vmul.f32 %v2851, 0.5
      %v3152 = vmul.f32 %v2900, 0.5
      %v3153 = vmul.f32 %v2949, 0.5
      %v3154 = vmul.f32 %v2998, 0.5
      %v3155 = vmul.f32 %v3047, 0.5
      %v3156 = vmul.f32 %v2755, 0.5
      %v3157 = vmul.f32 %v2804, 0.5
      %v3158 = vmul.f32 %v2853, 0.5
      %v3159 = vmul.f32 %v2902, 0.5
      %v3160 = vmul.f32 %v2951, 0.5
      %v3161 = vmul.f32 %v3000, 0.5
      %v3162 = vmul.f32 %v3049, 0.5
      %v3163 = vtanh.pop %v3051
      %v3164 = vtanh.pop %v3052
      %v3165 = vtanh.pop %v3053
      %v3166 = vtanh.pop %v3054
      %v3167 = vtanh.pop %v3055
      %v3168 = vtanh.pop %v3056
      %v3169 = vtanh.pop %v3057
      %v3170 = vtanh.pop %v3058
      %v3171 = vtanh.pop %v3059
      %v3172 = vtanh.pop %v3060
      %v3173 = vtanh.pop %v3061
      %v3174 = vtanh.pop %v3062
      %v3175 = vtanh.pop %v3063
      %v3176 = vtanh.pop %v3064
      %v3177 = vtanh.pop %v3065
      %v3178 = vtanh.pop %v3066
      %v3179 = vtanh.pop %v3067
      %v3180 = vtanh.pop %v3068
      %v3181 = vtanh.pop %v3069
      %v3182 = vtanh.pop %v3070
      %v3183 = vtanh.pop %v3071
      %v3184 = vtanh.pop %v3072
      %v3185 = vtanh.pop %v3073
      %v3186 = vtanh.pop %v3074
      %v3187 = vtanh.pop %v3075
      %v3188 = vtanh.pop %v3076
      %v3189 = vtanh.pop %v3077
      %v3190 = vtanh.pop %v3078
      %v3191 = vtanh.pop %v3079
      %v3192 = vtanh.pop %v3080
      %v3193 = vtanh.pop %v3081
      %v3194 = vtanh.pop %v3082
      %v3195 = vtanh.pop %v3083
      %v3196 = vtanh.pop %v3084
      %v3197 = vtanh.pop %v3085
      %v3198 = vtanh.pop %v3086
      %v3199 = vtanh.pop %v3087
      %v3200 = vtanh.pop %v3088
      %v3201 = vtanh.pop %v3089
      %v3202 = vtanh.pop %v3090
      %v3203 = vtanh.pop %v3091
      %v3204 = vtanh.pop %v3092
      %v3205 = vtanh.pop %v3093
      %v3206 = vtanh.pop %v3094
      %v3207 = vtanh.pop %v3095
      %v3208 = vtanh.pop %v3096
      %v3209 = vtanh.pop %v3097
      %v3210 = vtanh.pop %v3098
      %v3211 = vtanh.pop %v3099
      %v3212 = vtanh.pop %v3100
      %v3213 = vtanh.pop %v3101
      %v3214 = vtanh.pop %v3102
      %v3215 = vtanh.pop %v3103
      %v3216 = vtanh.pop %v3104
      %v3217 = vtanh.pop %v3105
      %v3218 = vtanh.pop %v3106
      %v3219 = vtanh.pop %v3107
      %v3220 = vtanh.pop %v3108
      %v3221 = vtanh.pop %v3109
      %v3222 = vtanh.pop %v3110
      %v3223 = vtanh.pop %v3111
      %v3224 = vtanh.pop %v3112
      %v3225 = vtanh.pop %v3113
      %v3226 = vtanh.pop %v3114
      %v3227 = vtanh.pop %v3115
      %v3228 = vtanh.pop %v3116
      %v3229 = vtanh.pop %v3117
      %v3230 = vtanh.pop %v3118
      %v3231 = vtanh.pop %v3119
      %v3232 = vtanh.pop %v3120
      %v3233 = vtanh.pop %v3121
      %v3234 = vtanh.pop %v3122
      %v3235 = vtanh.pop %v3123
      %v3236 = vtanh.pop %v3124
      %v3237 = vtanh.pop %v3125
      %v3238 = vtanh.pop %v3126
      %v3239 = vtanh.pop %v3127
      %v3240 = vtanh.pop %v3128
      %v3241 = vtanh.pop %v3129
      %v3242 = vtanh.pop %v3130
      %v3243 = vtanh.pop %v3131
      %v3244 = vtanh.pop %v3132
      %v3245 = vtanh.pop %v3133
      %v3246 = vtanh.pop %v3134
      %v3247 = vtanh.pop %v3135
      %v3248 = vtanh.pop %v3136
      %v3249 = vtanh.pop %v3137
      %v3250 = vtanh.pop %v3138
      %v3251 = vtanh.pop %v3139
      %v3252 = vtanh.pop %v3140
      %v3253 = vtanh.pop %v3141
      %v3254 = vtanh.pop %v3142
      %v3255 = vtanh.pop %v3143
      %v3256 = vtanh.pop %v3144
      %v3257 = vtanh.pop %v3145
      %v3258 = vtanh.pop %v3146
      %v3259 = vtanh.pop %v3147
      %v3260 = vtanh.pop %v3148
      %v3261 = vtanh.pop %v3149
      %v3262 = vtanh.pop %v3150
      %v3263 = vtanh.pop %v3151
      %v3264 = vtanh.pop %v3152
      %v3265 = vtanh.pop %v3153
      %v3266 = vtanh.pop %v3154
      %v3267 = vtanh.pop %v3155
      %v3268 = vtanh.pop %v3156
      %v3269 = vtanh.pop %v3157
      %v3270 = vtanh.pop %v3158
      %v3271 = vtanh.pop %v3159
      %v3272 = vtanh.pop %v3160
      %v3273 = vtanh.pop %v3161
      %v3274 = vtanh.pop %v3162
      %v3275 = vmul.f32 %v3163, 0.5
      %v3276 = vmul.f32 %v3164, 0.5
      %v3277 = vmul.f32 %v3165, 0.5
      %v3278 = vmul.f32 %v3166, 0.5
      %v3279 = vmul.f32 %v3167, 0.5
      %v3280 = vmul.f32 %v3168, 0.5
      %v3281 = vmul.f32 %v3169, 0.5
      %v3282 = vmul.f32 %v3170, 0.5
      %v3283 = vmul.f32 %v3171, 0.5
      %v3284 = vmul.f32 %v3172, 0.5
      %v3285 = vmul.f32 %v3173, 0.5
      %v3286 = vmul.f32 %v3174, 0.5
      %v3287 = vmul.f32 %v3175, 0.5
      %v3288 = vmul.f32 %v3176, 0.5
      %v3289 = vmul.f32 %v3177, 0.5
      %v3290 = vmul.f32 %v3178, 0.5
      %v3291 = vmul.f32 %v3179, 0.5
      %v3292 = vmul.f32 %v3180, 0.5
      %v3293 = vmul.f32 %v3181, 0.5
      %v3294 = vmul.f32 %v3182, 0.5
      %v3295 = vmul.f32 %v3183, 0.5
      %v3296 = vmul.f32 %v3184, 0.5
      %v3297 = vmul.f32 %v3185, 0.5
      %v3298 = vmul.f32 %v3186, 0.5
      %v3299 = vmul.f32 %v3187, 0.5
      %v3300 = vmul.f32 %v3188, 0.5
      %v3301 = vmul.f32 %v3189, 0.5
      %v3302 = vmul.f32 %v3190, 0.5
      %v3303 = vmul.f32 %v3191, 0.5
      %v3304 = vmul.f32 %v3192, 0.5
      %v3305 = vmul.f32 %v3193, 0.5
      %v3306 = vmul.f32 %v3194, 0.5
      %v3307 = vmul.f32 %v3195, 0.5
      %v3308 = vmul.f32 %v3196, 0.5
      %v3309 = vmul.f32 %v3197, 0.5
      %v3310 = vmul.f32 %v3198, 0.5
      %v3311 = vmul.f32 %v3199, 0.5
      %v3312 = vmul.f32 %v3200, 0.5
      %v3313 = vmul.f32 %v3201, 0.5
      %v3314 = vmul.f32 %v3202, 0.5
      %v3315 = vmul.f32 %v3203, 0.5
      %v3316 = vmul.f32 %v3204, 0.5
      %v3317 = vmul.f32 %v3205, 0.5
      %v3318 = vmul.f32 %v3206, 0.5
      %v3319 = vmul.f32 %v3207, 0.5
      %v3320 = vmul.f32 %v3208, 0.5
      %v3321 = vmul.f32 %v3209, 0.5
      %v3322 = vmul.f32 %v3210, 0.5
      %v3323 = vmul.f32 %v3211, 0.5
      %v3324 = vmul.f32 %v3212, 0.5
      %v3325 = vmul.f32 %v3213, 0.5
      %v3326 = vmul.f32 %v3214, 0.5
      %v3327 = vmul.f32 %v3215, 0.5
      %v3328 = vmul.f32 %v3216, 0.5
      %v3329 = vmul.f32 %v3217, 0.5
      %v3330 = vmul.f32 %v3218, 0.5
      %v3331 = vmul.f32 %v3219, 0.5
      %v3332 = vmul.f32 %v3220, 0.5
      %v3333 = vmul.f32 %v3221, 0.5
      %v3334 = vmul.f32 %v3222, 0.5
      %v3335 = vmul.f32 %v3223, 0.5
      %v3336 = vmul.f32 %v3224, 0.5
      %v3337 = vmul.f32 %v3225, 0.5
      %v3338 = vmul.f32 %v3226, 0.5
      %v3339 = vmul.f32 %v3227, 0.5
      %v3340 = vmul.f32 %v3228, 0.5
      %v3341 = vmul.f32 %v3229, 0.5
      %v3342 = vmul.f32 %v3230, 0.5
      %v3343 = vmul.f32 %v3231, 0.5
      %v3344 = vmul.f32 %v3232, 0.5
      %v3345 = vmul.f32 %v3233, 0.5
      %v3346 = vmul.f32 %v3234, 0.5
      %v3347 = vmul.f32 %v3235, 0.5
      %v3348 = vmul.f32 %v3236, 0.5
      %v3349 = vmul.f32 %v3237, 0.5
      %v3350 = vmul.f32 %v3238, 0.5
      %v3351 = vmul.f32 %v3239, 0.5
      %v3352 = vmul.f32 %v3240, 0.5
      %v3353 = vmul.f32 %v3241, 0.5
      %v3354 = vmul.f32 %v3242, 0.5
      %v3355 = vmul.f32 %v3243, 0.5
      %v3356 = vmul.f32 %v3244, 0.5
      %v3357 = vmul.f32 %v3245, 0.5
      %v3358 = vmul.f32 %v3246, 0.5
      %v3359 = vmul.f32 %v3247, 0.5
      %v3360 = vmul.f32 %v3248, 0.5
      %v3361 = vmul.f32 %v3249, 0.5
      %v3362 = vmul.f32 %v3250, 0.5
      %v3363 = vmul.f32 %v3251, 0.5
      %v3364 = vmul.f32 %v3252, 0.5
      %v3365 = vmul.f32 %v3253, 0.5
      %v3366 = vmul.f32 %v3254, 0.5
      %v3367 = vmul.f32 %v3255, 0.5
      %v3368 = vmul.f32 %v3256, 0.5
      %v3369 = vmul.f32 %v3257, 0.5
      %v3370 = vmul.f32 %v3258, 0.5
      %v3371 = vmul.f32 %v3259, 0.5
      %v3372 = vmul.f32 %v3260, 0.5
      %v3373 = vmul.f32 %v3261, 0.5
      %v3374 = vmul.f32 %v3262, 0.5
      %v3375 = vmul.f32 %v3263, 0.5
      %v3376 = vmul.f32 %v3264, 0.5
      %v3377 = vmul.f32 %v3265, 0.5
      %v3378 = vmul.f32 %v3266, 0.5
      %v3379 = vmul.f32 %v3267, 0.5
      %v3380 = vmul.f32 %v3268, 0.5
      %v3381 = vmul.f32 %v3269, 0.5
      %v3382 = vmul.f32 %v3270, 0.5
      %v3383 = vmul.f32 %v3271, 0.5
      %v3384 = vmul.f32 %v3272, 0.5
      %v3385 = vmul.f32 %v3273, 0.5
      %v3386 = vmul.f32 %v3274, 0.5
      %v3387 = vadd.f32 %v3275, 0.5
      %v3388 = vadd.f32 %v3276, 0.5
      %v3389 = vadd.f32 %v3277, 0.5
      %v3390 = vadd.f32 %v3278, 0.5
      %v3391 = vadd.f32 %v3279, 0.5
      %v3392 = vadd.f32 %v3280, 0.5
      %v3393 = vadd.f32 %v3281, 0.5
      %v3394 = vadd.f32 %v3282, 0.5
      %v3395 = vadd.f32 %v3283, 0.5
      %v3396 = vadd.f32 %v3284, 0.5
      %v3397 = vadd.f32 %v3285, 0.5
      %v3398 = vadd.f32 %v3286, 0.5
      %v3399 = vadd.f32 %v3287, 0.5
      %v3400 = vadd.f32 %v3288, 0.5
      %v3401 = vadd.f32 %v3289, 0.5
      %v3402 = vadd.f32 %v3290, 0.5
      %v3403 = vadd.f32 %v3291, 0.5
      %v3404 = vadd.f32 %v3292, 0.5
      %v3405 = vadd.f32 %v3293, 0.5
      %v3406 = vadd.f32 %v3294, 0.5
      %v3407 = vadd.f32 %v3295, 0.5
      %v3408 = vadd.f32 %v3296, 0.5
      %v3409 = vadd.f32 %v3297, 0.5
      %v3410 = vadd.f32 %v3298, 0.5
      %v3411 = vadd.f32 %v3299, 0.5
      %v3412 = vadd.f32 %v3300, 0.5
      %v3413 = vadd.f32 %v3301, 0.5
      %v3414 = vadd.f32 %v3302, 0.5
      %v3415 = vadd.f32 %v3303, 0.5
      %v3416 = vadd.f32 %v3304, 0.5
      %v3417 = vadd.f32 %v3305, 0.5
      %v3418 = vadd.f32 %v3306, 0.5
      %v3419 = vadd.f32 %v3307, 0.5
      %v3420 = vadd.f32 %v3308, 0.5
      %v3421 = vadd.f32 %v3309, 0.5
      %v3422 = vadd.f32 %v3310, 0.5
      %v3423 = vadd.f32 %v3311, 0.5
      %v3424 = vadd.f32 %v3312, 0.5
      %v3425 = vadd.f32 %v3313, 0.5
      %v3426 = vadd.f32 %v3314, 0.5
      %v3427 = vadd.f32 %v3315, 0.5
      %v3428 = vadd.f32 %v3316, 0.5
      %v3429 = vadd.f32 %v3317, 0.5
      %v3430 = vadd.f32 %v3318, 0.5
      %v3431 = vadd.f32 %v3319, 0.5
      %v3432 = vadd.f32 %v3320, 0.5
      %v3433 = vadd.f32 %v3321, 0.5
      %v3434 = vadd.f32 %v3322, 0.5
      %v3435 = vadd.f32 %v3323, 0.5
      %v3436 = vadd.f32 %v3324, 0.5
      %v3437 = vadd.f32 %v3325, 0.5
      %v3438 = vadd.f32 %v3326, 0.5
      %v3439 = vadd.f32 %v3327, 0.5
      %v3440 = vadd.f32 %v3328, 0.5
      %v3441 = vadd.f32 %v3329, 0.5
      %v3442 = vadd.f32 %v3330, 0.5
      %v3443 = vadd.f32 %v3331, 0.5
      %v3444 = vadd.f32 %v3332, 0.5
      %v3445 = vadd.f32 %v3333, 0.5
      %v3446 = vadd.f32 %v3334, 0.5
      %v3447 = vadd.f32 %v3335, 0.5
      %v3448 = vadd.f32 %v3336, 0.5
      %v3449 = vadd.f32 %v3337, 0.5
      %v3450 = vadd.f32 %v3338, 0.5
      %v3451 = vadd.f32 %v3339, 0.5
      %v3452 = vadd.f32 %v3340, 0.5
      %v3453 = vadd.f32 %v3341, 0.5
      %v3454 = vadd.f32 %v3342, 0.5
      %v3455 = vadd.f32 %v3343, 0.5
      %v3456 = vadd.f32 %v3344, 0.5
      %v3457 = vadd.f32 %v3345, 0.5
      %v3458 = vadd.f32 %v3346, 0.5
      %v3459 = vadd.f32 %v3347, 0.5
      %v3460 = vadd.f32 %v3348, 0.5
      %v3461 = vadd.f32 %v3349, 0.5
      %v3462 = vadd.f32 %v3350, 0.5
      %v3463 = vadd.f32 %v3351, 0.5
      %v3464 = vadd.f32 %v3352, 0.5
      %v3465 = vadd.f32 %v3353, 0.5
      %v3466 = vadd.f32 %v3354, 0.5
      %v3467 = vadd.f32 %v3355, 0.5
      %v3468 = vadd.f32 %v3356, 0.5
      %v3469 = vadd.f32 %v3357, 0.5
      %v3470 = vadd.f32 %v3358, 0.5
      %v3471 = vadd.f32 %v3359, 0.5
      %v3472 = vadd.f32 %v3360, 0.5
      %v3473 = vadd.f32 %v3361, 0.5
      %v3474 = vadd.f32 %v3362, 0.5
      %v3475 = vadd.f32 %v3363, 0.5
      %v3476 = vadd.f32 %v3364, 0.5
      %v3477 = vadd.f32 %v3365, 0.5
      %v3478 = vadd.f32 %v3366, 0.5
      %v3479 = vadd.f32 %v3367, 0.5
      %v3480 = vadd.f32 %v3368, 0.5
      %v3481 = vadd.f32 %v3369, 0.5
      %v3482 = vadd.f32 %v3370, 0.5
      %v3483 = vadd.f32 %v3371, 0.5
      %v3484 = vadd.f32 %v3372, 0.5
      %v3485 = vadd.f32 %v3373, 0.5
      %v3486 = vadd.f32 %v3374, 0.5
      %v3487 = vadd.f32 %v3375, 0.5
      %v3488 = vadd.f32 %v3376, 0.5
      %v3489 = vadd.f32 %v3377, 0.5
      %v3490 = vadd.f32 %v3378, 0.5
      %v3491 = vadd.f32 %v3379, 0.5
      %v3492 = vadd.f32 %v3380, 0.5
      %v3493 = vadd.f32 %v3381, 0.5
      %v3494 = vadd.f32 %v3382, 0.5
      %v3495 = vadd.f32 %v3383, 0.5
      %v3496 = vadd.f32 %v3384, 0.5
      %v3497 = vadd.f32 %v3385, 0.5
      %v3498 = vadd.f32 %v3386, 0.5
      %v3499 = vpack.c.bf16 %v3388, %v3387
      %v3500 = vpack.c.bf16 %v3390, %v3389
      %v3501 = vpack.c.bf16 %v3392, %v3391
      %v3502 = vpack.c.bf16 %v3393, %v3393
      %v3503 = vpack.c.bf16 %v3395, %v3394
      %v3504 = vpack.c.bf16 %v3397, %v3396
      %v3505 = vpack.c.bf16 %v3399, %v3398
      %v3506 = vpack.c.bf16 %v3400, %v3400
      %v3507 = vpack.c.bf16 %v3402, %v3401
      %v3508 = vpack.c.bf16 %v3404, %v3403
      %v3509 = vpack.c.bf16 %v3406, %v3405
      %v3510 = vpack.c.bf16 %v3407, %v3407
      %v3511 = vpack.c.bf16 %v3409, %v3408
      %v3512 = vpack.c.bf16 %v3411, %v3410
      %v3513 = vpack.c.bf16 %v3413, %v3412
      %v3514 = vpack.c.bf16 %v3414, %v3414
      %v3515 = vpack.c.bf16 %v3416, %v3415
      %v3516 = vpack.c.bf16 %v3418, %v3417
      %v3517 = vpack.c.bf16 %v3420, %v3419
      %v3518 = vpack.c.bf16 %v3421, %v3421
      %v3519 = vpack.c.bf16 %v3423, %v3422
      %v3520 = vpack.c.bf16 %v3425, %v3424
      %v3521 = vpack.c.bf16 %v3427, %v3426
      %v3522 = vpack.c.bf16 %v3428, %v3428
      %v3523 = vpack.c.bf16 %v3430, %v3429
      %v3524 = vpack.c.bf16 %v3432, %v3431
      %v3525 = vpack.c.bf16 %v3434, %v3433
      %v3526 = vpack.c.bf16 %v3435, %v3435
      %v3527 = vpack.c.bf16 %v3437, %v3436
      %v3528 = vpack.c.bf16 %v3439, %v3438
      %v3529 = vpack.c.bf16 %v3441, %v3440
      %v3530 = vpack.c.bf16 %v3442, %v3442
      %v3531 = vpack.c.bf16 %v3444, %v3443
      %v3532 = vpack.c.bf16 %v3446, %v3445
      %v3533 = vpack.c.bf16 %v3448, %v3447
      %v3534 = vpack.c.bf16 %v3449, %v3449
      %v3535 = vpack.c.bf16 %v3451, %v3450
      %v3536 = vpack.c.bf16 %v3453, %v3452
      %v3537 = vpack.c.bf16 %v3455, %v3454
      %v3538 = vpack.c.bf16 %v3456, %v3456
      %v3539 = vpack.c.bf16 %v3458, %v3457
      %v3540 = vpack.c.bf16 %v3460, %v3459
      %v3541 = vpack.c.bf16 %v3462, %v3461
      %v3542 = vpack.c.bf16 %v3463, %v3463
      %v3543 = vpack.c.bf16 %v3465, %v3464
      %v3544 = vpack.c.bf16 %v3467, %v3466
      %v3545 = vpack.c.bf16 %v3469, %v3468
      %v3546 = vpack.c.bf16 %v3470, %v3470
      %v3547 = vpack.c.bf16 %v3472, %v3471
      %v3548 = vpack.c.bf16 %v3474, %v3473
      %v3549 = vpack.c.bf16 %v3476, %v3475
      %v3550 = vpack.c.bf16 %v3477, %v3477
      %v3551 = vpack.c.bf16 %v3479, %v3478
      %v3552 = vpack.c.bf16 %v3481, %v3480
      %v3553 = vpack.c.bf16 %v3483, %v3482
      %v3554 = vpack.c.bf16 %v3484, %v3484
      %v3555 = vpack.c.bf16 %v3486, %v3485
      %v3556 = vpack.c.bf16 %v3488, %v3487
      %v3557 = vpack.c.bf16 %v3490, %v3489
      %v3558 = vpack.c.bf16 %v3491, %v3491
      %v3559 = vpack.c.bf16 %v3493, %v3492
      %v3560 = vpack.c.bf16 %v3495, %v3494
      %v3561 = vpack.c.bf16 %v3497, %v3496
      %v3562 = vpack.c.bf16 %v3498, %v3498
      %3563 = vst [vmem:[%s531] sm:$0xff] %v3499
      %3564 = vst [vmem:[%s531 + $0x8] sm:$0xff] %v3500
      %3565 = vst [vmem:[%s531 + $0x10] sm:$0xff] %v3501
      %vm3566 = vcmask 125952
      %3567 = vst.msk [vmem:[%s531 + $0x18] sm:$0xf] %vm3566, %v3502
      %3568 = vst [vmem:[%s531 + $0x1c] sm:$0xff] %v3503
      %3569 = vst [vmem:[%s531 + $0x24] sm:$0xff] %v3504
      %3570 = vst [vmem:[%s531 + $0x2c] sm:$0xff] %v3505
      %3571 = vst.msk [vmem:[%s531 + $0x34] sm:$0xf] %vm3566, %v3506
      %3572 = vst [vmem:[%s531 + $0x38] sm:$0xff] %v3507
      %3573 = vst [vmem:[%s531 + $0x40] sm:$0xff] %v3508
      %3574 = vst [vmem:[%s531 + $0x48] sm:$0xff] %v3509
      %3575 = vst.msk [vmem:[%s531 + $0x50] sm:$0xf] %vm3566, %v3510
      %3576 = vst [vmem:[%s531 + $0x54] sm:$0xff] %v3511
      %3577 = vst [vmem:[%s531 + $0x5c] sm:$0xff] %v3512
      %3578 = vst [vmem:[%s531 + $0x64] sm:$0xff] %v3513
      %3579 = vst.msk [vmem:[%s531 + $0x6c] sm:$0xf] %vm3566, %v3514
      %3580 = vst [vmem:[%s531 + $0x70] sm:$0xff] %v3515
      %3581 = vst [vmem:[%s531 + $0x78] sm:$0xff] %v3516
      %3582 = vst [vmem:[%s531 + $0x80] sm:$0xff] %v3517
      %3583 = vst.msk [vmem:[%s531 + $0x88] sm:$0xf] %vm3566, %v3518
      %3584 = vst [vmem:[%s531 + $0x8c] sm:$0xff] %v3519
      %3585 = vst [vmem:[%s531 + $0x94] sm:$0xff] %v3520
      %3586 = vst [vmem:[%s531 + $0x9c] sm:$0xff] %v3521
      %3587 = vst.msk [vmem:[%s531 + $0xa4] sm:$0xf] %vm3566, %v3522
      %3588 = vst [vmem:[%s531 + $0xa8] sm:$0xff] %v3523
      %3589 = vst [vmem:[%s531 + $0xb0] sm:$0xff] %v3524
      %3590 = vst [vmem:[%s531 + $0xb8] sm:$0xff] %v3525
      %3591 = vst.msk [vmem:[%s531 + $0xc0] sm:$0xf] %vm3566, %v3526
      %3592 = vst [vmem:[%s531 + $0xc4] sm:$0xff] %v3527
      %3593 = vst [vmem:[%s531 + $0xcc] sm:$0xff] %v3528
      %3594 = vst [vmem:[%s531 + $0xd4] sm:$0xff] %v3529
      %3595 = vst.msk [vmem:[%s531 + $0xdc] sm:$0xf] %vm3566, %v3530
      %3596 = vst [vmem:[%s531 + $0xe0] sm:$0xff] %v3531
      %3597 = vst [vmem:[%s531 + $0xe8] sm:$0xff] %v3532
      %3598 = vst [vmem:[%s531 + $0xf0] sm:$0xff] %v3533
      %3599 = vst.msk [vmem:[%s531 + $0xf8] sm:$0xf] %vm3566, %v3534
      %3600 = vst [vmem:[%s531 + $0xfc] sm:$0xff] %v3535
      %3601 = vst [vmem:[%s531 + $0x104] sm:$0xff] %v3536
      %3602 = vst [vmem:[%s531 + $0x10c] sm:$0xff] %v3537
      %3603 = vst.msk [vmem:[%s531 + $0x114] sm:$0xf] %vm3566, %v3538
      %3604 = vst [vmem:[%s531 + $0x118] sm:$0xff] %v3539
      %3605 = vst [vmem:[%s531 + $0x120] sm:$0xff] %v3540
      %3606 = vst [vmem:[%s531 + $0x128] sm:$0xff] %v3541
      %3607 = vst.msk [vmem:[%s531 + $0x130] sm:$0xf] %vm3566, %v3542
      %3608 = vst [vmem:[%s531 + $0x134] sm:$0xff] %v3543
      %3609 = vst [vmem:[%s531 + $0x13c] sm:$0xff] %v3544
      %3610 = vst [vmem:[%s531 + $0x144] sm:$0xff] %v3545
      %3611 = vst.msk [vmem:[%s531 + $0x14c] sm:$0xf] %vm3566, %v3546
      %3612 = vst [vmem:[%s531 + $0x150] sm:$0xff] %v3547
      %3613 = vst [vmem:[%s531 + $0x158] sm:$0xff] %v3548
      %3614 = vst [vmem:[%s531 + $0x160] sm:$0xff] %v3549
      %3615 = vst.msk [vmem:[%s531 + $0x168] sm:$0xf] %vm3566, %v3550
      %3616 = vst [vmem:[%s531 + $0x16c] sm:$0xff] %v3551
      %3617 = vst [vmem:[%s531 + $0x174] sm:$0xff] %v3552
      %3618 = vst [vmem:[%s531 + $0x17c] sm:$0xff] %v3553
      %3619 = vst.msk [vmem:[%s531 + $0x184] sm:$0xf] %vm3566, %v3554
      %3620 = vst [vmem:[%s531 + $0x188] sm:$0xff] %v3555
      %3621 = vst [vmem:[%s531 + $0x190] sm:$0xff] %v3556
      %3622 = vst [vmem:[%s531 + $0x198] sm:$0xff] %v3557
      %3623 = vst.msk [vmem:[%s531 + $0x1a0] sm:$0xf] %vm3566, %v3558
      %3624 = vst [vmem:[%s531 + $0x1a4] sm:$0xff] %v3559
      %3625 = vst [vmem:[%s531 + $0x1ac] sm:$0xff] %v3560
      %3626 = vst [vmem:[%s531 + $0x1b4] sm:$0xff] %v3561
      %3627 = vst.msk [vmem:[%s531 + $0x1bc] sm:$0xf] %vm3566, %v3562
      %vm3628 = vcmask 605696
      %v3629 = vsel %vm3628, %v2128, -inf
      %3630 = vmax.xlane.f32.xlu0 %v3629
      %v3631 = vpop.xlane.xlu0 %3630
      %v3632 = vsel %vm3628, %v2131, -inf
      %3633 = vmax.xlane.f32.xlu0 %v3632
      %v3634 = vpop.xlane.xlu0 %3633
      %v3635 = vsel %vm3628, %v2134, -inf
      %3636 = vmax.xlane.f32.xlu0 %v3635
      %v3637 = vpop.xlane.xlu0 %3636
      %v3638 = vsel %vm3628, %v2137, -inf
      %3639 = vmax.xlane.f32.xlu0 %v3638
      %v3640 = vpop.xlane.xlu0 %3639
      %v3641 = vsel %vm3628, %v2140, -inf
      %3642 = vmax.xlane.f32.xlu0 %v3641
      %v3643 = vpop.xlane.xlu0 %3642
      %v3644 = vsel %vm3628, %v2143, -inf
      %3645 = vmax.xlane.f32.xlu0 %v3644
      %v3646 = vpop.xlane.xlu0 %3645
      %v3647 = vsel %vm3628, %v2146, -inf
      %3648 = vmax.xlane.f32.xlu0 %v3647
      %v3649 = vpop.xlane.xlu0 %3648
      %v3650 = vsel %vm3628, %v2149, -inf
      %3651 = vmax.xlane.f32.xlu0 %v3650
      %v3652 = vpop.xlane.xlu0 %3651
      %v3653 = vsel %vm3628, %v2152, -inf
      %3654 = vmax.xlane.f32.xlu0 %v3653
      %v3655 = vpop.xlane.xlu0 %3654
      %v3656 = vsel %vm3628, %v2155, -inf
      %3657 = vmax.xlane.f32.xlu0 %v3656
      %v3658 = vpop.xlane.xlu0 %3657
      %v3659 = vsel %vm3628, %v2158, -inf
      %3660 = vmax.xlane.f32.xlu0 %v3659
      %v3661 = vpop.xlane.xlu0 %3660
      %v3662 = vsel %vm3628, %v2161, -inf
      %3663 = vmax.xlane.f32.xlu0 %v3662
      %v3664 = vpop.xlane.xlu0 %3663
      %v3665 = vsel %vm3628, %v2164, -inf
      %3666 = vmax.xlane.f32.xlu0 %v3665
      %v3667 = vpop.xlane.xlu0 %3666
      %v3668 = vsel %vm3628, %v2167, -inf
      %3669 = vmax.xlane.f32.xlu0 %v3668
      %v3670 = vpop.xlane.xlu0 %3669
      %v3671 = vsel %vm3628, %v2170, -inf
      %3672 = vmax.xlane.f32.xlu0 %v3671
      %v3673 = vpop.xlane.xlu0 %3672
      %v3674 = vsel %vm3628, %v2173, -inf
      %3675 = vmax.xlane.f32.xlu0 %v3674
      %v3676 = vpop.xlane.xlu0 %3675
      %v3677 = vsub.f32 %v2128, %v3631
      %v3678 = vsub.f32 %v2131, %v3634
      %v3679 = vsub.f32 %v2134, %v3637
      %v3680 = vsub.f32 %v2137, %v3640
      %v3681 = vsub.f32 %v2140, %v3643
      %v3682 = vsub.f32 %v2143, %v3646
      %v3683 = vsub.f32 %v2146, %v3649
      %v3684 = vsub.f32 %v2149, %v3652
      %v3685 = vsub.f32 %v2152, %v3655
      %v3686 = vsub.f32 %v2155, %v3658
      %v3687 = vsub.f32 %v2158, %v3661
      %v3688 = vsub.f32 %v2161, %v3664
      %v3689 = vsub.f32 %v2164, %v3667
      %v3690 = vsub.f32 %v2167, %v3670
      %v3691 = vsub.f32 %v2170, %v3673
      %v3692 = vsub.f32 %v2173, %v3676
      %v3693 = vmul.f32 %v3677, 1.442695
      %v3694 = vpow.pop %v3693
      %v3695 = vmul.f32 %v3678, 1.442695
      %v3696 = vpow.pop %v3695
      %v3697 = vmul.f32 %v3679, 1.442695
      %v3698 = vpow.pop %v3697
      %v3699 = vmul.f32 %v3680, 1.442695
      %v3700 = vpow.pop %v3699
      %v3701 = vmul.f32 %v3681, 1.442695
      %v3702 = vpow.pop %v3701
      %v3703 = vmul.f32 %v3682, 1.442695
      %v3704 = vpow.pop %v3703
      %v3705 = vmul.f32 %v3683, 1.442695
      %v3706 = vpow.pop %v3705
      %v3707 = vmul.f32 %v3684, 1.442695
      %v3708 = vpow.pop %v3707
      %v3709 = vmul.f32 %v3685, 1.442695
      %v3710 = vpow.pop %v3709
      %v3711 = vmul.f32 %v3686, 1.442695
      %v3712 = vpow.pop %v3711
      %v3713 = vmul.f32 %v3687, 1.442695
      %v3714 = vpow.pop %v3713
      %v3715 = vmul.f32 %v3688, 1.442695
      %v3716 = vpow.pop %v3715
      %v3717 = vmul.f32 %v3689, 1.442695
      %v3718 = vpow.pop %v3717
      %v3719 = vmul.f32 %v3690, 1.442695
      %v3720 = vpow.pop %v3719
      %v3721 = vmul.f32 %v3691, 1.442695
      %v3722 = vpow.pop %v3721
      %v3723 = vmul.f32 %v3692, 1.442695
      %v3724 = vpow.pop %v3723
      %3741 = vrot.lane.b32.xlu0 %v3694, 64
      %v3742 = vpop.permute.xlu0 %3741
      %3743 = vrot.lane.b32.xlu0 %v3696, 64
      %v3744 = vpop.permute.xlu0 %3743
      %3745 = vrot.lane.b32.xlu0 %v3698, 64
      %v3746 = vpop.permute.xlu0 %3745
      %3747 = vrot.lane.b32.xlu0 %v3700, 64
      %v3748 = vpop.permute.xlu0 %3747
      %3749 = vrot.lane.b32.xlu0 %v3702, 64
      %v3750 = vpop.permute.xlu0 %3749
      %3751 = vrot.lane.b32.xlu0 %v3704, 64
      %v3752 = vpop.permute.xlu0 %3751
      %3753 = vrot.lane.b32.xlu0 %v3706, 64
      %v3754 = vpop.permute.xlu0 %3753
      %3755 = vrot.lane.b32.xlu0 %v3708, 64
      %v3756 = vpop.permute.xlu0 %3755
      %3757 = vrot.lane.b32.xlu0 %v3710, 64
      %v3758 = vpop.permute.xlu0 %3757
      %3759 = vrot.lane.b32.xlu0 %v3712, 64
      %v3760 = vpop.permute.xlu0 %3759
      %3761 = vrot.lane.b32.xlu0 %v3714, 64
      %v3762 = vpop.permute.xlu0 %3761
      %3763 = vrot.lane.b32.xlu0 %v3716, 64
      %v3764 = vpop.permute.xlu0 %3763
      %3765 = vrot.lane.b32.xlu0 %v3718, 64
      %v3766 = vpop.permute.xlu0 %3765
      %3767 = vrot.lane.b32.xlu0 %v3720, 64
      %v3768 = vpop.permute.xlu0 %3767
      %3769 = vrot.lane.b32.xlu0 %v3722, 64
      %v3770 = vpop.permute.xlu0 %3769
      %3771 = vrot.lane.b32.xlu0 %v3724, 64
      %v3772 = vpop.permute.xlu0 %3771
      %v3789 = vsel %vm2057, %v3742, 0.0
      %3790 = vadd.xlane.f32.xlu0 %v3789
      %v3791 = vpop.xlane.xlu0 %3790
      %v3792 = vsel %vm2057, %v3744, 0.0
      %3793 = vadd.xlane.f32.xlu0 %v3792
      %v3794 = vpop.xlane.xlu0 %3793
      %v3795 = vsel %vm2057, %v3746, 0.0
      %3796 = vadd.xlane.f32.xlu0 %v3795
      %v3797 = vpop.xlane.xlu0 %3796
      %v3798 = vsel %vm2057, %v3748, 0.0
      %3799 = vadd.xlane.f32.xlu0 %v3798
      %v3800 = vpop.xlane.xlu0 %3799
      %v3801 = vsel %vm2057, %v3750, 0.0
      %3802 = vadd.xlane.f32.xlu0 %v3801
      %v3803 = vpop.xlane.xlu0 %3802
      %v3804 = vsel %vm2057, %v3752, 0.0
      %3805 = vadd.xlane.f32.xlu0 %v3804
      %v3806 = vpop.xlane.xlu0 %3805
      %v3807 = vsel %vm2057, %v3754, 0.0
      %3808 = vadd.xlane.f32.xlu0 %v3807
      %v3809 = vpop.xlane.xlu0 %3808
      %v3810 = vsel %vm2057, %v3756, 0.0
      %3811 = vadd.xlane.f32.xlu0 %v3810
      %v3812 = vpop.xlane.xlu0 %3811
      %v3813 = vsel %vm2057, %v3758, 0.0
      %3814 = vadd.xlane.f32.xlu0 %v3813
      %v3815 = vpop.xlane.xlu0 %3814
      %v3816 = vsel %vm2057, %v3760, 0.0
      %3817 = vadd.xlane.f32.xlu0 %v3816
      %v3818 = vpop.xlane.xlu0 %3817
      %v3819 = vsel %vm2057, %v3762, 0.0
      %3820 = vadd.xlane.f32.xlu0 %v3819
      %v3821 = vpop.xlane.xlu0 %3820
      %v3822 = vsel %vm2057, %v3764, 0.0
      %3823 = vadd.xlane.f32.xlu0 %v3822
      %v3824 = vpop.xlane.xlu0 %3823
      %v3825 = vsel %vm2057, %v3766, 0.0
      %3826 = vadd.xlane.f32.xlu0 %v3825
      %v3827 = vpop.xlane.xlu0 %3826
      %v3828 = vsel %vm2057, %v3768, 0.0
      %3829 = vadd.xlane.f32.xlu0 %v3828
      %v3830 = vpop.xlane.xlu0 %3829
      %v3831 = vsel %vm2057, %v3770, 0.0
      %3832 = vadd.xlane.f32.xlu0 %v3831
      %v3833 = vpop.xlane.xlu0 %3832
      %v3834 = vsel %vm2057, %v3772, 0.0
      %3835 = vadd.xlane.f32.xlu0 %v3834
      %v3836 = vpop.xlane.xlu0 %3835
      %v3837 = vlog2.pop %v3791
      %v3838 = vmul.f32 %v3837, 0.6931472
      %v3839 = vlog2.pop %v3794
      %v3840 = vmul.f32 %v3839, 0.6931472
      %v3841 = vlog2.pop %v3797
      %v3842 = vmul.f32 %v3841, 0.6931472
      %v3843 = vlog2.pop %v3800
      %v3844 = vmul.f32 %v3843, 0.6931472
      %v3845 = vlog2.pop %v3803
      %v3846 = vmul.f32 %v3845, 0.6931472
      %v3847 = vlog2.pop %v3806
      %v3848 = vmul.f32 %v3847, 0.6931472
      %v3849 = vlog2.pop %v3809
      %v3850 = vmul.f32 %v3849, 0.6931472
      %v3851 = vlog2.pop %v3812
      %v3852 = vmul.f32 %v3851, 0.6931472
      %v3853 = vlog2.pop %v3815
      %v3854 = vmul.f32 %v3853, 0.6931472
      %v3855 = vlog2.pop %v3818
      %v3856 = vmul.f32 %v3855, 0.6931472
      %v3857 = vlog2.pop %v3821
      %v3858 = vmul.f32 %v3857, 0.6931472
      %v3859 = vlog2.pop %v3824
      %v3860 = vmul.f32 %v3859, 0.6931472
      %v3861 = vlog2.pop %v3827
      %v3862 = vmul.f32 %v3861, 0.6931472
      %v3863 = vlog2.pop %v3830
      %v3864 = vmul.f32 %v3863, 0.6931472
      %v3865 = vlog2.pop %v3833
      %v3866 = vmul.f32 %v3865, 0.6931472
      %v3867 = vlog2.pop %v3836
      %v3868 = vmul.f32 %v3867, 0.6931472
      %v3869 = vsub.f32 %v3677, %v3838
      %v3870 = vsub.f32 %v3678, %v3840
      %v3871 = vsub.f32 %v3679, %v3842
      %v3872 = vsub.f32 %v3680, %v3844
      %v3873 = vsub.f32 %v3681, %v3846
      %v3874 = vsub.f32 %v3682, %v3848
      %v3875 = vsub.f32 %v3683, %v3850
      %v3876 = vsub.f32 %v3684, %v3852
      %v3877 = vsub.f32 %v3685, %v3854
      %v3878 = vsub.f32 %v3686, %v3856
      %v3879 = vsub.f32 %v3687, %v3858
      %v3880 = vsub.f32 %v3688, %v3860
      %v3881 = vsub.f32 %v3689, %v3862
      %v3882 = vsub.f32 %v3690, %v3864
      %v3883 = vsub.f32 %v3691, %v3866
      %v3884 = vsub.f32 %v3692, %v3868
      %3901 = vrot.lane.b32.xlu0 %v3869, 84
      %v3902 = vpop.permute.xlu0 %3901
      %3903 = vrot.lane.b32.xlu0 %v3870, 84
      %v3904 = vpop.permute.xlu0 %3903
      %3905 = vrot.lane.b32.xlu0 %v3871, 84
      %v3906 = vpop.permute.xlu0 %3905
      %3907 = vrot.lane.b32.xlu0 %v3872, 84
      %v3908 = vpop.permute.xlu0 %3907
      %3909 = vrot.lane.b32.xlu0 %v3873, 84
      %v3910 = vpop.permute.xlu0 %3909
      %3911 = vrot.lane.b32.xlu0 %v3874, 84
      %v3912 = vpop.permute.xlu0 %3911
      %3913 = vrot.lane.b32.xlu0 %v3875, 84
      %v3914 = vpop.permute.xlu0 %3913
      %3915 = vrot.lane.b32.xlu0 %v3876, 84
      %v3916 = vpop.permute.xlu0 %3915
      %3917 = vrot.lane.b32.xlu0 %v3877, 84
      %v3918 = vpop.permute.xlu0 %3917
      %3919 = vrot.lane.b32.xlu0 %v3878, 84
      %v3920 = vpop.permute.xlu0 %3919
      %3921 = vrot.lane.b32.xlu0 %v3879, 84
      %v3922 = vpop.permute.xlu0 %3921
      %3923 = vrot.lane.b32.xlu0 %v3880, 84
      %v3924 = vpop.permute.xlu0 %3923
      %3925 = vrot.lane.b32.xlu0 %v3881, 84
      %v3926 = vpop.permute.xlu0 %3925
      %3927 = vrot.lane.b32.xlu0 %v3882, 84
      %v3928 = vpop.permute.xlu0 %3927
      %3929 = vrot.lane.b32.xlu0 %v3883, 84
      %v3930 = vpop.permute.xlu0 %3929
      %3931 = vrot.lane.b32.xlu0 %v3884, 84
      %v3932 = vpop.permute.xlu0 %3931
      %vm3949 = vcmask 162816
      %v3950 = vsel %vm3949, %v1844, %v3902
      %v3951 = vsel %vm3949, %v1847, %v3904
      %v3952 = vsel %vm3949, %v1850, %v3906
      %v3953 = vsel %vm3949, %v1853, %v3908
      %v3954 = vsel %vm3949, %v1856, %v3910
      %v3955 = vsel %vm3949, %v1859, %v3912
      %v3956 = vsel %vm3949, %v1862, %v3914
      %v3957 = vsel %vm3949, %v1865, %v3916
      %v3958 = vsel %vm3949, %v1868, %v3918
      %v3959 = vsel %vm3949, %v1871, %v3920
      %v3960 = vsel %vm3949, %v1874, %v3922
      %v3961 = vsel %vm3949, %v1877, %v3924
      %v3962 = vsel %vm3949, %v1880, %v3926
      %v3963 = vsel %vm3949, %v1883, %v3928
      %v3964 = vsel %vm3949, %v1886, %v3930
      %v3965 = vsel %vm3949, %v1889, %v3932
      %vm3966 = vcmask 244736
      %v3967 = vsel %vm3966, %v3950, 0.0
      %v3968 = vsel %vm3966, %v3951, 0.0
      %v3969 = vsel %vm3966, %v3952, 0.0
      %v3970 = vsel %vm3966, %v3953, 0.0
      %v3971 = vsel %vm3966, %v3954, 0.0
      %v3972 = vsel %vm3966, %v3955, 0.0
      %v3973 = vsel %vm3966, %v3956, 0.0
      %v3974 = vsel %vm3966, %v3957, 0.0
      %v3975 = vsel %vm3966, %v3958, 0.0
      %v3976 = vsel %vm3966, %v3959, 0.0
      %v3977 = vsel %vm3966, %v3960, 0.0
      %v3978 = vsel %vm3966, %v3961, 0.0
      %v3979 = vsel %vm3966, %v3962, 0.0
      %v3980 = vsel %vm3966, %v3963, 0.0
      %v3981 = vsel %vm3966, %v3964, 0.0
      %v3982 = vsel %vm3966, %v3965, 0.0
      %3983 = vst [vmem:[%s537] sm:$0xff] %v3967
      %3984 = vst [vmem:[%s537 + $0x8] sm:$0xff] %v3968
      %3985 = vst [vmem:[%s537 + $0x10] sm:$0xff] %v3969
      %3986 = vst [vmem:[%s537 + $0x18] sm:$0xff] %v3970
      %3987 = vst [vmem:[%s537 + $0x20] sm:$0xff] %v3971
      %3988 = vst [vmem:[%s537 + $0x28] sm:$0xff] %v3972
      %3989 = vst [vmem:[%s537 + $0x30] sm:$0xff] %v3973
      %3990 = vst [vmem:[%s537 + $0x38] sm:$0xff] %v3974
      %3991 = vst [vmem:[%s537 + $0x40] sm:$0xff] %v3975
      %3992 = vst [vmem:[%s537 + $0x48] sm:$0xff] %v3976
      %3993 = vst [vmem:[%s537 + $0x50] sm:$0xff] %v3977
      %3994 = vst [vmem:[%s537 + $0x58] sm:$0xff] %v3978
      %3995 = vst [vmem:[%s537 + $0x60] sm:$0xff] %v3979
      %3996 = vst [vmem:[%s537 + $0x68] sm:$0xff] %v3980
      %3997 = vst [vmem:[%s537 + $0x70] sm:$0xff] %v3981
      %3998 = vst [vmem:[%s537 + $0x78] sm:$0xff] %v3982
      %s3999 = smul.u32 16, %s27
      %p4000 = scmp.lt.s32.totalorder %s3999, 31
      %s4001 = scalar_select %p4000, %s3999, 31
      %s4002 = smul.addr %s4001, 7
      %s4003 = smul.addr %s4002, 4
      %s4004 = scalar_lea.vmem %s14, %s4003
      %s4005 = smul.u32 16, %s27
      %p4006 = scmp.lt.s32.totalorder %s4005, 31
      %s4007 = scalar_select %p4006, %s4005, 31
      %s4008 = smul.addr %s4007, 8
      %s4009 = scalar_lea.vmem %s15, %s4008
      // Predicated region
      $region77: #{vae_forward.1} parent=75 // pred_check
        %p4010 = pneg %p349
      $region78: #{vae_forward.1} parent=75 // pred_check_branch
        %4012 = sbr.rel (%p4010) target = $region80
      $region79: #{vae_forward.1} parent=75 // pred_region
        %s4013 = smul.u32 16, %s27
      $region80: #{vae_forward.1} parent=75 // pred_fallthru
        _
      // Predicated region
      $region81: #{vae_forward.1} parent=75 // pred_check
        %p4014 = pneg %p375
      $region82: #{vae_forward.1} parent=75 // pred_check_branch
        %4016 = sbr.rel (%p4014) target = $region84
      $region83: #{vae_forward.1} parent=75 // pred_region
        %s4017 = smul.u32 16, %s27
      $region84: #{vae_forward.1} parent=75 // pred_fallthru
        _
    $region76: #{vae_forward.1} parent=5 // pred_fallthru
      _
    %p4018 = scmp.le.s32.totalorder 2, %s22
    // Predicated region
    $region85: #{vae_forward.1} parent=5 // pred_check
      %p4019 = pneg %p4018
    $region86: #{vae_forward.1} parent=5 // pred_check_branch
      %4021 = sbr.rel (%p4019) target = $region88
    $region87: #{vae_forward.1} parent=5 // pred_region
      %s4022 = ssub.s32 %s22, 2
      // Predicated region
      $region89: #{vae_forward.1} parent=87 // pred_check
        %p4023 = pneg %p355
      $region90: #{vae_forward.1} parent=87 // pred_check_branch
        %4025 = sbr.rel (%p4023) target = $region92
      $region91: #{vae_forward.1} parent=87 // pred_region
        %s4026 = smul.u32 16, %s28
        %p4027 = scmp.lt.s32.totalorder %s4026, 31
        %s4028 = scalar_select %p4027, %s4026, 31
        %s4029 = smul.addr %s4028, 7
        %s4030 = smul.addr %s4029, 4
        %s4031 = scalar_lea.vmem %s14, %s4030
      $region92: #{vae_forward.1} parent=87 // pred_fallthru
        _
      // Predicated region
      $region93: #{vae_forward.1} parent=87 // pred_check
        %p4032 = pneg %p381
      $region94: #{vae_forward.1} parent=87 // pred_check_branch
        %4034 = sbr.rel (%p4032) target = $region96
      $region95: #{vae_forward.1} parent=87 // pred_region
        %s4035 = smul.u32 16, %s28
        %p4036 = scmp.lt.s32.totalorder %s4035, 31
        %s4037 = scalar_select %p4036, %s4035, 31
        %s4038 = smul.addr %s4037, 8
        %s4039 = scalar_lea.vmem %s15, %s4038
      $region96: #{vae_forward.1} parent=87 // pred_fallthru
        _
    $region88: #{vae_forward.1} parent=5 // pred_fallthru
      _
  $region6: #{vae_forward.1} parent=0 // loop_footer
    %s26 = sadd.s32 1, %s22
  $region7: #{vae_forward.1} parent=0 // loop_footer_branch
    %21 = sbr.rel target = $region3
  $region8: #{vae_forward.1} parent=0 // loop_exit
    _

</llo_original>
